<compile_context>
chip_gen: v6e
topology: v6e:2x2x1
jax: 0.10.0
libtpu: 0.0.40
codegen_flags: <defaults>
</compile_context>

<pallas_src>
import jax
import jax.numpy as jnp
from jax.experimental import pallas as pl
from jax.experimental.pallas import tpu as pltpu

IMAGE_DIM = 1280     # efficientnet_b0 feature width
FEAT_DIM = 709       # extra feature width
FUSION_DIM = 256
HID1 = 256
HID2 = 128
NUM_CLASSES = 3
BN_EPS = 1e-5


def _round_up(x, m):
    return (x + m - 1) // m * m


FEAT_PAD = _round_up(FEAT_DIM, 128)       # 768
OUT_PAD = _round_up(NUM_CLASSES, 128)     # 128


# ---------------------------------------------------------------------------
# Fused kernel: image stem (linear on pooled channels) + FusionAttention +
# MLP head.
# TODO(synk): the pretrained EfficientNet-B0 feature extractor cannot be
# reproduced without its checkpoint; it is replaced by a deterministic
# GAP + linear projection producing the same (B, 1280) feature shape.
# ---------------------------------------------------------------------------
def _ifof_kernel(pooled_ref, feat_ref,
                 w_stem_ref, b_stem_ref,
                 w_pi_ref, b_pi_ref, w_pf_ref, b_pf_ref,
                 wa0i_ref, wa0f_ref, wa1i_ref, wa1f_ref, b_attn_ref,
                 w1_ref, b1_ref, s1_ref, t1_ref,
                 w2_ref, b2_ref, s2_ref, t2_ref,
                 w3_ref, b3_ref, out_ref):
    bf16 = jnp.bfloat16

    # ---- backbone stand-in stem: tiny K=C contraction on the VPU -----------
    pooled = pooled_ref[...]                    # (bt, C) f32, GAP done outside
    w_stem = w_stem_ref[...]                    # (C, IMAGE_DIM) f32
    img_feat = b_stem_ref[...]                  # (1, IMAGE_DIM) -> broadcasts
    for c in range(pooled.shape[1]):            # C is tiny (e.g. 3): VPU MACs
        img_feat = img_feat + pooled[:, c:c + 1] * w_stem[c:c + 1, :]

    # ---- fusion attention ---------------------------------------------------
    proj_img = jnp.tanh(
        jnp.dot(img_feat.astype(bf16), w_pi_ref[...],
                preferred_element_type=jnp.float32) + b_pi_ref[...])
    proj_feat = jnp.tanh(
        jnp.dot(feat_ref[...], w_pf_ref[...],
                preferred_element_type=jnp.float32) + b_pf_ref[...])

    # attn_fc(concat) computed without materializing the (bt, 2F) concat.
    # Lane reductions land on the XLU slot (free next to the MXU work).
    l0 = (jnp.sum(proj_img * wa0i_ref[...], axis=1, keepdims=True)
          + jnp.sum(proj_feat * wa0f_ref[...], axis=1, keepdims=True)
          + b_attn_ref[0])
    l1 = (jnp.sum(proj_img * wa1i_ref[...], axis=1, keepdims=True)
          + jnp.sum(proj_feat * wa1f_ref[...], axis=1, keepdims=True)
          + b_attn_ref[1])
    m = jnp.maximum(l0, l1)
    e0 = jnp.exp(l0 - m)
    e1 = jnp.exp(l1 - m)
    inv = pl.reciprocal(e0 + e1, approx=True)
    fused = (e0 * inv) * proj_img + (e1 * inv) * proj_feat          # (bt, F)

    # ---- MLP head (bn folded to scale/shift; dropout = identity) -----------
    x = jnp.dot(fused.astype(bf16), w1_ref[...],
                preferred_element_type=jnp.float32) + b1_ref[...]
    x = jnp.maximum(x * s1_ref[...] + t1_ref[...], 0.0)
    x = jnp.dot(x.astype(bf16), w2_ref[...],
                preferred_element_type=jnp.float32) + b2_ref[...]
    x = jnp.maximum(x * s2_ref[...] + t2_ref[...], 0.0)
    out_ref[...] = jnp.dot(x.astype(bf16), w3_ref[...],
                           preferred_element_type=jnp.float32) + b3_ref[...]


# ---------------------------------------------------------------------------
# One-time parameter preparation (bf16 weights, padding, attn column split).
# ---------------------------------------------------------------------------
def prepare_params(p):
    bf16 = jnp.bfloat16
    q = {}
    q["w_stem"] = p["w_stem"].astype(jnp.float32)
    q["b_stem"] = p["b_stem"].astype(jnp.float32)
    q["w_pi"] = p["w_pi"].astype(bf16)
    q["b_pi"] = p["b_pi"]
    fpad = _round_up(p["w_pf"].shape[0], 128)
    q["w_pf"] = jnp.pad(p["w_pf"],
                        ((0, fpad - p["w_pf"].shape[0]), (0, 0))).astype(bf16)
    q["b_pf"] = p["b_pf"]
    wa = p["w_attn"]                                  # (2F, 2)
    F = FUSION_DIM
    q["wa0_img"] = wa[:F, 0].reshape(1, F)
    q["wa0_feat"] = wa[F:, 0].reshape(1, F)
    q["wa1_img"] = wa[:F, 1].reshape(1, F)
    q["wa1_feat"] = wa[F:, 1].reshape(1, F)
    q["b_attn"] = p["b_attn"].reshape(2)              # SMEM scalars
    q["w1"] = p["w1"].astype(bf16)
    q["b1"], q["s1"], q["t1"] = p["b1"], p["s1"], p["t1"]
    q["w2"] = p["w2"].astype(bf16)
    q["b2"], q["s2"], q["t2"] = p["b2"], p["s2"], p["t2"]
    q["w3"] = jnp.pad(p["w3"],
                      ((0, 0), (0, OUT_PAD - NUM_CLASSES))).astype(bf16)
    q["b3"] = jnp.pad(p["b3"], ((0, 0), (0, OUT_PAD - NUM_CLASSES)))
    return q


# ---------------------------------------------------------------------------
# Batch-tile selection (generation aware).
# ---------------------------------------------------------------------------
def _choose_bt(B, *, cap, min_steps):
    Bp8 = _round_up(B, 8)
    if Bp8 <= 8:
        return Bp8                       # single step; latency-bound regime
    n = max(pl.cdiv(Bp8, cap), min_steps)
    n = min(n, Bp8 // 8)                 # at least 8 rows per step
    return _round_up(pl.cdiv(Bp8, n), 8)


# ---------------------------------------------------------------------------
# Full forward.
# ---------------------------------------------------------------------------
@jax.jit
def efficientnet_ifof_forward(images, features, qp):
    B, S, C, H, W = images.shape

    # Last frame only, global-average-pool done here (XLA-fused reduction with
    # f32 accumulation) so the kernel streams a (B, C) tensor, not (B, C, HW).
    pooled = jnp.mean(images[:, -1], axis=(-2, -1),
                      dtype=jnp.float32)                       # (B, C)

    feats = features.reshape(B, -1)
    fpad = _round_up(feats.shape[1], 128)
    feats = jnp.pad(feats,
                    ((0, 0), (0, fpad - feats.shape[1]))).astype(jnp.bfloat16)

    # v6e/v7x: 256-wide MXU -> 256-row tiles; v5e: 128 is enough.
    # v7x has 2 TensorCores -> guarantee >= 2 parallel grid steps.
    kind = jax.devices()[0].device_kind.lower()
    cap = 256 if ("v6" in kind or "v7" in kind) else 128
    min_steps = 2 if "v7" in kind else 1
    bt = _choose_bt(B, cap=cap, min_steps=min_steps)
    Bp = _round_up(B, bt)
    if Bp != B:
        pooled = jnp.pad(pooled, ((0, Bp - B), (0, 0)))
        feats = jnp.pad(feats, ((0, Bp - B), (0, 0)))

    # Weights use constant block indices -> VMEM-resident across batch tiles.
    # (Single-buffering them via pipeline_mode is a small v7x-only VMEM win;
    # left at the default for compile portability — total weights are ~2.5 MB.)
    wmap = lambda i: (0, 0)

    in_specs = [
        pl.BlockSpec((bt, C), lambda i: (i, 0)),                 # pooled (B,C)
        pl.BlockSpec((bt, fpad), lambda i: (i, 0)),              # feats
        pl.BlockSpec((C, IMAGE_DIM), wmap),                      # w_stem
        pl.BlockSpec((1, IMAGE_DIM), wmap),                      # b_stem
        pl.BlockSpec((IMAGE_DIM, FUSION_DIM), wmap),             # w_pi
        pl.BlockSpec((1, FUSION_DIM), wmap),                     # b_pi
        pl.BlockSpec((fpad, FUSION_DIM), wmap),                  # w_pf
        pl.BlockSpec((1, FUSION_DIM), wmap),                     # b_pf
        pl.BlockSpec((1, FUSION_DIM), wmap),                     # wa0_img
        pl.BlockSpec((1, FUSION_DIM), wmap),                     # wa0_feat
        pl.BlockSpec((1, FUSION_DIM), wmap),                     # wa1_img
        pl.BlockSpec((1, FUSION_DIM), wmap),                     # wa1_feat
        pl.BlockSpec(memory_space=pltpu.MemorySpace.SMEM),       # b_attn (2,)
        pl.BlockSpec((FUSION_DIM, HID1), wmap),                  # w1
        pl.BlockSpec((1, HID1), wmap),                           # b1
        pl.BlockSpec((1, HID1), wmap),                           # s1
        pl.BlockSpec((1, HID1), wmap),                           # t1
        pl.BlockSpec((HID1, HID2), wmap),                        # w2
        pl.BlockSpec((1, HID2), wmap),                           # b2
        pl.BlockSpec((1, HID2), wmap),                           # s2
        pl.BlockSpec((1, HID2), wmap),                           # t2
        pl.BlockSpec((HID2, OUT_PAD), wmap),                     # w3 (padded)
        pl.BlockSpec((1, OUT_PAD), wmap),                        # b3 (padded)
    ]

    out = pl.pallas_call(
        _ifof_kernel,
        out_shape=jax.ShapeDtypeStruct((Bp, OUT_PAD), jnp.float32),
        grid=(Bp // bt,),
        in_specs=in_specs,
        out_specs=pl.BlockSpec((bt, OUT_PAD), lambda i: (i, 0)),
        compiler_params=pltpu.CompilerParams(
            dimension_semantics=("parallel",),
            vmem_limit_bytes=32 * 1024 * 1024),
    )(pooled, feats,
      qp["w_stem"], qp["b_stem"],
      qp["w_pi"], qp["b_pi"], qp["w_pf"], qp["b_pf"],
      qp["wa0_img"], qp["wa0_feat"], qp["wa1_img"], qp["wa1_feat"],
      qp["b_attn"],
      qp["w1"], qp["b1"], qp["s1"], qp["t1"],
      qp["w2"], qp["b2"], qp["s2"], qp["t2"],
      qp["w3"], qp["b3"])

    return out[:B, :NUM_CLASSES]


# ---------------------------------------------------------------------------
# Deterministic parameter init + pure-jnp reference for verification.
# ---------------------------------------------------------------------------
def init_params(key, c_in):
    ks = jax.random.split(key, 10)

    def lin(k, din, dout):
        k1, k2 = jax.random.split(k)
        bound = 1.0 / (din ** 0.5)
        w = jax.random.uniform(k1, (din, dout), jnp.float32, -bound, bound)
        b = jax.random.uniform(k2, (1, dout), jnp.float32, -bound, bound)
        return w, b

    def bn(k, d):
        k1, k2, k3, k4 = jax.random.split(k, 4)
        gamma = jax.random.uniform(k1, (1, d), jnp.float32, 0.5, 1.5)
        beta = jax.random.uniform(k2, (1, d), jnp.float32, -0.1, 0.1)
        mean = 0.1 * jax.random.normal(k3, (1, d), jnp.float32)
        var = jax.random.uniform(k4, (1, d), jnp.float32, 0.5, 1.5)
        scale = gamma / jnp.sqrt(var + BN_EPS)
        shift = beta - mean * scale
        return scale, shift

    p = {}
    p["w_stem"] = 0.05 * jax.random.normal(ks[0], (c_in, IMAGE_DIM), jnp.float32)
    p["b_stem"] = 0.01 * jax.random.normal(ks[1], (1, IMAGE_DIM), jnp.float32)
    p["w_pi"], p["b_pi"] = lin(ks[2], IMAGE_DIM, FUSION_DIM)
    p["w_pf"], p["b_pf"] = lin(ks[3], FEAT_DIM, FUSION_DIM)
    p["w_attn"], p["b_attn"] = lin(ks[4], 2 * FUSION_DIM, 2)
    p["w1"], p["b1"] = lin(ks[5], FUSION_DIM, HID1)
    p["s1"], p["t1"] = bn(ks[6], HID1)
    p["w2"], p["b2"] = lin(ks[7], HID1, HID2)
    p["s2"], p["t2"] = bn(ks[8], HID2)
    p["w3"], p["b3"] = lin(ks[9], HID2, NUM_CLASSES)
    return p


def reference_forward(images, features, p):
    """Pure-jnp reference mirroring the kernel's bf16 matmul boundaries."""
    B, S, C, H, W = images.shape
    pooled = jnp.mean(images[:, -1], axis=(-2, -1), dtype=jnp.float32)  # (B,C)
    img_feats = pooled @ p["w_stem"] + p["b_stem"]                      # f32
    feats = features.reshape(B, -1)

    bf16 = jnp.bfloat16

    def bdot(a, w):
        return jnp.dot(a.astype(bf16), w.astype(bf16),
                       preferred_element_type=jnp.float32)

    pi = jnp.tanh(bdot(img_feats, p["w_pi"]) + p["b_pi"])
    pf = jnp.tanh(bdot(feats, p["w_pf"]) + p["b_pf"])
    comb = jnp.concatenate([pi, pf], axis=1)
    w = jax.nn.softmax(comb @ p["w_attn"] + p["b_attn"], axis=1)
    fused = w[:, 0:1] * pi + w[:, 1:2] * pf
    x = jax.nn.relu((bdot(fused, p["w1"]) + p["b1"]) * p["s1"] + p["t1"])
    x = jax.nn.relu((bdot(x, p["w2"]) + p["b2"]) * p["s2"] + p["t2"])
    return bdot(x, p["w3"]) + p["b3"]


if __name__ == "__main__":
    key = jax.random.PRNGKey(0)
    kp, ki, kf = jax.random.split(key, 3)

    B, S, C, H, W = 2, 3, 3, 16, 16
    params = init_params(kp, C)
    images = jax.random.normal(ki, (B, S, C, H, W), jnp.float32)
    features = jax.random.normal(kf, (B, FEAT_DIM), jnp.float32)

    qparams = prepare_params(params)
    out = efficientnet_ifof_forward(images, features, qparams)
    out = jax.block_until_ready(out)

    ref = reference_forward(images, features, params)
    assert out.shape == (B, NUM_CLASSES), out.shape
    if not jnp.allclose(out, ref, atol=2e-2, rtol=2e-2):
        raise AssertionError("Pallas kernel output mismatch vs reference")
    print("KERNEL_OK")
</pallas_src>

<mosaic_0001>
module attributes {stable_mosaic.version = 11 : i64} {
  func.func @_ifof_kernel(%arg0: i32, %arg1: memref<8x3xf32, #tpu.memory_space<vmem>>, %arg2: memref<8x768xbf16, #tpu.memory_space<vmem>>, %arg3: memref<3x1280xf32, #tpu.memory_space<vmem>>, %arg4: memref<1x1280xf32, #tpu.memory_space<vmem>>, %arg5: memref<1280x256xbf16, #tpu.memory_space<vmem>>, %arg6: memref<1x256xf32, #tpu.memory_space<vmem>>, %arg7: memref<768x256xbf16, #tpu.memory_space<vmem>>, %arg8: memref<1x256xf32, #tpu.memory_space<vmem>>, %arg9: memref<1x256xf32, #tpu.memory_space<vmem>>, %arg10: memref<1x256xf32, #tpu.memory_space<vmem>>, %arg11: memref<1x256xf32, #tpu.memory_space<vmem>>, %arg12: memref<1x256xf32, #tpu.memory_space<vmem>>, %arg13: memref<2xf32, #tpu.memory_space<smem>>, %arg14: memref<256x256xbf16, #tpu.memory_space<vmem>>, %arg15: memref<1x256xf32, #tpu.memory_space<vmem>>, %arg16: memref<1x256xf32, #tpu.memory_space<vmem>>, %arg17: memref<1x256xf32, #tpu.memory_space<vmem>>, %arg18: memref<256x128xbf16, #tpu.memory_space<vmem>>, %arg19: memref<1x128xf32, #tpu.memory_space<vmem>>, %arg20: memref<1x128xf32, #tpu.memory_space<vmem>>, %arg21: memref<1x128xf32, #tpu.memory_space<vmem>>, %arg22: memref<128x128xbf16, #tpu.memory_space<vmem>>, %arg23: memref<1x128xf32, #tpu.memory_space<vmem>>, %arg24: memref<8x128xf32, #tpu.memory_space<vmem>>) attributes {dimension_semantics = [#tpu.dimension_semantics<parallel>], iteration_bounds = array<i64: 1>, scalar_prefetch = 0 : i64, scratch_operands = 0 : i64, tpu.core_type = #tpu.core_type<tc>, window_params = [{transform_indices = @transform_0, window_bounds = array<i64: 8, 3>}, {transform_indices = @transform_1, window_bounds = array<i64: 8, 768>}, {pipeline_mode = #tpu.pipeline_mode<synchronous>, transform_indices = @transform_2, window_bounds = array<i64: 3, 1280>}, {pipeline_mode = #tpu.pipeline_mode<synchronous>, transform_indices = @transform_3, window_bounds = array<i64: 1, 1280>}, {pipeline_mode = #tpu.pipeline_mode<synchronous>, transform_indices = @transform_4, window_bounds = array<i64: 1280, 256>}, {pipeline_mode = #tpu.pipeline_mode<synchronous>, transform_indices = @transform_5, window_bounds = array<i64: 1, 256>}, {pipeline_mode = #tpu.pipeline_mode<synchronous>, transform_indices = @transform_6, window_bounds = array<i64: 768, 256>}, {pipeline_mode = #tpu.pipeline_mode<synchronous>, transform_indices = @transform_7, window_bounds = array<i64: 1, 256>}, {pipeline_mode = #tpu.pipeline_mode<synchronous>, transform_indices = @transform_8, window_bounds = array<i64: 1, 256>}, {pipeline_mode = #tpu.pipeline_mode<synchronous>, transform_indices = @transform_9, window_bounds = array<i64: 1, 256>}, {pipeline_mode = #tpu.pipeline_mode<synchronous>, transform_indices = @transform_10, window_bounds = array<i64: 1, 256>}, {pipeline_mode = #tpu.pipeline_mode<synchronous>, transform_indices = @transform_11, window_bounds = array<i64: 1, 256>}, {transform_indices = @transform_12, window_bounds = array<i64: 2>}, {pipeline_mode = #tpu.pipeline_mode<synchronous>, transform_indices = @transform_13, window_bounds = array<i64: 256, 256>}, {pipeline_mode = #tpu.pipeline_mode<synchronous>, transform_indices = @transform_14, window_bounds = array<i64: 1, 256>}, {pipeline_mode = #tpu.pipeline_mode<synchronous>, transform_indices = @transform_15, window_bounds = array<i64: 1, 256>}, {pipeline_mode = #tpu.pipeline_mode<synchronous>, transform_indices = @transform_16, window_bounds = array<i64: 1, 256>}, {pipeline_mode = #tpu.pipeline_mode<synchronous>, transform_indices = @transform_17, window_bounds = array<i64: 256, 128>}, {pipeline_mode = #tpu.pipeline_mode<synchronous>, transform_indices = @transform_18, window_bounds = array<i64: 1, 128>}, {pipeline_mode = #tpu.pipeline_mode<synchronous>, transform_indices = @transform_19, window_bounds = array<i64: 1, 128>}, {pipeline_mode = #tpu.pipeline_mode<synchronous>, transform_indices = @transform_20, window_bounds = array<i64: 1, 128>}, {pipeline_mode = #tpu.pipeline_mode<synchronous>, transform_indices = @transform_21, window_bounds = array<i64: 128, 128>}, {pipeline_mode = #tpu.pipeline_mode<synchronous>, transform_indices = @transform_22, window_bounds = array<i64: 1, 128>}, {transform_indices = @transform_23, window_bounds = array<i64: 8, 128>}]} {
    %c0 = arith.constant 0 : index
    %c0_0 = arith.constant 0 : index
    %0 = vector.load %arg1[%c0, %c0_0] : memref<8x3xf32, #tpu.memory_space<vmem>>, vector<8x3xf32>
    %c0_1 = arith.constant 0 : index
    %c0_2 = arith.constant 0 : index
    %1 = vector.load %arg3[%c0_1, %c0_2] : memref<3x1280xf32, #tpu.memory_space<vmem>>, vector<3x1280xf32>
    %c0_3 = arith.constant 0 : index
    %c0_4 = arith.constant 0 : index
    %2 = vector.load %arg4[%c0_3, %c0_4] : memref<1x1280xf32, #tpu.memory_space<vmem>>, vector<1x1280xf32>
    %3 = vector.extract_strided_slice %0 {offsets = [0, 0], sizes = [8, 1], strides = [1, 1]} : vector<8x3xf32> to vector<8x1xf32>
    %4 = vector.extract_strided_slice %1 {offsets = [0, 0], sizes = [1, 1280], strides = [1, 1]} : vector<3x1280xf32> to vector<1x1280xf32>
    %5 = vector.broadcast %3 : vector<8x1xf32> to vector<8x1280xf32>
    %6 = vector.broadcast %4 : vector<1x1280xf32> to vector<8x1280xf32>
    %7 = arith.mulf %5, %6 : vector<8x1280xf32>
    %8 = vector.broadcast %2 : vector<1x1280xf32> to vector<8x1280xf32>
    %9 = arith.addf %8, %7 : vector<8x1280xf32>
    %10 = vector.extract_strided_slice %0 {offsets = [0, 1], sizes = [8, 1], strides = [1, 1]} : vector<8x3xf32> to vector<8x1xf32>
    %11 = vector.extract_strided_slice %1 {offsets = [1, 0], sizes = [1, 1280], strides = [1, 1]} : vector<3x1280xf32> to vector<1x1280xf32>
    %12 = vector.broadcast %10 : vector<8x1xf32> to vector<8x1280xf32>
    %13 = vector.broadcast %11 : vector<1x1280xf32> to vector<8x1280xf32>
    %14 = arith.mulf %12, %13 : vector<8x1280xf32>
    %15 = arith.addf %9, %14 : vector<8x1280xf32>
    %16 = vector.extract_strided_slice %0 {offsets = [0, 2], sizes = [8, 1], strides = [1, 1]} : vector<8x3xf32> to vector<8x1xf32>
    %17 = vector.extract_strided_slice %1 {offsets = [2, 0], sizes = [1, 1280], strides = [1, 1]} : vector<3x1280xf32> to vector<1x1280xf32>
    %18 = vector.broadcast %16 : vector<8x1xf32> to vector<8x1280xf32>
    %19 = vector.broadcast %17 : vector<1x1280xf32> to vector<8x1280xf32>
    %20 = arith.mulf %18, %19 : vector<8x1280xf32>
    %21 = arith.addf %15, %20 : vector<8x1280xf32>
    %22 = arith.truncf %21 : vector<8x1280xf32> to vector<8x1280xbf16>
    %c0_5 = arith.constant 0 : index
    %c0_6 = arith.constant 0 : index
    %23 = vector.load %arg5[%c0_5, %c0_6] : memref<1280x256xbf16, #tpu.memory_space<vmem>>, vector<1280x256xbf16>
    %cst = arith.constant dense<0.000000e+00> : vector<8x256xf32>
    %24 = tpu.matmul %22, %23, %cst {dimension_numbers = #tpu.dot_dimension_numbers<[1], [0], [0], [1], [0, 0, 1, 1], [], []>} : vector<8x1280xbf16>, vector<1280x256xbf16>, vector<8x256xf32> -> vector<8x256xf32>
    %c0_7 = arith.constant 0 : index
    %c0_8 = arith.constant 0 : index
    %25 = vector.load %arg6[%c0_7, %c0_8] : memref<1x256xf32, #tpu.memory_space<vmem>>, vector<1x256xf32>
    %26 = vector.broadcast %25 : vector<1x256xf32> to vector<8x256xf32>
    %27 = arith.addf %24, %26 : vector<8x256xf32>
    %28 = math.tanh %27 : vector<8x256xf32>
    %c0_9 = arith.constant 0 : index
    %c0_10 = arith.constant 0 : index
    %29 = vector.load %arg2[%c0_9, %c0_10] : memref<8x768xbf16, #tpu.memory_space<vmem>>, vector<8x768xbf16>
    %c0_11 = arith.constant 0 : index
    %c0_12 = arith.constant 0 : index
    %30 = vector.load %arg7[%c0_11, %c0_12] : memref<768x256xbf16, #tpu.memory_space<vmem>>, vector<768x256xbf16>
    %cst_13 = arith.constant dense<0.000000e+00> : vector<8x256xf32>
    %31 = tpu.matmul %29, %30, %cst_13 {dimension_numbers = #tpu.dot_dimension_numbers<[1], [0], [0], [1], [0, 0, 1, 1], [], []>} : vector<8x768xbf16>, vector<768x256xbf16>, vector<8x256xf32> -> vector<8x256xf32>
    %c0_14 = arith.constant 0 : index
    %c0_15 = arith.constant 0 : index
    %32 = vector.load %arg8[%c0_14, %c0_15] : memref<1x256xf32, #tpu.memory_space<vmem>>, vector<1x256xf32>
    %33 = vector.broadcast %32 : vector<1x256xf32> to vector<8x256xf32>
    %34 = arith.addf %31, %33 : vector<8x256xf32>
    %35 = math.tanh %34 : vector<8x256xf32>
    %c0_16 = arith.constant 0 : index
    %c0_17 = arith.constant 0 : index
    %36 = vector.load %arg9[%c0_16, %c0_17] : memref<1x256xf32, #tpu.memory_space<vmem>>, vector<1x256xf32>
    %37 = vector.broadcast %36 : vector<1x256xf32> to vector<8x256xf32>
    %38 = arith.mulf %28, %37 : vector<8x256xf32>
    %cst_18 = arith.constant dense<0.000000e+00> : vector<8xf32>
    %39 = vector.multi_reduction <add>, %38, %cst_18 [1] : vector<8x256xf32> to vector<8xf32>
    %40 = vector.shape_cast %39 : vector<8xf32> to vector<8x1xf32>
    %c0_19 = arith.constant 0 : index
    %c0_20 = arith.constant 0 : index
    %41 = vector.load %arg10[%c0_19, %c0_20] : memref<1x256xf32, #tpu.memory_space<vmem>>, vector<1x256xf32>
    %42 = vector.broadcast %41 : vector<1x256xf32> to vector<8x256xf32>
    %43 = arith.mulf %35, %42 : vector<8x256xf32>
    %cst_21 = arith.constant dense<0.000000e+00> : vector<8xf32>
    %44 = vector.multi_reduction <add>, %43, %cst_21 [1] : vector<8x256xf32> to vector<8xf32>
    %45 = vector.shape_cast %44 : vector<8xf32> to vector<8x1xf32>
    %46 = arith.addf %40, %45 : vector<8x1xf32>
    %c0_22 = arith.constant 0 : index
    %47 = memref.load %arg13[%c0_22] : memref<2xf32, #tpu.memory_space<smem>>
    %48 = vector.broadcast %47 : f32 to vector<8x1xf32>
    %49 = arith.addf %46, %48 : vector<8x1xf32>
    %c0_23 = arith.constant 0 : index
    %c0_24 = arith.constant 0 : index
    %50 = vector.load %arg11[%c0_23, %c0_24] : memref<1x256xf32, #tpu.memory_space<vmem>>, vector<1x256xf32>
    %51 = vector.broadcast %50 : vector<1x256xf32> to vector<8x256xf32>
    %52 = arith.mulf %28, %51 : vector<8x256xf32>
    %cst_25 = arith.constant dense<0.000000e+00> : vector<8xf32>
    %53 = vector.multi_reduction <add>, %52, %cst_25 [1] : vector<8x256xf32> to vector<8xf32>
    %54 = vector.shape_cast %53 : vector<8xf32> to vector<8x1xf32>
    %c0_26 = arith.constant 0 : index
    %c0_27 = arith.constant 0 : index
    %55 = vector.load %arg12[%c0_26, %c0_27] : memref<1x256xf32, #tpu.memory_space<vmem>>, vector<1x256xf32>
    %56 = vector.broadcast %55 : vector<1x256xf32> to vector<8x256xf32>
    %57 = arith.mulf %35, %56 : vector<8x256xf32>
    %cst_28 = arith.constant dense<0.000000e+00> : vector<8xf32>
    %58 = vector.multi_reduction <add>, %57, %cst_28 [1] : vector<8x256xf32> to vector<8xf32>
    %59 = vector.shape_cast %58 : vector<8xf32> to vector<8x1xf32>
    %60 = arith.addf %54, %59 : vector<8x1xf32>
    %c1 = arith.constant 1 : index
    %61 = memref.load %arg13[%c1] : memref<2xf32, #tpu.memory_space<smem>>
    %62 = vector.broadcast %61 : f32 to vector<8x1xf32>
    %63 = arith.addf %60, %62 : vector<8x1xf32>
    %64 = arith.maximumf %49, %63 : vector<8x1xf32>
    %65 = arith.subf %49, %64 : vector<8x1xf32>
    %66 = math.exp %65 : vector<8x1xf32>
    %67 = arith.subf %63, %64 : vector<8x1xf32>
    %68 = math.exp %67 : vector<8x1xf32>
    %69 = arith.addf %66, %68 : vector<8x1xf32>
    %70 = tpu.reciprocal %69 {approx = true} : vector<8x1xf32> -> vector<8x1xf32>
    %71 = arith.mulf %66, %70 : vector<8x1xf32>
    %72 = vector.broadcast %71 : vector<8x1xf32> to vector<8x256xf32>
    %73 = arith.mulf %72, %28 : vector<8x256xf32>
    %74 = arith.mulf %68, %70 : vector<8x1xf32>
    %75 = vector.broadcast %74 : vector<8x1xf32> to vector<8x256xf32>
    %76 = arith.mulf %75, %35 : vector<8x256xf32>
    %77 = arith.addf %73, %76 : vector<8x256xf32>
    %78 = arith.truncf %77 : vector<8x256xf32> to vector<8x256xbf16>
    %c0_29 = arith.constant 0 : index
    %c0_30 = arith.constant 0 : index
    %79 = vector.load %arg14[%c0_29, %c0_30] : memref<256x256xbf16, #tpu.memory_space<vmem>>, vector<256x256xbf16>
    %cst_31 = arith.constant dense<0.000000e+00> : vector<8x256xf32>
    %80 = tpu.matmul %78, %79, %cst_31 {dimension_numbers = #tpu.dot_dimension_numbers<[1], [0], [0], [1], [0, 0, 1, 1], [], []>} : vector<8x256xbf16>, vector<256x256xbf16>, vector<8x256xf32> -> vector<8x256xf32>
    %c0_32 = arith.constant 0 : index
    %c0_33 = arith.constant 0 : index
    %81 = vector.load %arg15[%c0_32, %c0_33] : memref<1x256xf32, #tpu.memory_space<vmem>>, vector<1x256xf32>
    %82 = vector.broadcast %81 : vector<1x256xf32> to vector<8x256xf32>
    %83 = arith.addf %80, %82 : vector<8x256xf32>
    %c0_34 = arith.constant 0 : index
    %c0_35 = arith.constant 0 : index
    %84 = vector.load %arg16[%c0_34, %c0_35] : memref<1x256xf32, #tpu.memory_space<vmem>>, vector<1x256xf32>
    %85 = vector.broadcast %84 : vector<1x256xf32> to vector<8x256xf32>
    %86 = arith.mulf %83, %85 : vector<8x256xf32>
    %c0_36 = arith.constant 0 : index
    %c0_37 = arith.constant 0 : index
    %87 = vector.load %arg17[%c0_36, %c0_37] : memref<1x256xf32, #tpu.memory_space<vmem>>, vector<1x256xf32>
    %88 = vector.broadcast %87 : vector<1x256xf32> to vector<8x256xf32>
    %89 = arith.addf %86, %88 : vector<8x256xf32>
    %cst_38 = arith.constant 0.000000e+00 : f32
    %90 = vector.broadcast %cst_38 : f32 to vector<8x256xf32>
    %91 = arith.maximumf %89, %90 : vector<8x256xf32>
    %92 = arith.truncf %91 : vector<8x256xf32> to vector<8x256xbf16>
    %c0_39 = arith.constant 0 : index
    %c0_40 = arith.constant 0 : index
    %93 = vector.load %arg18[%c0_39, %c0_40] : memref<256x128xbf16, #tpu.memory_space<vmem>>, vector<256x128xbf16>
    %cst_41 = arith.constant dense<0.000000e+00> : vector<8x128xf32>
    %94 = tpu.matmul %92, %93, %cst_41 {dimension_numbers = #tpu.dot_dimension_numbers<[1], [0], [0], [1], [0, 0, 1, 1], [], []>} : vector<8x256xbf16>, vector<256x128xbf16>, vector<8x128xf32> -> vector<8x128xf32>
    %c0_42 = arith.constant 0 : index
    %c0_43 = arith.constant 0 : index
    %95 = vector.load %arg19[%c0_42, %c0_43] : memref<1x128xf32, #tpu.memory_space<vmem>>, vector<1x128xf32>
    %96 = vector.broadcast %95 : vector<1x128xf32> to vector<8x128xf32>
    %97 = arith.addf %94, %96 : vector<8x128xf32>
    %c0_44 = arith.constant 0 : index
    %c0_45 = arith.constant 0 : index
    %98 = vector.load %arg20[%c0_44, %c0_45] : memref<1x128xf32, #tpu.memory_space<vmem>>, vector<1x128xf32>
    %99 = vector.broadcast %98 : vector<1x128xf32> to vector<8x128xf32>
    %100 = arith.mulf %97, %99 : vector<8x128xf32>
    %c0_46 = arith.constant 0 : index
    %c0_47 = arith.constant 0 : index
    %101 = vector.load %arg21[%c0_46, %c0_47] : memref<1x128xf32, #tpu.memory_space<vmem>>, vector<1x128xf32>
    %102 = vector.broadcast %101 : vector<1x128xf32> to vector<8x128xf32>
    %103 = arith.addf %100, %102 : vector<8x128xf32>
    %cst_48 = arith.constant 0.000000e+00 : f32
    %104 = vector.broadcast %cst_48 : f32 to vector<8x128xf32>
    %105 = arith.maximumf %103, %104 : vector<8x128xf32>
    %106 = arith.truncf %105 : vector<8x128xf32> to vector<8x128xbf16>
    %c0_49 = arith.constant 0 : index
    %c0_50 = arith.constant 0 : index
    %107 = vector.load %arg22[%c0_49, %c0_50] : memref<128x128xbf16, #tpu.memory_space<vmem>>, vector<128x128xbf16>
    %cst_51 = arith.constant dense<0.000000e+00> : vector<8x128xf32>
    %108 = tpu.matmul %106, %107, %cst_51 {dimension_numbers = #tpu.dot_dimension_numbers<[1], [0], [0], [1], [0, 0, 1, 1], [], []>} : vector<8x128xbf16>, vector<128x128xbf16>, vector<8x128xf32> -> vector<8x128xf32>
    %c0_52 = arith.constant 0 : index
    %c0_53 = arith.constant 0 : index
    %109 = vector.load %arg23[%c0_52, %c0_53] : memref<1x128xf32, #tpu.memory_space<vmem>>, vector<1x128xf32>
    %110 = vector.broadcast %109 : vector<1x128xf32> to vector<8x128xf32>
    %111 = arith.addf %108, %110 : vector<8x128xf32>
    %c0_54 = arith.constant 0 : index
    %c0_55 = arith.constant 0 : index
    %112 = vector.load %arg24[%c0_54, %c0_55] : memref<8x128xf32, #tpu.memory_space<vmem>>, vector<8x128xf32>
    tpu.vector_store %arg24[%c0_54, %c0_55], %111 {strides = array<i32>} : memref<8x128xf32, #tpu.memory_space<vmem>>, vector<8x128xf32>,
    return
  }
  func.func @transform_0(%arg0: i32) -> (i32, i32) {
    %c0_i32 = arith.constant 0 : i32
    %c0_i32_0 = arith.constant 0 : i32
    return %arg0, %c0_i32 : i32, i32
  }
  func.func @transform_1(%arg0: i32) -> (i32, i32) {
    %c0_i32 = arith.constant 0 : i32
    %c0_i32_0 = arith.constant 0 : i32
    return %arg0, %c0_i32 : i32, i32
  }
  func.func @transform_2(%arg0: i32) -> (i32, i32) {
    %c0_i32 = arith.constant 0 : i32
    %c0_i32_0 = arith.constant 0 : i32
    %c0_i32_1 = arith.constant 0 : i32
    return %c0_i32, %c0_i32_0 : i32, i32
  }
  func.func @transform_3(%arg0: i32) -> (i32, i32) {
    %c0_i32 = arith.constant 0 : i32
    %c0_i32_0 = arith.constant 0 : i32
    %c0_i32_1 = arith.constant 0 : i32
    return %c0_i32, %c0_i32_0 : i32, i32
  }
  func.func @transform_4(%arg0: i32) -> (i32, i32) {
    %c0_i32 = arith.constant 0 : i32
    %c0_i32_0 = arith.constant 0 : i32
    %c0_i32_1 = arith.constant 0 : i32
    return %c0_i32, %c0_i32_0 : i32, i32
  }
  func.func @transform_5(%arg0: i32) -> (i32, i32) {
    %c0_i32 = arith.constant 0 : i32
    %c0_i32_0 = arith.constant 0 : i32
    %c0_i32_1 = arith.constant 0 : i32
    return %c0_i32, %c0_i32_0 : i32, i32
  }
  func.func @transform_6(%arg0: i32) -> (i32, i32) {
    %c0_i32 = arith.constant 0 : i32
    %c0_i32_0 = arith.constant 0 : i32
    %c0_i32_1 = arith.constant 0 : i32
    return %c0_i32, %c0_i32_0 : i32, i32
  }
  func.func @transform_7(%arg0: i32) -> (i32, i32) {
    %c0_i32 = arith.constant 0 : i32
    %c0_i32_0 = arith.constant 0 : i32
    %c0_i32_1 = arith.constant 0 : i32
    return %c0_i32, %c0_i32_0 : i32, i32
  }
  func.func @transform_8(%arg0: i32) -> (i32, i32) {
    %c0_i32 = arith.constant 0 : i32
    %c0_i32_0 = arith.constant 0 : i32
    %c0_i32_1 = arith.constant 0 : i32
    return %c0_i32, %c0_i32_0 : i32, i32
  }
  func.func @transform_9(%arg0: i32) -> (i32, i32) {
    %c0_i32 = arith.constant 0 : i32
    %c0_i32_0 = arith.constant 0 : i32
    %c0_i32_1 = arith.constant 0 : i32
    return %c0_i32, %c0_i32_0 : i32, i32
  }
  func.func @transform_10(%arg0: i32) -> (i32, i32) {
    %c0_i32 = arith.constant 0 : i32
    %c0_i32_0 = arith.constant 0 : i32
    %c0_i32_1 = arith.constant 0 : i32
    return %c0_i32, %c0_i32_0 : i32, i32
  }
  func.func @transform_11(%arg0: i32) -> (i32, i32) {
    %c0_i32 = arith.constant 0 : i32
    %c0_i32_0 = arith.constant 0 : i32
    %c0_i32_1 = arith.constant 0 : i32
    return %c0_i32, %c0_i32_0 : i32, i32
  }
  func.func @transform_12(%arg0: i32) -> i32 {
    %c0_i32 = arith.constant 0 : i32
    %c0_i32_0 = arith.constant 0 : i32
    return %c0_i32 : i32
  }
  func.func @transform_13(%arg0: i32) -> (i32, i32) {
    %c0_i32 = arith.constant 0 : i32
    %c0_i32_0 = arith.constant 0 : i32
    %c0_i32_1 = arith.constant 0 : i32
    return %c0_i32, %c0_i32_0 : i32, i32
  }
  func.func @transform_14(%arg0: i32) -> (i32, i32) {
    %c0_i32 = arith.constant 0 : i32
    %c0_i32_0 = arith.constant 0 : i32
    %c0_i32_1 = arith.constant 0 : i32
    return %c0_i32, %c0_i32_0 : i32, i32
  }
  func.func @transform_15(%arg0: i32) -> (i32, i32) {
    %c0_i32 = arith.constant 0 : i32
    %c0_i32_0 = arith.constant 0 : i32
    %c0_i32_1 = arith.constant 0 : i32
    return %c0_i32, %c0_i32_0 : i32, i32
  }
  func.func @transform_16(%arg0: i32) -> (i32, i32) {
    %c0_i32 = arith.constant 0 : i32
    %c0_i32_0 = arith.constant 0 : i32
    %c0_i32_1 = arith.constant 0 : i32
    return %c0_i32, %c0_i32_0 : i32, i32
  }
  func.func @transform_17(%arg0: i32) -> (i32, i32) {
    %c0_i32 = arith.constant 0 : i32
    %c0_i32_0 = arith.constant 0 : i32
    %c0_i32_1 = arith.constant 0 : i32
    return %c0_i32, %c0_i32_0 : i32, i32
  }
  func.func @transform_18(%arg0: i32) -> (i32, i32) {
    %c0_i32 = arith.constant 0 : i32
    %c0_i32_0 = arith.constant 0 : i32
    %c0_i32_1 = arith.constant 0 : i32
    return %c0_i32, %c0_i32_0 : i32, i32
  }
  func.func @transform_19(%arg0: i32) -> (i32, i32) {
    %c0_i32 = arith.constant 0 : i32
    %c0_i32_0 = arith.constant 0 : i32
    %c0_i32_1 = arith.constant 0 : i32
    return %c0_i32, %c0_i32_0 : i32, i32
  }
  func.func @transform_20(%arg0: i32) -> (i32, i32) {
    %c0_i32 = arith.constant 0 : i32
    %c0_i32_0 = arith.constant 0 : i32
    %c0_i32_1 = arith.constant 0 : i32
    return %c0_i32, %c0_i32_0 : i32, i32
  }
  func.func @transform_21(%arg0: i32) -> (i32, i32) {
    %c0_i32 = arith.constant 0 : i32
    %c0_i32_0 = arith.constant 0 : i32
    %c0_i32_1 = arith.constant 0 : i32
    return %c0_i32, %c0_i32_0 : i32, i32
  }
  func.func @transform_22(%arg0: i32) -> (i32, i32) {
    %c0_i32 = arith.constant 0 : i32
    %c0_i32_0 = arith.constant 0 : i32
    %c0_i32_1 = arith.constant 0 : i32
    return %c0_i32, %c0_i32_0 : i32, i32
  }
  func.func @transform_23(%arg0: i32) -> (i32, i32) {
    %c0_i32 = arith.constant 0 : i32
    %c0_i32_0 = arith.constant 0 : i32
    return %arg0, %c0_i32 : i32, i32
  }
}

</mosaic_0001>

<llo_original>
// kernel: efficientnet_ifof_forward.1
$region0: #{efficientnet_ifof_forward.1}
  #allocation0 [shape = 'u32[]', space=smem, size = 0x4, offset = 0x4, fixed_abs, tag = 'smem constant byte address 0x4 - core index']
  #allocation1 [shape = 'u32[144,128]{1,0:T(1,128)}', space=vmem, size = 0x12000, scoped, tag = 'internal scratch']
  %s0 = inlined_call_operand.vmem [shape: f32[8,3], index: 0, kind: input, shape index: {}]
  %s1 = inlined_call_operand.vmem [shape: bf16[8,768], index: 1, kind: input, shape index: {}]
  %s2 = inlined_call_operand.vmem [shape: f32[3,1280], index: 2, kind: input, shape index: {}]
  %s3 = inlined_call_operand.vmem [shape: f32[1,1280], index: 3, kind: input, shape index: {}]
  %s4 = inlined_call_operand.hbm [shape: bf16[1280,256], index: 4, kind: input, shape index: {}]
  %s5 = inlined_call_operand.vmem [shape: f32[1,256], index: 5, kind: input, shape index: {}]
  %s6 = inlined_call_operand.hbm [shape: bf16[768,256], index: 6, kind: input, shape index: {}]
  %s7 = inlined_call_operand.vmem [shape: f32[1,256], index: 7, kind: input, shape index: {}]
  %s8 = inlined_call_operand.vmem [shape: f32[1,256], index: 8, kind: input, shape index: {}]
  %s9 = inlined_call_operand.vmem [shape: f32[1,256], index: 9, kind: input, shape index: {}]
  %s10 = inlined_call_operand.vmem [shape: f32[1,256], index: 10, kind: input, shape index: {}]
  %s11 = inlined_call_operand.vmem [shape: f32[1,256], index: 11, kind: input, shape index: {}]
  %s12 = inlined_call_operand.vmem [shape: f32[2], index: 12, kind: input, shape index: {}]
  %s13 = inlined_call_operand.hbm [shape: bf16[256,256], index: 13, kind: input, shape index: {}]
  %s14 = inlined_call_operand.hbm [shape: f32[1,256], index: 14, kind: input, shape index: {}]
  %s15 = inlined_call_operand.hbm [shape: f32[1,256], index: 15, kind: input, shape index: {}]
  %s16 = inlined_call_operand.hbm [shape: f32[1,256], index: 16, kind: input, shape index: {}]
  %s17 = inlined_call_operand.vmem [shape: bf16[256,128], index: 17, kind: input, shape index: {}]
  %s18 = inlined_call_operand.hbm [shape: f32[1,128], index: 18, kind: input, shape index: {}]
  %s19 = inlined_call_operand.hbm [shape: f32[1,128], index: 19, kind: input, shape index: {}]
  %s20 = inlined_call_operand.hbm [shape: f32[1,128], index: 20, kind: input, shape index: {}]
  %s21 = inlined_call_operand.hbm [shape: bf16[128,128], index: 21, kind: input, shape index: {}]
  %s22 = inlined_call_operand.hbm [shape: f32[1,128], index: 22, kind: input, shape index: {}]
  %s23 = inlined_call_operand.vmem [shape: f32[8,128], index: 23, kind: output, shape index: {}]
  %s24 = sld [smem:[#allocation0]]
  $region150: #{efficientnet_ifof_forward.1} parent=0
    _
  %s26 = ssub.s32 1, %s24
  %s27 = scalar_select 0, %s26, %s24
  $region1: #{efficientnet_ifof_forward.1} parent=0
    #allocation2 [shape = 'u8[655360]{0}', space=vmem, size = 0xa0000, scoped, tag = 'input window, operand 4, single buffered']
    #allocation3 [shape = 's32[1]{0}', space=sflag, size = 0x4, scoped, tag = 'scoped memory for efficientnet_ifof_forward.1']
    #allocation4 [shape = 's32[1]{0}', space=sflag, size = 0x4, scoped, tag = 'scoped memory for efficientnet_ifof_forward.1']
    #allocation5 [shape = 'u8[393216]{0}', space=vmem, size = 0x60000, scoped, tag = 'input window, operand 6, single buffered']
    #allocation6 [shape = 's32[1]{0}', space=sflag, size = 0x4, scoped, tag = 'scoped memory for efficientnet_ifof_forward.1']
    #allocation7 [shape = 'u8[512]{0}', space=smem, size = 0x200, scoped, tag = 'input window, operand 12, single buffered']
    #allocation8 [shape = 'u8[131072]{0}', space=vmem, size = 0x20000, scoped, tag = 'input window, operand 13, single buffered']
    #allocation9 [shape = 'u8[1024]{0}', space=vmem, size = 0x400, scoped, tag = 'input window, operand 14, single buffered']
    #allocation10 [shape = 's32[1]{0}', space=sflag, size = 0x4, scoped, tag = 'scoped memory for efficientnet_ifof_forward.1']
    #allocation11 [shape = 'u8[1024]{0}', space=vmem, size = 0x400, scoped, tag = 'input window, operand 15, single buffered']
    #allocation12 [shape = 'u8[1024]{0}', space=vmem, size = 0x400, scoped, tag = 'input window, operand 16, single buffered']
    #allocation13 [shape = 's32[1]{0}', space=sflag, size = 0x4, scoped, tag = 'scoped memory for efficientnet_ifof_forward.1']
    #allocation14 [shape = 'u8[512]{0}', space=vmem, size = 0x400, scoped, tag = 'input window, operand 18, single buffered']
    #allocation15 [shape = 'u8[512]{0}', space=vmem, size = 0x400, scoped, tag = 'input window, operand 19, single buffered']
    #allocation16 [shape = 's32[1]{0}', space=sflag, size = 0x4, scoped, tag = 'scoped memory for efficientnet_ifof_forward.1']
    #allocation17 [shape = 'u8[512]{0}', space=vmem, size = 0x400, scoped, tag = 'input window, operand 20, single buffered']
    #allocation18 [shape = 'u8[32768]{0}', space=vmem, size = 0x8000, scoped, tag = 'input window, operand 21, single buffered']
    #allocation19 [shape = 's32[1]{0}', space=sflag, size = 0x4, scoped, tag = 'scoped memory for efficientnet_ifof_forward.1']
    #allocation20 [shape = 'u8[512]{0}', space=vmem, size = 0x400, scoped, tag = 'input window, operand 22, single buffered']
    %28 = vsyncpa [#allocation3], 0
    %29 = vsyncpa [#allocation6], 0
    %30 = vsyncpa [#allocation4], 0
    %31 = vsyncpa [#allocation10], 0
    %32 = vsyncpa [#allocation13], 0
    %33 = vsyncpa [#allocation16], 0
    %34 = vsyncpa [#allocation19], 0
    // Predicated region
    $region2: #{efficientnet_ifof_forward.1} parent=1 // pred_check
      _
    $region3: #{efficientnet_ifof_forward.1} parent=1 // pred_check_branch
      %36 = sbr.rel (0) target = $region5
    $region4: #{efficientnet_ifof_forward.1} parent=1 // pred_region
      _
    $region5: #{efficientnet_ifof_forward.1} parent=1 // pred_fallthru
      _
    // Predicated region
    $region6: #{efficientnet_ifof_forward.1} parent=1 // pred_check
      _
    $region7: #{efficientnet_ifof_forward.1} parent=1 // pred_check_branch
      %38 = sbr.rel (0) target = $region9
    $region8: #{efficientnet_ifof_forward.1} parent=1 // pred_region
      _
    $region9: #{efficientnet_ifof_forward.1} parent=1 // pred_fallthru
      _
    // Predicated region
    $region10: #{efficientnet_ifof_forward.1} parent=1 // pred_check
      _
    $region11: #{efficientnet_ifof_forward.1} parent=1 // pred_check_branch
      %40 = sbr.rel (0) target = $region13
    $region12: #{efficientnet_ifof_forward.1} parent=1 // pred_region
      _
    $region13: #{efficientnet_ifof_forward.1} parent=1 // pred_fallthru
      _
    // Predicated region
    $region14: #{efficientnet_ifof_forward.1} parent=1 // pred_check
      _
    $region15: #{efficientnet_ifof_forward.1} parent=1 // pred_check_branch
      %42 = sbr.rel (0) target = $region17
    $region16: #{efficientnet_ifof_forward.1} parent=1 // pred_region
      _
    $region17: #{efficientnet_ifof_forward.1} parent=1 // pred_fallthru
      _
    // Predicated region
    $region18: #{efficientnet_ifof_forward.1} parent=1 // pred_check
      _
    $region19: #{efficientnet_ifof_forward.1} parent=1 // pred_check_branch
      %44 = sbr.rel (0) target = $region21
    $region20: #{efficientnet_ifof_forward.1} parent=1 // pred_region
      %s46 = ssub.s32 20480, 20480
      %47 = vsyncadd [#allocation3], %s46
      %s48 = sshll.u32 [#allocation2], 4
      %s49 = int_to_ptr.vmem [resolvable:$true] %s48
      %54 = dma.hbm_to_vmem [thread:$0]  %s4, 20480, %s49, [#allocation3], 128, 128, 8
    $region21: #{efficientnet_ifof_forward.1} parent=1 // pred_fallthru
      _
    // Predicated region
    $region22: #{efficientnet_ifof_forward.1} parent=1 // pred_check
      _
    $region23: #{efficientnet_ifof_forward.1} parent=1 // pred_check_branch
      %56 = sbr.rel (0) target = $region25
    $region24: #{efficientnet_ifof_forward.1} parent=1 // pred_region
      _
    $region25: #{efficientnet_ifof_forward.1} parent=1 // pred_fallthru
      _
    // Predicated region
    $region26: #{efficientnet_ifof_forward.1} parent=1 // pred_check
      _
    $region27: #{efficientnet_ifof_forward.1} parent=1 // pred_check_branch
      %58 = sbr.rel (0) target = $region29
    $region28: #{efficientnet_ifof_forward.1} parent=1 // pred_region
      %s60 = ssub.s32 12288, 12288
      %61 = vsyncadd [#allocation6], %s60
      %s62 = sshll.u32 [#allocation5], 4
      %s63 = int_to_ptr.vmem [resolvable:$true] %s62
      %68 = dma.hbm_to_vmem [thread:$0]  %s6, 12288, %s63, [#allocation6], 128, 128, 8
    $region29: #{efficientnet_ifof_forward.1} parent=1 // pred_fallthru
      _
    // Predicated region
    $region30: #{efficientnet_ifof_forward.1} parent=1 // pred_check
      _
    $region31: #{efficientnet_ifof_forward.1} parent=1 // pred_check_branch
      %70 = sbr.rel (0) target = $region33
    $region32: #{efficientnet_ifof_forward.1} parent=1 // pred_region
      _
    $region33: #{efficientnet_ifof_forward.1} parent=1 // pred_fallthru
      _
    // Predicated region
    $region34: #{efficientnet_ifof_forward.1} parent=1 // pred_check
      _
    $region35: #{efficientnet_ifof_forward.1} parent=1 // pred_check_branch
      %72 = sbr.rel (0) target = $region37
    $region36: #{efficientnet_ifof_forward.1} parent=1 // pred_region
      _
    $region37: #{efficientnet_ifof_forward.1} parent=1 // pred_fallthru
      _
    // Predicated region
    $region38: #{efficientnet_ifof_forward.1} parent=1 // pred_check
      _
    $region39: #{efficientnet_ifof_forward.1} parent=1 // pred_check_branch
      %74 = sbr.rel (0) target = $region41
    $region40: #{efficientnet_ifof_forward.1} parent=1 // pred_region
      _
    $region41: #{efficientnet_ifof_forward.1} parent=1 // pred_fallthru
      _
    // Predicated region
    $region42: #{efficientnet_ifof_forward.1} parent=1 // pred_check
      _
    $region43: #{efficientnet_ifof_forward.1} parent=1 // pred_check_branch
      %76 = sbr.rel (0) target = $region45
    $region44: #{efficientnet_ifof_forward.1} parent=1 // pred_region
      _
    $region45: #{efficientnet_ifof_forward.1} parent=1 // pred_fallthru
      _
    // Predicated region
    $region46: #{efficientnet_ifof_forward.1} parent=1 // pred_check
      _
    $region47: #{efficientnet_ifof_forward.1} parent=1 // pred_check_branch
      %78 = sbr.rel (0) target = $region49
    $region48: #{efficientnet_ifof_forward.1} parent=1 // pred_region
      _
    $region49: #{efficientnet_ifof_forward.1} parent=1 // pred_fallthru
      _
    // Predicated region
    $region50: #{efficientnet_ifof_forward.1} parent=1 // pred_check
      _
    $region51: #{efficientnet_ifof_forward.1} parent=1 // pred_check_branch
      %80 = sbr.rel (0) target = $region53
    $region52: #{efficientnet_ifof_forward.1} parent=1 // pred_region
      %s82 = ssub.s32 16, 16
      %83 = vsyncadd [#allocation4], %s82
      %s85 = sshll.u32 %s12, 4
      %s86 = int_to_ptr.vmem [resolvable:$true] %s85
      %88 = dma.vmem_to_smem %s86, 16, [#allocation7], [#allocation4]
    $region53: #{efficientnet_ifof_forward.1} parent=1 // pred_fallthru
      _
    // Predicated region
    $region54: #{efficientnet_ifof_forward.1} parent=1 // pred_check
      _
    $region55: #{efficientnet_ifof_forward.1} parent=1 // pred_check_branch
      %90 = sbr.rel (0) target = $region57
    $region56: #{efficientnet_ifof_forward.1} parent=1 // pred_region
      %s92 = ssub.s32 4096, 4096
      %93 = vsyncadd [#allocation6], %s92
      %s94 = sshll.u32 [#allocation8], 4
      %s95 = int_to_ptr.vmem [resolvable:$true] %s94
      %100 = dma.hbm_to_vmem [thread:$0]  %s13, 4096, %s95, [#allocation6], 128, 128, 8
    $region57: #{efficientnet_ifof_forward.1} parent=1 // pred_fallthru
      _
    // Predicated region
    $region58: #{efficientnet_ifof_forward.1} parent=1 // pred_check
      _
    $region59: #{efficientnet_ifof_forward.1} parent=1 // pred_check_branch
      %102 = sbr.rel (0) target = $region61
    $region60: #{efficientnet_ifof_forward.1} parent=1 // pred_region
      %s104 = ssub.s32 32, 32
      %105 = vsyncadd [#allocation10], %s104
      %s107 = sshll.u32 [#allocation9], 4
      %s108 = int_to_ptr.vmem [resolvable:$true] %s107
      %110 = dma.hbm_to_vmem [thread:$0]  %s14, 32, %s108, [#allocation10]
    $region61: #{efficientnet_ifof_forward.1} parent=1 // pred_fallthru
      _
    // Predicated region
    $region62: #{efficientnet_ifof_forward.1} parent=1 // pred_check
      _
    $region63: #{efficientnet_ifof_forward.1} parent=1 // pred_check_branch
      %112 = sbr.rel (0) target = $region65
    $region64: #{efficientnet_ifof_forward.1} parent=1 // pred_region
      %s114 = ssub.s32 32, 32
      %115 = vsyncadd [#allocation10], %s114
      %s117 = sshll.u32 [#allocation11], 4
      %s118 = int_to_ptr.vmem [resolvable:$true] %s117
      %120 = dma.hbm_to_vmem [thread:$0]  %s15, 32, %s118, [#allocation10]
    $region65: #{efficientnet_ifof_forward.1} parent=1 // pred_fallthru
      _
    // Predicated region
    $region66: #{efficientnet_ifof_forward.1} parent=1 // pred_check
      _
    $region67: #{efficientnet_ifof_forward.1} parent=1 // pred_check_branch
      %122 = sbr.rel (0) target = $region69
    $region68: #{efficientnet_ifof_forward.1} parent=1 // pred_region
      %s124 = ssub.s32 32, 32
      %125 = vsyncadd [#allocation13], %s124
      %s127 = sshll.u32 [#allocation12], 4
      %s128 = int_to_ptr.vmem [resolvable:$true] %s127
      %130 = dma.hbm_to_vmem [thread:$0]  %s16, 32, %s128, [#allocation13]
    $region69: #{efficientnet_ifof_forward.1} parent=1 // pred_fallthru
      _
    // Predicated region
    $region70: #{efficientnet_ifof_forward.1} parent=1 // pred_check
      _
    $region71: #{efficientnet_ifof_forward.1} parent=1 // pred_check_branch
      %132 = sbr.rel (0) target = $region73
    $region72: #{efficientnet_ifof_forward.1} parent=1 // pred_region
      _
    $region73: #{efficientnet_ifof_forward.1} parent=1 // pred_fallthru
      _
    // Predicated region
    $region74: #{efficientnet_ifof_forward.1} parent=1 // pred_check
      _
    $region75: #{efficientnet_ifof_forward.1} parent=1 // pred_check_branch
      %134 = sbr.rel (0) target = $region77
    $region76: #{efficientnet_ifof_forward.1} parent=1 // pred_region
      %s136 = ssub.s32 16, 16
      %137 = vsyncadd [#allocation13], %s136
      %s139 = sshll.u32 [#allocation14], 4
      %s140 = int_to_ptr.vmem [resolvable:$true] %s139
      %142 = dma.hbm_to_vmem [thread:$0]  %s18, 16, %s140, [#allocation13]
    $region77: #{efficientnet_ifof_forward.1} parent=1 // pred_fallthru
      _
    // Predicated region
    $region78: #{efficientnet_ifof_forward.1} parent=1 // pred_check
      _
    $region79: #{efficientnet_ifof_forward.1} parent=1 // pred_check_branch
      %144 = sbr.rel (0) target = $region81
    $region80: #{efficientnet_ifof_forward.1} parent=1 // pred_region
      %s146 = ssub.s32 16, 16
      %147 = vsyncadd [#allocation16], %s146
      %s149 = sshll.u32 [#allocation15], 4
      %s150 = int_to_ptr.vmem [resolvable:$true] %s149
      %152 = dma.hbm_to_vmem [thread:$0]  %s19, 16, %s150, [#allocation16]
    $region81: #{efficientnet_ifof_forward.1} parent=1 // pred_fallthru
      _
    // Predicated region
    $region82: #{efficientnet_ifof_forward.1} parent=1 // pred_check
      _
    $region83: #{efficientnet_ifof_forward.1} parent=1 // pred_check_branch
      %154 = sbr.rel (0) target = $region85
    $region84: #{efficientnet_ifof_forward.1} parent=1 // pred_region
      %s156 = ssub.s32 16, 16
      %157 = vsyncadd [#allocation16], %s156
      %s159 = sshll.u32 [#allocation17], 4
      %s160 = int_to_ptr.vmem [resolvable:$true] %s159
      %162 = dma.hbm_to_vmem [thread:$0]  %s20, 16, %s160, [#allocation16]
    $region85: #{efficientnet_ifof_forward.1} parent=1 // pred_fallthru
      _
    // Predicated region
    $region86: #{efficientnet_ifof_forward.1} parent=1 // pred_check
      _
    $region87: #{efficientnet_ifof_forward.1} parent=1 // pred_check_branch
      %164 = sbr.rel (0) target = $region89
    $region88: #{efficientnet_ifof_forward.1} parent=1 // pred_region
      %s166 = ssub.s32 1024, 1024
      %167 = vsyncadd [#allocation19], %s166
      %s168 = sshll.u32 [#allocation18], 4
      %s169 = int_to_ptr.vmem [resolvable:$true] %s168
      %174 = dma.hbm_to_vmem [thread:$0]  %s21, 1024, %s169, [#allocation19], 64, 64, 4
    $region89: #{efficientnet_ifof_forward.1} parent=1 // pred_fallthru
      _
    // Predicated region
    $region90: #{efficientnet_ifof_forward.1} parent=1 // pred_check
      _
    $region91: #{efficientnet_ifof_forward.1} parent=1 // pred_check_branch
      %176 = sbr.rel (0) target = $region93
    $region92: #{efficientnet_ifof_forward.1} parent=1 // pred_region
      %s178 = ssub.s32 16, 16
      %179 = vsyncadd [#allocation19], %s178
      %s181 = sshll.u32 [#allocation20], 4
      %s182 = int_to_ptr.vmem [resolvable:$true] %s181
      %184 = dma.hbm_to_vmem [thread:$0]  %s22, 16, %s182, [#allocation19]
    $region93: #{efficientnet_ifof_forward.1} parent=1 // pred_fallthru
      _
    // Predicated region
    $region94: #{efficientnet_ifof_forward.1} parent=1 // pred_check
      _
    $region95: #{efficientnet_ifof_forward.1} parent=1 // pred_check_branch
      %186 = sbr.rel (0) target = $region97
    $region96: #{efficientnet_ifof_forward.1} parent=1 // pred_region
      %187 = dma.done [#allocation3], 20480
    $region97: #{efficientnet_ifof_forward.1} parent=1 // pred_fallthru
      _
    // Predicated region
    $region98: #{efficientnet_ifof_forward.1} parent=1 // pred_check
      _
    $region99: #{efficientnet_ifof_forward.1} parent=1 // pred_check_branch
      %189 = sbr.rel (0) target = $region101
    $region100: #{efficientnet_ifof_forward.1} parent=1 // pred_region
      %190 = dma.done [#allocation6], 12288
    $region101: #{efficientnet_ifof_forward.1} parent=1 // pred_fallthru
      _
    // Predicated region
    $region102: #{efficientnet_ifof_forward.1} parent=1 // pred_check
      _
    $region103: #{efficientnet_ifof_forward.1} parent=1 // pred_check_branch
      %192 = sbr.rel (0) target = $region105
    $region104: #{efficientnet_ifof_forward.1} parent=1 // pred_region
      %193 = dma.done [#allocation4], 16
    $region105: #{efficientnet_ifof_forward.1} parent=1 // pred_fallthru
      _
    // Predicated region
    $region106: #{efficientnet_ifof_forward.1} parent=1 // pred_check
      _
    $region107: #{efficientnet_ifof_forward.1} parent=1 // pred_check_branch
      %195 = sbr.rel (0) target = $region109
    $region108: #{efficientnet_ifof_forward.1} parent=1 // pred_region
      %196 = dma.done [#allocation6], 4096
    $region109: #{efficientnet_ifof_forward.1} parent=1 // pred_fallthru
      _
    // Predicated region
    $region110: #{efficientnet_ifof_forward.1} parent=1 // pred_check
      _
    $region111: #{efficientnet_ifof_forward.1} parent=1 // pred_check_branch
      %198 = sbr.rel (0) target = $region113
    $region112: #{efficientnet_ifof_forward.1} parent=1 // pred_region
      %199 = dma.done [#allocation10], 32
    $region113: #{efficientnet_ifof_forward.1} parent=1 // pred_fallthru
      _
    // Predicated region
    $region114: #{efficientnet_ifof_forward.1} parent=1 // pred_check
      _
    $region115: #{efficientnet_ifof_forward.1} parent=1 // pred_check_branch
      %201 = sbr.rel (0) target = $region117
    $region116: #{efficientnet_ifof_forward.1} parent=1 // pred_region
      %202 = dma.done [#allocation10], 32
    $region117: #{efficientnet_ifof_forward.1} parent=1 // pred_fallthru
      _
    // Predicated region
    $region118: #{efficientnet_ifof_forward.1} parent=1 // pred_check
      _
    $region119: #{efficientnet_ifof_forward.1} parent=1 // pred_check_branch
      %204 = sbr.rel (0) target = $region121
    $region120: #{efficientnet_ifof_forward.1} parent=1 // pred_region
      %205 = dma.done [#allocation13], 32
    $region121: #{efficientnet_ifof_forward.1} parent=1 // pred_fallthru
      _
    // Predicated region
    $region122: #{efficientnet_ifof_forward.1} parent=1 // pred_check
      _
    $region123: #{efficientnet_ifof_forward.1} parent=1 // pred_check_branch
      %207 = sbr.rel (0) target = $region125
    $region124: #{efficientnet_ifof_forward.1} parent=1 // pred_region
      %208 = dma.done [#allocation13], 16
    $region125: #{efficientnet_ifof_forward.1} parent=1 // pred_fallthru
      _
    // Predicated region
    $region126: #{efficientnet_ifof_forward.1} parent=1 // pred_check
      _
    $region127: #{efficientnet_ifof_forward.1} parent=1 // pred_check_branch
      %210 = sbr.rel (0) target = $region129
    $region128: #{efficientnet_ifof_forward.1} parent=1 // pred_region
      %211 = dma.done [#allocation16], 16
    $region129: #{efficientnet_ifof_forward.1} parent=1 // pred_fallthru
      _
    // Predicated region
    $region130: #{efficientnet_ifof_forward.1} parent=1 // pred_check
      _
    $region131: #{efficientnet_ifof_forward.1} parent=1 // pred_check_branch
      %213 = sbr.rel (0) target = $region133
    $region132: #{efficientnet_ifof_forward.1} parent=1 // pred_region
      %214 = dma.done [#allocation16], 16
    $region133: #{efficientnet_ifof_forward.1} parent=1 // pred_fallthru
      _
    // Predicated region
    $region134: #{efficientnet_ifof_forward.1} parent=1 // pred_check
      _
    $region135: #{efficientnet_ifof_forward.1} parent=1 // pred_check_branch
      %216 = sbr.rel (0) target = $region137
    $region136: #{efficientnet_ifof_forward.1} parent=1 // pred_region
      %217 = dma.done [#allocation19], 1024
    $region137: #{efficientnet_ifof_forward.1} parent=1 // pred_fallthru
      _
    // Predicated region
    $region138: #{efficientnet_ifof_forward.1} parent=1 // pred_check
      _
    $region139: #{efficientnet_ifof_forward.1} parent=1 // pred_check_branch
      %219 = sbr.rel (0) target = $region141
    $region140: #{efficientnet_ifof_forward.1} parent=1 // pred_region
      %220 = dma.done [#allocation19], 16
    $region141: #{efficientnet_ifof_forward.1} parent=1 // pred_fallthru
      _
    %221 = sfence
    %v223 = vld [vmem:[%s0] sm:$0xff]
    %v224 = vld [vmem:[%s2] sm:$0x77]
    %v225 = vld [vmem:[%s2 + $0x8] sm:$0x77]
    %v226 = vld [vmem:[%s2 + $0x10] sm:$0x77]
    %v227 = vld [vmem:[%s2 + $0x18] sm:$0x77]
    %v228 = vld [vmem:[%s2 + $0x20] sm:$0x77]
    %v229 = vld [vmem:[%s3] sm:$0xff]
    %v230 = vld [vmem:[%s3 + $0x8] sm:$0x3]
    %232 = vset.pattern.permute.xlu0 0
    %233 = vperm.xlu0 %232, %v223
    %v234 = vpop.permute.xlu0 %233
    %v241 = vlaneseq
    %v242 = vshrl.u32 %v241, 7
    %v243 = vsub.s32 0, %v242
    %v244 = vrot.slane %v224, %v243
    %v245 = vlaneseq
    %v246 = vshrl.u32 %v245, 7
    %v247 = vsub.s32 4, %v246
    %v248 = vrot.slane %v224, %v247
    %v249 = vlaneseq
    %v250 = vshrl.u32 %v249, 7
    %v251 = vsub.s32 0, %v250
    %v252 = vrot.slane %v225, %v251
    %v253 = vlaneseq
    %v254 = vshrl.u32 %v253, 7
    %v255 = vsub.s32 4, %v254
    %v256 = vrot.slane %v225, %v255
    %v257 = vlaneseq
    %v258 = vshrl.u32 %v257, 7
    %v259 = vsub.s32 0, %v258
    %v260 = vrot.slane %v226, %v259
    %v261 = vlaneseq
    %v262 = vshrl.u32 %v261, 7
    %v263 = vsub.s32 4, %v262
    %v264 = vrot.slane %v226, %v263
    %v265 = vlaneseq
    %v266 = vshrl.u32 %v265, 7
    %v267 = vsub.s32 0, %v266
    %v268 = vrot.slane %v227, %v267
    %v269 = vlaneseq
    %v270 = vshrl.u32 %v269, 7
    %v271 = vsub.s32 4, %v270
    %v272 = vrot.slane %v227, %v271
    %v273 = vlaneseq
    %v274 = vshrl.u32 %v273, 7
    %v275 = vsub.s32 0, %v274
    %v276 = vrot.slane %v228, %v275
    %v277 = vlaneseq
    %v278 = vshrl.u32 %v277, 7
    %v279 = vsub.s32 4, %v278
    %v280 = vrot.slane %v228, %v279
    %v291 = vlaneseq
    %v292 = vshrl.u32 %v291, 7
    %v293 = vsub.s32 0, %v292
    %v294 = vrot.slane %v244, %v293
    %v295 = vlaneseq
    %v296 = vshrl.u32 %v295, 7
    %v297 = vsub.s32 0, %v296
    %v298 = vrot.slane %v248, %v297
    %v299 = vlaneseq
    %v300 = vshrl.u32 %v299, 7
    %v301 = vsub.s32 0, %v300
    %v302 = vrot.slane %v252, %v301
    %v303 = vlaneseq
    %v304 = vshrl.u32 %v303, 7
    %v305 = vsub.s32 0, %v304
    %v306 = vrot.slane %v256, %v305
    %v307 = vlaneseq
    %v308 = vshrl.u32 %v307, 7
    %v309 = vsub.s32 0, %v308
    %v310 = vrot.slane %v260, %v309
    %v311 = vlaneseq
    %v312 = vshrl.u32 %v311, 7
    %v313 = vsub.s32 0, %v312
    %v314 = vrot.slane %v264, %v313
    %v315 = vlaneseq
    %v316 = vshrl.u32 %v315, 7
    %v317 = vsub.s32 0, %v316
    %v318 = vrot.slane %v268, %v317
    %v319 = vlaneseq
    %v320 = vshrl.u32 %v319, 7
    %v321 = vsub.s32 0, %v320
    %v322 = vrot.slane %v272, %v321
    %v323 = vlaneseq
    %v324 = vshrl.u32 %v323, 7
    %v325 = vsub.s32 0, %v324
    %v326 = vrot.slane %v276, %v325
    %v327 = vlaneseq
    %v328 = vshrl.u32 %v327, 7
    %v329 = vsub.s32 0, %v328
    %v330 = vrot.slane %v280, %v329
    %v331 = vmul.f32 %v234, %v294
    %v332 = vmul.f32 %v234, %v298
    %v333 = vmul.f32 %v234, %v302
    %v334 = vmul.f32 %v234, %v306
    %v335 = vmul.f32 %v234, %v310
    %v336 = vmul.f32 %v234, %v314
    %v337 = vmul.f32 %v234, %v318
    %v338 = vmul.f32 %v234, %v322
    %v339 = vmul.f32 %v234, %v326
    %v340 = vmul.f32 %v234, %v330
    %v343 = vlaneseq
    %v344 = vshrl.u32 %v343, 7
    %v345 = vsub.s32 0, %v344
    %v346 = vrot.slane %v229, %v345
    %v347 = vlaneseq
    %v348 = vshrl.u32 %v347, 7
    %v349 = vsub.s32 1, %v348
    %v350 = vrot.slane %v229, %v349
    %v351 = vlaneseq
    %v352 = vshrl.u32 %v351, 7
    %v353 = vsub.s32 2, %v352
    %v354 = vrot.slane %v229, %v353
    %v355 = vlaneseq
    %v356 = vshrl.u32 %v355, 7
    %v357 = vsub.s32 3, %v356
    %v358 = vrot.slane %v229, %v357
    %v359 = vlaneseq
    %v360 = vshrl.u32 %v359, 7
    %v361 = vsub.s32 4, %v360
    %v362 = vrot.slane %v229, %v361
    %v363 = vlaneseq
    %v364 = vshrl.u32 %v363, 7
    %v365 = vsub.s32 5, %v364
    %v366 = vrot.slane %v229, %v365
    %v367 = vlaneseq
    %v368 = vshrl.u32 %v367, 7
    %v369 = vsub.s32 6, %v368
    %v370 = vrot.slane %v229, %v369
    %v371 = vlaneseq
    %v372 = vshrl.u32 %v371, 7
    %v373 = vsub.s32 7, %v372
    %v374 = vrot.slane %v229, %v373
    %v375 = vlaneseq
    %v376 = vshrl.u32 %v375, 7
    %v377 = vsub.s32 0, %v376
    %v378 = vrot.slane %v230, %v377
    %v379 = vlaneseq
    %v380 = vshrl.u32 %v379, 7
    %v381 = vsub.s32 1, %v380
    %v382 = vrot.slane %v230, %v381
    %v393 = vadd.f32 %v346, %v331
    %v394 = vadd.f32 %v350, %v332
    %v395 = vadd.f32 %v354, %v333
    %v396 = vadd.f32 %v358, %v334
    %v397 = vadd.f32 %v362, %v335
    %v398 = vadd.f32 %v366, %v336
    %v399 = vadd.f32 %v370, %v337
    %v400 = vadd.f32 %v374, %v338
    %v401 = vadd.f32 %v378, %v339
    %v402 = vadd.f32 %v382, %v340
    %403 = vset.pattern.permute.xlu0 1
    %404 = vperm.xlu0 %403, %v223
    %v405 = vpop.permute.xlu0 %404
    %v407 = vlaneseq
    %v408 = vshrl.u32 %v407, 7
    %v409 = vsub.s32 1, %v408
    %v410 = vrot.slane %v224, %v409
    %v411 = vlaneseq
    %v412 = vshrl.u32 %v411, 7
    %v413 = vsub.s32 5, %v412
    %v414 = vrot.slane %v224, %v413
    %v415 = vlaneseq
    %v416 = vshrl.u32 %v415, 7
    %v417 = vsub.s32 1, %v416
    %v418 = vrot.slane %v225, %v417
    %v419 = vlaneseq
    %v420 = vshrl.u32 %v419, 7
    %v421 = vsub.s32 5, %v420
    %v422 = vrot.slane %v225, %v421
    %v423 = vlaneseq
    %v424 = vshrl.u32 %v423, 7
    %v425 = vsub.s32 1, %v424
    %v426 = vrot.slane %v226, %v425
    %v427 = vlaneseq
    %v428 = vshrl.u32 %v427, 7
    %v429 = vsub.s32 5, %v428
    %v430 = vrot.slane %v226, %v429
    %v431 = vlaneseq
    %v432 = vshrl.u32 %v431, 7
    %v433 = vsub.s32 1, %v432
    %v434 = vrot.slane %v227, %v433
    %v435 = vlaneseq
    %v436 = vshrl.u32 %v435, 7
    %v437 = vsub.s32 5, %v436
    %v438 = vrot.slane %v227, %v437
    %v439 = vlaneseq
    %v440 = vshrl.u32 %v439, 7
    %v441 = vsub.s32 1, %v440
    %v442 = vrot.slane %v228, %v441
    %v443 = vlaneseq
    %v444 = vshrl.u32 %v443, 7
    %v445 = vsub.s32 5, %v444
    %v446 = vrot.slane %v228, %v445
    %v457 = vlaneseq
    %v458 = vshrl.u32 %v457, 7
    %v459 = vsub.s32 1, %v458
    %v460 = vrot.slane %v410, %v459
    %v461 = vlaneseq
    %v462 = vshrl.u32 %v461, 7
    %v463 = vsub.s32 1, %v462
    %v464 = vrot.slane %v414, %v463
    %v465 = vlaneseq
    %v466 = vshrl.u32 %v465, 7
    %v467 = vsub.s32 1, %v466
    %v468 = vrot.slane %v418, %v467
    %v469 = vlaneseq
    %v470 = vshrl.u32 %v469, 7
    %v471 = vsub.s32 1, %v470
    %v472 = vrot.slane %v422, %v471
    %v473 = vlaneseq
    %v474 = vshrl.u32 %v473, 7
    %v475 = vsub.s32 1, %v474
    %v476 = vrot.slane %v426, %v475
    %v477 = vlaneseq
    %v478 = vshrl.u32 %v477, 7
    %v479 = vsub.s32 1, %v478
    %v480 = vrot.slane %v430, %v479
    %v481 = vlaneseq
    %v482 = vshrl.u32 %v481, 7
    %v483 = vsub.s32 1, %v482
    %v484 = vrot.slane %v434, %v483
    %v485 = vlaneseq
    %v486 = vshrl.u32 %v485, 7
    %v487 = vsub.s32 1, %v486
    %v488 = vrot.slane %v438, %v487
    %v489 = vlaneseq
    %v490 = vshrl.u32 %v489, 7
    %v491 = vsub.s32 1, %v490
    %v492 = vrot.slane %v442, %v491
    %v493 = vlaneseq
    %v494 = vshrl.u32 %v493, 7
    %v495 = vsub.s32 1, %v494
    %v496 = vrot.slane %v446, %v495
    %v497 = vmul.f32 %v405, %v460
    %v498 = vmul.f32 %v405, %v464
    %v499 = vmul.f32 %v405, %v468
    %v500 = vmul.f32 %v405, %v472
    %v501 = vmul.f32 %v405, %v476
    %v502 = vmul.f32 %v405, %v480
    %v503 = vmul.f32 %v405, %v484
    %v504 = vmul.f32 %v405, %v488
    %v505 = vmul.f32 %v405, %v492
    %v506 = vmul.f32 %v405, %v496
    %v507 = vadd.f32 %v393, %v497
    %v508 = vadd.f32 %v394, %v498
    %v509 = vadd.f32 %v395, %v499
    %v510 = vadd.f32 %v396, %v500
    %v511 = vadd.f32 %v397, %v501
    %v512 = vadd.f32 %v398, %v502
    %v513 = vadd.f32 %v399, %v503
    %v514 = vadd.f32 %v400, %v504
    %v515 = vadd.f32 %v401, %v505
    %v516 = vadd.f32 %v402, %v506
    %517 = vset.pattern.permute.xlu0 2
    %518 = vperm.xlu0 %517, %v223
    %v519 = vpop.permute.xlu0 %518
    %v521 = vlaneseq
    %v522 = vshrl.u32 %v521, 7
    %v523 = vsub.s32 2, %v522
    %v524 = vrot.slane %v224, %v523
    %v525 = vlaneseq
    %v526 = vshrl.u32 %v525, 7
    %v527 = vsub.s32 6, %v526
    %v528 = vrot.slane %v224, %v527
    %v529 = vlaneseq
    %v530 = vshrl.u32 %v529, 7
    %v531 = vsub.s32 2, %v530
    %v532 = vrot.slane %v225, %v531
    %v533 = vlaneseq
    %v534 = vshrl.u32 %v533, 7
    %v535 = vsub.s32 6, %v534
    %v536 = vrot.slane %v225, %v535
    %v537 = vlaneseq
    %v538 = vshrl.u32 %v537, 7
    %v539 = vsub.s32 2, %v538
    %v540 = vrot.slane %v226, %v539
    %v541 = vlaneseq
    %v542 = vshrl.u32 %v541, 7
    %v543 = vsub.s32 6, %v542
    %v544 = vrot.slane %v226, %v543
    %v545 = vlaneseq
    %v546 = vshrl.u32 %v545, 7
    %v547 = vsub.s32 2, %v546
    %v548 = vrot.slane %v227, %v547
    %v549 = vlaneseq
    %v550 = vshrl.u32 %v549, 7
    %v551 = vsub.s32 6, %v550
    %v552 = vrot.slane %v227, %v551
    %v553 = vlaneseq
    %v554 = vshrl.u32 %v553, 7
    %v555 = vsub.s32 2, %v554
    %v556 = vrot.slane %v228, %v555
    %v557 = vlaneseq
    %v558 = vshrl.u32 %v557, 7
    %v559 = vsub.s32 6, %v558
    %v560 = vrot.slane %v228, %v559
    %v571 = vlaneseq
    %v572 = vshrl.u32 %v571, 7
    %v573 = vsub.s32 2, %v572
    %v574 = vrot.slane %v524, %v573
    %v575 = vlaneseq
    %v576 = vshrl.u32 %v575, 7
    %v577 = vsub.s32 2, %v576
    %v578 = vrot.slane %v528, %v577
    %v579 = vlaneseq
    %v580 = vshrl.u32 %v579, 7
    %v581 = vsub.s32 2, %v580
    %v582 = vrot.slane %v532, %v581
    %v583 = vlaneseq
    %v584 = vshrl.u32 %v583, 7
    %v585 = vsub.s32 2, %v584
    %v586 = vrot.slane %v536, %v585
    %v587 = vlaneseq
    %v588 = vshrl.u32 %v587, 7
    %v589 = vsub.s32 2, %v588
    %v590 = vrot.slane %v540, %v589
    %v591 = vlaneseq
    %v592 = vshrl.u32 %v591, 7
    %v593 = vsub.s32 2, %v592
    %v594 = vrot.slane %v544, %v593
    %v595 = vlaneseq
    %v596 = vshrl.u32 %v595, 7
    %v597 = vsub.s32 2, %v596
    %v598 = vrot.slane %v548, %v597
    %v599 = vlaneseq
    %v600 = vshrl.u32 %v599, 7
    %v601 = vsub.s32 2, %v600
    %v602 = vrot.slane %v552, %v601
    %v603 = vlaneseq
    %v604 = vshrl.u32 %v603, 7
    %v605 = vsub.s32 2, %v604
    %v606 = vrot.slane %v556, %v605
    %v607 = vlaneseq
    %v608 = vshrl.u32 %v607, 7
    %v609 = vsub.s32 2, %v608
    %v610 = vrot.slane %v560, %v609
    %v611 = vmul.f32 %v519, %v574
    %v612 = vmul.f32 %v519, %v578
    %v613 = vmul.f32 %v519, %v582
    %v614 = vmul.f32 %v519, %v586
    %v615 = vmul.f32 %v519, %v590
    %v616 = vmul.f32 %v519, %v594
    %v617 = vmul.f32 %v519, %v598
    %v618 = vmul.f32 %v519, %v602
    %v619 = vmul.f32 %v519, %v606
    %v620 = vmul.f32 %v519, %v610
    %v621 = vadd.f32 %v507, %v611
    %v622 = vadd.f32 %v508, %v612
    %v623 = vadd.f32 %v509, %v613
    %v624 = vadd.f32 %v510, %v614
    %v625 = vadd.f32 %v511, %v615
    %v626 = vadd.f32 %v512, %v616
    %v627 = vadd.f32 %v513, %v617
    %v628 = vadd.f32 %v514, %v618
    %v629 = vadd.f32 %v515, %v619
    %v630 = vadd.f32 %v516, %v620
    %v631 = vpack.c.bf16 %v621, %v621
    %v632 = vpack.c.bf16 %v622, %v622
    %v633 = vpack.c.bf16 %v623, %v623
    %v634 = vpack.c.bf16 %v624, %v624
    %v635 = vpack.c.bf16 %v625, %v625
    %v636 = vpack.c.bf16 %v626, %v626
    %v637 = vpack.c.bf16 %v627, %v627
    %v638 = vpack.c.bf16 %v628, %v628
    %v639 = vpack.c.bf16 %v629, %v629
    %v640 = vpack.c.bf16 %v630, %v630
    %v641 = vld [vmem:[#allocation2] sm:$0xff]
    %v642 = vld [vmem:[#allocation2 + $0x8] sm:$0xff]
    %v643 = vld [vmem:[#allocation2 + $0x10] sm:$0xff]
    %v644 = vld [vmem:[#allocation2 + $0x18] sm:$0xff]
    %v645 = vld [vmem:[#allocation2 + $0x20] sm:$0xff]
    %v646 = vld [vmem:[#allocation2 + $0x28] sm:$0xff]
    %v647 = vld [vmem:[#allocation2 + $0x30] sm:$0xff]
    %v648 = vld [vmem:[#allocation2 + $0x38] sm:$0xff]
    %v649 = vld [vmem:[#allocation2 + $0x40] sm:$0xff]
    %v650 = vld [vmem:[#allocation2 + $0x48] sm:$0xff]
    %v651 = vld [vmem:[#allocation2 + $0x50] sm:$0xff]
    %v652 = vld [vmem:[#allocation2 + $0x58] sm:$0xff]
    %v653 = vld [vmem:[#allocation2 + $0x60] sm:$0xff]
    %v654 = vld [vmem:[#allocation2 + $0x68] sm:$0xff]
    %v655 = vld [vmem:[#allocation2 + $0x70] sm:$0xff]
    %v656 = vld [vmem:[#allocation2 + $0x78] sm:$0xff]
    %v657 = vld [vmem:[#allocation2 + $0x80] sm:$0xff]
    %v658 = vld [vmem:[#allocation2 + $0x88] sm:$0xff]
    %v659 = vld [vmem:[#allocation2 + $0x90] sm:$0xff]
    %v660 = vld [vmem:[#allocation2 + $0x98] sm:$0xff]
    %v661 = vld [vmem:[#allocation2 + $0xa0] sm:$0xff]
    %v662 = vld [vmem:[#allocation2 + $0xa8] sm:$0xff]
    %v663 = vld [vmem:[#allocation2 + $0xb0] sm:$0xff]
    %v664 = vld [vmem:[#allocation2 + $0xb8] sm:$0xff]
    %v665 = vld [vmem:[#allocation2 + $0xc0] sm:$0xff]
    %v666 = vld [vmem:[#allocation2 + $0xc8] sm:$0xff]
    %v667 = vld [vmem:[#allocation2 + $0xd0] sm:$0xff]
    %v668 = vld [vmem:[#allocation2 + $0xd8] sm:$0xff]
    %v669 = vld [vmem:[#allocation2 + $0xe0] sm:$0xff]
    %v670 = vld [vmem:[#allocation2 + $0xe8] sm:$0xff]
    %v671 = vld [vmem:[#allocation2 + $0xf0] sm:$0xff]
    %v672 = vld [vmem:[#allocation2 + $0xf8] sm:$0xff]
    %v673 = vld [vmem:[#allocation2 + $0x100] sm:$0xff]
    %v674 = vld [vmem:[#allocation2 + $0x108] sm:$0xff]
    %v675 = vld [vmem:[#allocation2 + $0x110] sm:$0xff]
    %v676 = vld [vmem:[#allocation2 + $0x118] sm:$0xff]
    %v677 = vld [vmem:[#allocation2 + $0x120] sm:$0xff]
    %v678 = vld [vmem:[#allocation2 + $0x128] sm:$0xff]
    %v679 = vld [vmem:[#allocation2 + $0x130] sm:$0xff]
    %v680 = vld [vmem:[#allocation2 + $0x138] sm:$0xff]
    %v681 = vld [vmem:[#allocation2 + $0x140] sm:$0xff]
    %v682 = vld [vmem:[#allocation2 + $0x148] sm:$0xff]
    %v683 = vld [vmem:[#allocation2 + $0x150] sm:$0xff]
    %v684 = vld [vmem:[#allocation2 + $0x158] sm:$0xff]
    %v685 = vld [vmem:[#allocation2 + $0x160] sm:$0xff]
    %v686 = vld [vmem:[#allocation2 + $0x168] sm:$0xff]
    %v687 = vld [vmem:[#allocation2 + $0x170] sm:$0xff]
    %v688 = vld [vmem:[#allocation2 + $0x178] sm:$0xff]
    %v689 = vld [vmem:[#allocation2 + $0x180] sm:$0xff]
    %v690 = vld [vmem:[#allocation2 + $0x188] sm:$0xff]
    %v691 = vld [vmem:[#allocation2 + $0x190] sm:$0xff]
    %v692 = vld [vmem:[#allocation2 + $0x198] sm:$0xff]
    %v693 = vld [vmem:[#allocation2 + $0x1a0] sm:$0xff]
    %v694 = vld [vmem:[#allocation2 + $0x1a8] sm:$0xff]
    %v695 = vld [vmem:[#allocation2 + $0x1b0] sm:$0xff]
    %v696 = vld [vmem:[#allocation2 + $0x1b8] sm:$0xff]
    %v697 = vld [vmem:[#allocation2 + $0x1c0] sm:$0xff]
    %v698 = vld [vmem:[#allocation2 + $0x1c8] sm:$0xff]
    %v699 = vld [vmem:[#allocation2 + $0x1d0] sm:$0xff]
    %v700 = vld [vmem:[#allocation2 + $0x1d8] sm:$0xff]
    %v701 = vld [vmem:[#allocation2 + $0x1e0] sm:$0xff]
    %v702 = vld [vmem:[#allocation2 + $0x1e8] sm:$0xff]
    %v703 = vld [vmem:[#allocation2 + $0x1f0] sm:$0xff]
    %v704 = vld [vmem:[#allocation2 + $0x1f8] sm:$0xff]
    %v705 = vld [vmem:[#allocation2 + $0x200] sm:$0xff]
    %v706 = vld [vmem:[#allocation2 + $0x208] sm:$0xff]
    %v707 = vld [vmem:[#allocation2 + $0x210] sm:$0xff]
    %v708 = vld [vmem:[#allocation2 + $0x218] sm:$0xff]
    %v709 = vld [vmem:[#allocation2 + $0x220] sm:$0xff]
    %v710 = vld [vmem:[#allocation2 + $0x228] sm:$0xff]
    %v711 = vld [vmem:[#allocation2 + $0x230] sm:$0xff]
    %v712 = vld [vmem:[#allocation2 + $0x238] sm:$0xff]
    %v713 = vld [vmem:[#allocation2 + $0x240] sm:$0xff]
    %v714 = vld [vmem:[#allocation2 + $0x248] sm:$0xff]
    %v715 = vld [vmem:[#allocation2 + $0x250] sm:$0xff]
    %v716 = vld [vmem:[#allocation2 + $0x258] sm:$0xff]
    %v717 = vld [vmem:[#allocation2 + $0x260] sm:$0xff]
    %v718 = vld [vmem:[#allocation2 + $0x268] sm:$0xff]
    %v719 = vld [vmem:[#allocation2 + $0x270] sm:$0xff]
    %v720 = vld [vmem:[#allocation2 + $0x278] sm:$0xff]
    %v721 = vld [vmem:[#allocation2 + $0x280] sm:$0xff]
    %v722 = vld [vmem:[#allocation2 + $0x288] sm:$0xff]
    %v723 = vld [vmem:[#allocation2 + $0x290] sm:$0xff]
    %v724 = vld [vmem:[#allocation2 + $0x298] sm:$0xff]
    %v725 = vld [vmem:[#allocation2 + $0x2a0] sm:$0xff]
    %v726 = vld [vmem:[#allocation2 + $0x2a8] sm:$0xff]
    %v727 = vld [vmem:[#allocation2 + $0x2b0] sm:$0xff]
    %v728 = vld [vmem:[#allocation2 + $0x2b8] sm:$0xff]
    %v729 = vld [vmem:[#allocation2 + $0x2c0] sm:$0xff]
    %v730 = vld [vmem:[#allocation2 + $0x2c8] sm:$0xff]
    %v731 = vld [vmem:[#allocation2 + $0x2d0] sm:$0xff]
    %v732 = vld [vmem:[#allocation2 + $0x2d8] sm:$0xff]
    %v733 = vld [vmem:[#allocation2 + $0x2e0] sm:$0xff]
    %v734 = vld [vmem:[#allocation2 + $0x2e8] sm:$0xff]
    %v735 = vld [vmem:[#allocation2 + $0x2f0] sm:$0xff]
    %v736 = vld [vmem:[#allocation2 + $0x2f8] sm:$0xff]
    %v737 = vld [vmem:[#allocation2 + $0x300] sm:$0xff]
    %v738 = vld [vmem:[#allocation2 + $0x308] sm:$0xff]
    %v739 = vld [vmem:[#allocation2 + $0x310] sm:$0xff]
    %v740 = vld [vmem:[#allocation2 + $0x318] sm:$0xff]
    %v741 = vld [vmem:[#allocation2 + $0x320] sm:$0xff]
    %v742 = vld [vmem:[#allocation2 + $0x328] sm:$0xff]
    %v743 = vld [vmem:[#allocation2 + $0x330] sm:$0xff]
    %v744 = vld [vmem:[#allocation2 + $0x338] sm:$0xff]
    %v745 = vld [vmem:[#allocation2 + $0x340] sm:$0xff]
    %v746 = vld [vmem:[#allocation2 + $0x348] sm:$0xff]
    %v747 = vld [vmem:[#allocation2 + $0x350] sm:$0xff]
    %v748 = vld [vmem:[#allocation2 + $0x358] sm:$0xff]
    %v749 = vld [vmem:[#allocation2 + $0x360] sm:$0xff]
    %v750 = vld [vmem:[#allocation2 + $0x368] sm:$0xff]
    %v751 = vld [vmem:[#allocation2 + $0x370] sm:$0xff]
    %v752 = vld [vmem:[#allocation2 + $0x378] sm:$0xff]
    %v753 = vld [vmem:[#allocation2 + $0x380] sm:$0xff]
    %v754 = vld [vmem:[#allocation2 + $0x388] sm:$0xff]
    %v755 = vld [vmem:[#allocation2 + $0x390] sm:$0xff]
    %v756 = vld [vmem:[#allocation2 + $0x398] sm:$0xff]
    %v757 = vld [vmem:[#allocation2 + $0x3a0] sm:$0xff]
    %v758 = vld [vmem:[#allocation2 + $0x3a8] sm:$0xff]
    %v759 = vld [vmem:[#allocation2 + $0x3b0] sm:$0xff]
    %v760 = vld [vmem:[#allocation2 + $0x3b8] sm:$0xff]
    %v761 = vld [vmem:[#allocation2 + $0x3c0] sm:$0xff]
    %v762 = vld [vmem:[#allocation2 + $0x3c8] sm:$0xff]
    %v763 = vld [vmem:[#allocation2 + $0x3d0] sm:$0xff]
    %v764 = vld [vmem:[#allocation2 + $0x3d8] sm:$0xff]
    %v765 = vld [vmem:[#allocation2 + $0x3e0] sm:$0xff]
    %v766 = vld [vmem:[#allocation2 + $0x3e8] sm:$0xff]
    %v767 = vld [vmem:[#allocation2 + $0x3f0] sm:$0xff]
    %v768 = vld [vmem:[#allocation2 + $0x3f8] sm:$0xff]
    %v769 = vld [vmem:[#allocation2 + $0x400] sm:$0xff]
    %v770 = vld [vmem:[#allocation2 + $0x408] sm:$0xff]
    %v771 = vld [vmem:[#allocation2 + $0x410] sm:$0xff]
    %v772 = vld [vmem:[#allocation2 + $0x418] sm:$0xff]
    %v773 = vld [vmem:[#allocation2 + $0x420] sm:$0xff]
    %v774 = vld [vmem:[#allocation2 + $0x428] sm:$0xff]
    %v775 = vld [vmem:[#allocation2 + $0x430] sm:$0xff]
    %v776 = vld [vmem:[#allocation2 + $0x438] sm:$0xff]
    %v777 = vld [vmem:[#allocation2 + $0x440] sm:$0xff]
    %v778 = vld [vmem:[#allocation2 + $0x448] sm:$0xff]
    %v779 = vld [vmem:[#allocation2 + $0x450] sm:$0xff]
    %v780 = vld [vmem:[#allocation2 + $0x458] sm:$0xff]
    %v781 = vld [vmem:[#allocation2 + $0x460] sm:$0xff]
    %v782 = vld [vmem:[#allocation2 + $0x468] sm:$0xff]
    %v783 = vld [vmem:[#allocation2 + $0x470] sm:$0xff]
    %v784 = vld [vmem:[#allocation2 + $0x478] sm:$0xff]
    %v785 = vld [vmem:[#allocation2 + $0x480] sm:$0xff]
    %v786 = vld [vmem:[#allocation2 + $0x488] sm:$0xff]
    %v787 = vld [vmem:[#allocation2 + $0x490] sm:$0xff]
    %v788 = vld [vmem:[#allocation2 + $0x498] sm:$0xff]
    %v789 = vld [vmem:[#allocation2 + $0x4a0] sm:$0xff]
    %v790 = vld [vmem:[#allocation2 + $0x4a8] sm:$0xff]
    %v791 = vld [vmem:[#allocation2 + $0x4b0] sm:$0xff]
    %v792 = vld [vmem:[#allocation2 + $0x4b8] sm:$0xff]
    %v793 = vld [vmem:[#allocation2 + $0x4c0] sm:$0xff]
    %v794 = vld [vmem:[#allocation2 + $0x4c8] sm:$0xff]
    %v795 = vld [vmem:[#allocation2 + $0x4d0] sm:$0xff]
    %v796 = vld [vmem:[#allocation2 + $0x4d8] sm:$0xff]
    %v797 = vld [vmem:[#allocation2 + $0x4e0] sm:$0xff]
    %v798 = vld [vmem:[#allocation2 + $0x4e8] sm:$0xff]
    %v799 = vld [vmem:[#allocation2 + $0x4f0] sm:$0xff]
    %v800 = vld [vmem:[#allocation2 + $0x4f8] sm:$0xff]
    %v801 = vld [vmem:[%s5] sm:$0x3]
    %v803 = vlaneseq
    %v804 = vshrl.u32 %v803, 7
    %v805 = vsub.s32 0, %v804
    %v806 = vrot.slane %v801, %v805
    %v807 = vlaneseq
    %v808 = vshrl.u32 %v807, 7
    %v809 = vsub.s32 1, %v808
    %v810 = vrot.slane %v801, %v809
    %v973 = vunpack.c.l.b16 %v641
    %v974 = vunpack.c.h.b16 %v641
    %v975 = vunpack.c.l.b16 %v642
    %v976 = vunpack.c.h.b16 %v642
    %v977 = vunpack.c.l.b16 %v643
    %v978 = vunpack.c.h.b16 %v643
    %v979 = vunpack.c.l.b16 %v644
    %v980 = vunpack.c.h.b16 %v644
    %v981 = vunpack.c.l.b16 %v645
    %v982 = vunpack.c.h.b16 %v645
    %v983 = vunpack.c.l.b16 %v646
    %v984 = vunpack.c.h.b16 %v646
    %v985 = vunpack.c.l.b16 %v647
    %v986 = vunpack.c.h.b16 %v647
    %v987 = vunpack.c.l.b16 %v648
    %v988 = vunpack.c.h.b16 %v648
    %v989 = vunpack.c.l.b16 %v649
    %v990 = vunpack.c.h.b16 %v649
    %v991 = vunpack.c.l.b16 %v650
    %v992 = vunpack.c.h.b16 %v650
    %v993 = vunpack.c.l.b16 %v651
    %v994 = vunpack.c.h.b16 %v651
    %v995 = vunpack.c.l.b16 %v652
    %v996 = vunpack.c.h.b16 %v652
    %v997 = vunpack.c.l.b16 %v653
    %v998 = vunpack.c.h.b16 %v653
    %v999 = vunpack.c.l.b16 %v654
    %v1000 = vunpack.c.h.b16 %v654
    %v1001 = vunpack.c.l.b16 %v655
    %v1002 = vunpack.c.h.b16 %v655
    %v1003 = vunpack.c.l.b16 %v656
    %v1004 = vunpack.c.h.b16 %v656
    %v1005 = vunpack.c.l.b16 %v657
    %v1006 = vunpack.c.h.b16 %v657
    %v1007 = vunpack.c.l.b16 %v658
    %v1008 = vunpack.c.h.b16 %v658
    %v1009 = vunpack.c.l.b16 %v659
    %v1010 = vunpack.c.h.b16 %v659
    %v1011 = vunpack.c.l.b16 %v660
    %v1012 = vunpack.c.h.b16 %v660
    %v1013 = vunpack.c.l.b16 %v661
    %v1014 = vunpack.c.h.b16 %v661
    %v1015 = vunpack.c.l.b16 %v662
    %v1016 = vunpack.c.h.b16 %v662
    %v1017 = vunpack.c.l.b16 %v663
    %v1018 = vunpack.c.h.b16 %v663
    %v1019 = vunpack.c.l.b16 %v664
    %v1020 = vunpack.c.h.b16 %v664
    %v1021 = vunpack.c.l.b16 %v665
    %v1022 = vunpack.c.h.b16 %v665
    %v1023 = vunpack.c.l.b16 %v666
    %v1024 = vunpack.c.h.b16 %v666
    %v1025 = vunpack.c.l.b16 %v667
    %v1026 = vunpack.c.h.b16 %v667
    %v1027 = vunpack.c.l.b16 %v668
    %v1028 = vunpack.c.h.b16 %v668
    %v1029 = vunpack.c.l.b16 %v669
    %v1030 = vunpack.c.h.b16 %v669
    %v1031 = vunpack.c.l.b16 %v670
    %v1032 = vunpack.c.h.b16 %v670
    %v1033 = vunpack.c.l.b16 %v671
    %v1034 = vunpack.c.h.b16 %v671
    %v1035 = vunpack.c.l.b16 %v672
    %v1036 = vunpack.c.h.b16 %v672
    %v1037 = vunpack.c.l.b16 %v673
    %v1038 = vunpack.c.h.b16 %v673
    %v1039 = vunpack.c.l.b16 %v674
    %v1040 = vunpack.c.h.b16 %v674
    %v1041 = vunpack.c.l.b16 %v675
    %v1042 = vunpack.c.h.b16 %v675
    %v1043 = vunpack.c.l.b16 %v676
    %v1044 = vunpack.c.h.b16 %v676
    %v1045 = vunpack.c.l.b16 %v677
    %v1046 = vunpack.c.h.b16 %v677
    %v1047 = vunpack.c.l.b16 %v678
    %v1048 = vunpack.c.h.b16 %v678
    %v1049 = vunpack.c.l.b16 %v679
    %v1050 = vunpack.c.h.b16 %v679
    %v1051 = vunpack.c.l.b16 %v680
    %v1052 = vunpack.c.h.b16 %v680
    %v1053 = vunpack.c.l.b16 %v681
    %v1054 = vunpack.c.h.b16 %v681
    %v1055 = vunpack.c.l.b16 %v682
    %v1056 = vunpack.c.h.b16 %v682
    %v1057 = vunpack.c.l.b16 %v683
    %v1058 = vunpack.c.h.b16 %v683
    %v1059 = vunpack.c.l.b16 %v684
    %v1060 = vunpack.c.h.b16 %v684
    %v1061 = vunpack.c.l.b16 %v685
    %v1062 = vunpack.c.h.b16 %v685
    %v1063 = vunpack.c.l.b16 %v686
    %v1064 = vunpack.c.h.b16 %v686
    %v1065 = vunpack.c.l.b16 %v687
    %v1066 = vunpack.c.h.b16 %v687
    %v1067 = vunpack.c.l.b16 %v688
    %v1068 = vunpack.c.h.b16 %v688
    %v1069 = vunpack.c.l.b16 %v689
    %v1070 = vunpack.c.h.b16 %v689
    %v1071 = vunpack.c.l.b16 %v690
    %v1072 = vunpack.c.h.b16 %v690
    %v1073 = vunpack.c.l.b16 %v691
    %v1074 = vunpack.c.h.b16 %v691
    %v1075 = vunpack.c.l.b16 %v692
    %v1076 = vunpack.c.h.b16 %v692
    %v1077 = vunpack.c.l.b16 %v693
    %v1078 = vunpack.c.h.b16 %v693
    %v1079 = vunpack.c.l.b16 %v694
    %v1080 = vunpack.c.h.b16 %v694
    %v1081 = vunpack.c.l.b16 %v695
    %v1082 = vunpack.c.h.b16 %v695
    %v1083 = vunpack.c.l.b16 %v696
    %v1084 = vunpack.c.h.b16 %v696
    %v1085 = vunpack.c.l.b16 %v697
    %v1086 = vunpack.c.h.b16 %v697
    %v1087 = vunpack.c.l.b16 %v698
    %v1088 = vunpack.c.h.b16 %v698
    %v1089 = vunpack.c.l.b16 %v699
    %v1090 = vunpack.c.h.b16 %v699
    %v1091 = vunpack.c.l.b16 %v700
    %v1092 = vunpack.c.h.b16 %v700
    %v1093 = vunpack.c.l.b16 %v701
    %v1094 = vunpack.c.h.b16 %v701
    %v1095 = vunpack.c.l.b16 %v702
    %v1096 = vunpack.c.h.b16 %v702
    %v1097 = vunpack.c.l.b16 %v703
    %v1098 = vunpack.c.h.b16 %v703
    %v1099 = vunpack.c.l.b16 %v704
    %v1100 = vunpack.c.h.b16 %v704
    %v1101 = vunpack.c.l.b16 %v705
    %v1102 = vunpack.c.h.b16 %v705
    %v1103 = vunpack.c.l.b16 %v706
    %v1104 = vunpack.c.h.b16 %v706
    %v1105 = vunpack.c.l.b16 %v707
    %v1106 = vunpack.c.h.b16 %v707
    %v1107 = vunpack.c.l.b16 %v708
    %v1108 = vunpack.c.h.b16 %v708
    %v1109 = vunpack.c.l.b16 %v709
    %v1110 = vunpack.c.h.b16 %v709
    %v1111 = vunpack.c.l.b16 %v710
    %v1112 = vunpack.c.h.b16 %v710
    %v1113 = vunpack.c.l.b16 %v711
    %v1114 = vunpack.c.h.b16 %v711
    %v1115 = vunpack.c.l.b16 %v712
    %v1116 = vunpack.c.h.b16 %v712
    %v1117 = vunpack.c.l.b16 %v713
    %v1118 = vunpack.c.h.b16 %v713
    %v1119 = vunpack.c.l.b16 %v714
    %v1120 = vunpack.c.h.b16 %v714
    %v1121 = vunpack.c.l.b16 %v715
    %v1122 = vunpack.c.h.b16 %v715
    %v1123 = vunpack.c.l.b16 %v716
    %v1124 = vunpack.c.h.b16 %v716
    %v1125 = vunpack.c.l.b16 %v717
    %v1126 = vunpack.c.h.b16 %v717
    %v1127 = vunpack.c.l.b16 %v718
    %v1128 = vunpack.c.h.b16 %v718
    %v1129 = vunpack.c.l.b16 %v719
    %v1130 = vunpack.c.h.b16 %v719
    %v1131 = vunpack.c.l.b16 %v720
    %v1132 = vunpack.c.h.b16 %v720
    %v1133 = vunpack.c.l.b16 %v721
    %v1134 = vunpack.c.h.b16 %v721
    %v1135 = vunpack.c.l.b16 %v722
    %v1136 = vunpack.c.h.b16 %v722
    %v1137 = vunpack.c.l.b16 %v723
    %v1138 = vunpack.c.h.b16 %v723
    %v1139 = vunpack.c.l.b16 %v724
    %v1140 = vunpack.c.h.b16 %v724
    %v1141 = vunpack.c.l.b16 %v725
    %v1142 = vunpack.c.h.b16 %v725
    %v1143 = vunpack.c.l.b16 %v726
    %v1144 = vunpack.c.h.b16 %v726
    %v1145 = vunpack.c.l.b16 %v727
    %v1146 = vunpack.c.h.b16 %v727
    %v1147 = vunpack.c.l.b16 %v728
    %v1148 = vunpack.c.h.b16 %v728
    %v1149 = vunpack.c.l.b16 %v729
    %v1150 = vunpack.c.h.b16 %v729
    %v1151 = vunpack.c.l.b16 %v730
    %v1152 = vunpack.c.h.b16 %v730
    %v1153 = vunpack.c.l.b16 %v731
    %v1154 = vunpack.c.h.b16 %v731
    %v1155 = vunpack.c.l.b16 %v732
    %v1156 = vunpack.c.h.b16 %v732
    %v1157 = vunpack.c.l.b16 %v733
    %v1158 = vunpack.c.h.b16 %v733
    %v1159 = vunpack.c.l.b16 %v734
    %v1160 = vunpack.c.h.b16 %v734
    %v1161 = vunpack.c.l.b16 %v735
    %v1162 = vunpack.c.h.b16 %v735
    %v1163 = vunpack.c.l.b16 %v736
    %v1164 = vunpack.c.h.b16 %v736
    %v1165 = vunpack.c.l.b16 %v737
    %v1166 = vunpack.c.h.b16 %v737
    %v1167 = vunpack.c.l.b16 %v738
    %v1168 = vunpack.c.h.b16 %v738
    %v1169 = vunpack.c.l.b16 %v739
    %v1170 = vunpack.c.h.b16 %v739
    %v1171 = vunpack.c.l.b16 %v740
    %v1172 = vunpack.c.h.b16 %v740
    %v1173 = vunpack.c.l.b16 %v741
    %v1174 = vunpack.c.h.b16 %v741
    %v1175 = vunpack.c.l.b16 %v742
    %v1176 = vunpack.c.h.b16 %v742
    %v1177 = vunpack.c.l.b16 %v743
    %v1178 = vunpack.c.h.b16 %v743
    %v1179 = vunpack.c.l.b16 %v744
    %v1180 = vunpack.c.h.b16 %v744
    %v1181 = vunpack.c.l.b16 %v745
    %v1182 = vunpack.c.h.b16 %v745
    %v1183 = vunpack.c.l.b16 %v746
    %v1184 = vunpack.c.h.b16 %v746
    %v1185 = vunpack.c.l.b16 %v747
    %v1186 = vunpack.c.h.b16 %v747
    %v1187 = vunpack.c.l.b16 %v748
    %v1188 = vunpack.c.h.b16 %v748
    %v1189 = vunpack.c.l.b16 %v749
    %v1190 = vunpack.c.h.b16 %v749
    %v1191 = vunpack.c.l.b16 %v750
    %v1192 = vunpack.c.h.b16 %v750
    %v1193 = vunpack.c.l.b16 %v751
    %v1194 = vunpack.c.h.b16 %v751
    %v1195 = vunpack.c.l.b16 %v752
    %v1196 = vunpack.c.h.b16 %v752
    %v1197 = vunpack.c.l.b16 %v753
    %v1198 = vunpack.c.h.b16 %v753
    %v1199 = vunpack.c.l.b16 %v754
    %v1200 = vunpack.c.h.b16 %v754
    %v1201 = vunpack.c.l.b16 %v755
    %v1202 = vunpack.c.h.b16 %v755
    %v1203 = vunpack.c.l.b16 %v756
    %v1204 = vunpack.c.h.b16 %v756
    %v1205 = vunpack.c.l.b16 %v757
    %v1206 = vunpack.c.h.b16 %v757
    %v1207 = vunpack.c.l.b16 %v758
    %v1208 = vunpack.c.h.b16 %v758
    %v1209 = vunpack.c.l.b16 %v759
    %v1210 = vunpack.c.h.b16 %v759
    %v1211 = vunpack.c.l.b16 %v760
    %v1212 = vunpack.c.h.b16 %v760
    %v1213 = vunpack.c.l.b16 %v761
    %v1214 = vunpack.c.h.b16 %v761
    %v1215 = vunpack.c.l.b16 %v762
    %v1216 = vunpack.c.h.b16 %v762
    %v1217 = vunpack.c.l.b16 %v763
    %v1218 = vunpack.c.h.b16 %v763
    %v1219 = vunpack.c.l.b16 %v764
    %v1220 = vunpack.c.h.b16 %v764
    %v1221 = vunpack.c.l.b16 %v765
    %v1222 = vunpack.c.h.b16 %v765
    %v1223 = vunpack.c.l.b16 %v766
    %v1224 = vunpack.c.h.b16 %v766
    %v1225 = vunpack.c.l.b16 %v767
    %v1226 = vunpack.c.h.b16 %v767
    %v1227 = vunpack.c.l.b16 %v768
    %v1228 = vunpack.c.h.b16 %v768
    %v1229 = vunpack.c.l.b16 %v769
    %v1230 = vunpack.c.h.b16 %v769
    %v1231 = vunpack.c.l.b16 %v770
    %v1232 = vunpack.c.h.b16 %v770
    %v1233 = vunpack.c.l.b16 %v771
    %v1234 = vunpack.c.h.b16 %v771
    %v1235 = vunpack.c.l.b16 %v772
    %v1236 = vunpack.c.h.b16 %v772
    %v1237 = vunpack.c.l.b16 %v773
    %v1238 = vunpack.c.h.b16 %v773
    %v1239 = vunpack.c.l.b16 %v774
    %v1240 = vunpack.c.h.b16 %v774
    %v1241 = vunpack.c.l.b16 %v775
    %v1242 = vunpack.c.h.b16 %v775
    %v1243 = vunpack.c.l.b16 %v776
    %v1244 = vunpack.c.h.b16 %v776
    %v1245 = vunpack.c.l.b16 %v777
    %v1246 = vunpack.c.h.b16 %v777
    %v1247 = vunpack.c.l.b16 %v778
    %v1248 = vunpack.c.h.b16 %v778
    %v1249 = vunpack.c.l.b16 %v779
    %v1250 = vunpack.c.h.b16 %v779
    %v1251 = vunpack.c.l.b16 %v780
    %v1252 = vunpack.c.h.b16 %v780
    %v1253 = vunpack.c.l.b16 %v781
    %v1254 = vunpack.c.h.b16 %v781
    %v1255 = vunpack.c.l.b16 %v782
    %v1256 = vunpack.c.h.b16 %v782
    %v1257 = vunpack.c.l.b16 %v783
    %v1258 = vunpack.c.h.b16 %v783
    %v1259 = vunpack.c.l.b16 %v784
    %v1260 = vunpack.c.h.b16 %v784
    %v1261 = vunpack.c.l.b16 %v785
    %v1262 = vunpack.c.h.b16 %v785
    %v1263 = vunpack.c.l.b16 %v786
    %v1264 = vunpack.c.h.b16 %v786
    %v1265 = vunpack.c.l.b16 %v787
    %v1266 = vunpack.c.h.b16 %v787
    %v1267 = vunpack.c.l.b16 %v788
    %v1268 = vunpack.c.h.b16 %v788
    %v1269 = vunpack.c.l.b16 %v789
    %v1270 = vunpack.c.h.b16 %v789
    %v1271 = vunpack.c.l.b16 %v790
    %v1272 = vunpack.c.h.b16 %v790
    %v1273 = vunpack.c.l.b16 %v791
    %v1274 = vunpack.c.h.b16 %v791
    %v1275 = vunpack.c.l.b16 %v792
    %v1276 = vunpack.c.h.b16 %v792
    %v1277 = vunpack.c.l.b16 %v793
    %v1278 = vunpack.c.h.b16 %v793
    %v1279 = vunpack.c.l.b16 %v794
    %v1280 = vunpack.c.h.b16 %v794
    %v1281 = vunpack.c.l.b16 %v795
    %v1282 = vunpack.c.h.b16 %v795
    %v1283 = vunpack.c.l.b16 %v796
    %v1284 = vunpack.c.h.b16 %v796
    %v1285 = vunpack.c.l.b16 %v797
    %v1286 = vunpack.c.h.b16 %v797
    %v1287 = vunpack.c.l.b16 %v798
    %v1288 = vunpack.c.h.b16 %v798
    %v1289 = vunpack.c.l.b16 %v799
    %v1290 = vunpack.c.h.b16 %v799
    %v1291 = vunpack.c.l.b16 %v800
    %v1292 = vunpack.c.h.b16 %v800
    %v1293 = vpack.c.b16 %v975, %v973
    %v1294 = vpack.c.b16 %v976, %v974
    %v1295 = vpack.c.b16 %v979, %v977
    %v1296 = vpack.c.b16 %v980, %v978
    %v1297 = vpack.c.b16 %v983, %v981
    %v1298 = vpack.c.b16 %v984, %v982
    %v1299 = vpack.c.b16 %v987, %v985
    %v1300 = vpack.c.b16 %v988, %v986
    %v1301 = vpack.c.b16 %v991, %v989
    %v1302 = vpack.c.b16 %v992, %v990
    %v1303 = vpack.c.b16 %v995, %v993
    %v1304 = vpack.c.b16 %v996, %v994
    %v1305 = vpack.c.b16 %v999, %v997
    %v1306 = vpack.c.b16 %v1000, %v998
    %v1307 = vpack.c.b16 %v1003, %v1001
    %v1308 = vpack.c.b16 %v1004, %v1002
    %v1309 = vpack.c.b16 %v1007, %v1005
    %v1310 = vpack.c.b16 %v1008, %v1006
    %v1311 = vpack.c.b16 %v1011, %v1009
    %v1312 = vpack.c.b16 %v1012, %v1010
    %v1313 = vpack.c.b16 %v1015, %v1013
    %v1314 = vpack.c.b16 %v1016, %v1014
    %v1315 = vpack.c.b16 %v1019, %v1017
    %v1316 = vpack.c.b16 %v1020, %v1018
    %v1317 = vpack.c.b16 %v1023, %v1021
    %v1318 = vpack.c.b16 %v1024, %v1022
    %v1319 = vpack.c.b16 %v1027, %v1025
    %v1320 = vpack.c.b16 %v1028, %v1026
    %v1321 = vpack.c.b16 %v1031, %v1029
    %v1322 = vpack.c.b16 %v1032, %v1030
    %v1323 = vpack.c.b16 %v1035, %v1033
    %v1324 = vpack.c.b16 %v1036, %v1034
    %v1325 = vpack.c.b16 %v1039, %v1037
    %v1326 = vpack.c.b16 %v1040, %v1038
    %v1327 = vpack.c.b16 %v1043, %v1041
    %v1328 = vpack.c.b16 %v1044, %v1042
    %v1329 = vpack.c.b16 %v1047, %v1045
    %v1330 = vpack.c.b16 %v1048, %v1046
    %v1331 = vpack.c.b16 %v1051, %v1049
    %v1332 = vpack.c.b16 %v1052, %v1050
    %v1333 = vpack.c.b16 %v1055, %v1053
    %v1334 = vpack.c.b16 %v1056, %v1054
    %v1335 = vpack.c.b16 %v1059, %v1057
    %v1336 = vpack.c.b16 %v1060, %v1058
    %v1337 = vpack.c.b16 %v1063, %v1061
    %v1338 = vpack.c.b16 %v1064, %v1062
    %v1339 = vpack.c.b16 %v1067, %v1065
    %v1340 = vpack.c.b16 %v1068, %v1066
    %v1341 = vpack.c.b16 %v1071, %v1069
    %v1342 = vpack.c.b16 %v1072, %v1070
    %v1343 = vpack.c.b16 %v1075, %v1073
    %v1344 = vpack.c.b16 %v1076, %v1074
    %v1345 = vpack.c.b16 %v1079, %v1077
    %v1346 = vpack.c.b16 %v1080, %v1078
    %v1347 = vpack.c.b16 %v1083, %v1081
    %v1348 = vpack.c.b16 %v1084, %v1082
    %v1349 = vpack.c.b16 %v1087, %v1085
    %v1350 = vpack.c.b16 %v1088, %v1086
    %v1351 = vpack.c.b16 %v1091, %v1089
    %v1352 = vpack.c.b16 %v1092, %v1090
    %v1353 = vpack.c.b16 %v1095, %v1093
    %v1354 = vpack.c.b16 %v1096, %v1094
    %v1355 = vpack.c.b16 %v1099, %v1097
    %v1356 = vpack.c.b16 %v1100, %v1098
    %v1357 = vpack.c.b16 %v1103, %v1101
    %v1358 = vpack.c.b16 %v1104, %v1102
    %v1359 = vpack.c.b16 %v1107, %v1105
    %v1360 = vpack.c.b16 %v1108, %v1106
    %v1361 = vpack.c.b16 %v1111, %v1109
    %v1362 = vpack.c.b16 %v1112, %v1110
    %v1363 = vpack.c.b16 %v1115, %v1113
    %v1364 = vpack.c.b16 %v1116, %v1114
    %v1365 = vpack.c.b16 %v1119, %v1117
    %v1366 = vpack.c.b16 %v1120, %v1118
    %v1367 = vpack.c.b16 %v1123, %v1121
    %v1368 = vpack.c.b16 %v1124, %v1122
    %v1369 = vpack.c.b16 %v1127, %v1125
    %v1370 = vpack.c.b16 %v1128, %v1126
    %v1371 = vpack.c.b16 %v1131, %v1129
    %v1372 = vpack.c.b16 %v1132, %v1130
    %v1373 = vpack.c.b16 %v1135, %v1133
    %v1374 = vpack.c.b16 %v1136, %v1134
    %v1375 = vpack.c.b16 %v1139, %v1137
    %v1376 = vpack.c.b16 %v1140, %v1138
    %v1377 = vpack.c.b16 %v1143, %v1141
    %v1378 = vpack.c.b16 %v1144, %v1142
    %v1379 = vpack.c.b16 %v1147, %v1145
    %v1380 = vpack.c.b16 %v1148, %v1146
    %v1381 = vpack.c.b16 %v1151, %v1149
    %v1382 = vpack.c.b16 %v1152, %v1150
    %v1383 = vpack.c.b16 %v1155, %v1153
    %v1384 = vpack.c.b16 %v1156, %v1154
    %v1385 = vpack.c.b16 %v1159, %v1157
    %v1386 = vpack.c.b16 %v1160, %v1158
    %v1387 = vpack.c.b16 %v1163, %v1161
    %v1388 = vpack.c.b16 %v1164, %v1162
    %v1389 = vpack.c.b16 %v1167, %v1165
    %v1390 = vpack.c.b16 %v1168, %v1166
    %v1391 = vpack.c.b16 %v1171, %v1169
    %v1392 = vpack.c.b16 %v1172, %v1170
    %v1393 = vpack.c.b16 %v1175, %v1173
    %v1394 = vpack.c.b16 %v1176, %v1174
    %v1395 = vpack.c.b16 %v1179, %v1177
    %v1396 = vpack.c.b16 %v1180, %v1178
    %v1397 = vpack.c.b16 %v1183, %v1181
    %v1398 = vpack.c.b16 %v1184, %v1182
    %v1399 = vpack.c.b16 %v1187, %v1185
    %v1400 = vpack.c.b16 %v1188, %v1186
    %v1401 = vpack.c.b16 %v1191, %v1189
    %v1402 = vpack.c.b16 %v1192, %v1190
    %v1403 = vpack.c.b16 %v1195, %v1193
    %v1404 = vpack.c.b16 %v1196, %v1194
    %v1405 = vpack.c.b16 %v1199, %v1197
    %v1406 = vpack.c.b16 %v1200, %v1198
    %v1407 = vpack.c.b16 %v1203, %v1201
    %v1408 = vpack.c.b16 %v1204, %v1202
    %v1409 = vpack.c.b16 %v1207, %v1205
    %v1410 = vpack.c.b16 %v1208, %v1206
    %v1411 = vpack.c.b16 %v1211, %v1209
    %v1412 = vpack.c.b16 %v1212, %v1210
    %v1413 = vpack.c.b16 %v1215, %v1213
    %v1414 = vpack.c.b16 %v1216, %v1214
    %v1415 = vpack.c.b16 %v1219, %v1217
    %v1416 = vpack.c.b16 %v1220, %v1218
    %v1417 = vpack.c.b16 %v1223, %v1221
    %v1418 = vpack.c.b16 %v1224, %v1222
    %v1419 = vpack.c.b16 %v1227, %v1225
    %v1420 = vpack.c.b16 %v1228, %v1226
    %v1421 = vpack.c.b16 %v1231, %v1229
    %v1422 = vpack.c.b16 %v1232, %v1230
    %v1423 = vpack.c.b16 %v1235, %v1233
    %v1424 = vpack.c.b16 %v1236, %v1234
    %v1425 = vpack.c.b16 %v1239, %v1237
    %v1426 = vpack.c.b16 %v1240, %v1238
    %v1427 = vpack.c.b16 %v1243, %v1241
    %v1428 = vpack.c.b16 %v1244, %v1242
    %v1429 = vpack.c.b16 %v1247, %v1245
    %v1430 = vpack.c.b16 %v1248, %v1246
    %v1431 = vpack.c.b16 %v1251, %v1249
    %v1432 = vpack.c.b16 %v1252, %v1250
    %v1433 = vpack.c.b16 %v1255, %v1253
    %v1434 = vpack.c.b16 %v1256, %v1254
    %v1435 = vpack.c.b16 %v1259, %v1257
    %v1436 = vpack.c.b16 %v1260, %v1258
    %v1437 = vpack.c.b16 %v1263, %v1261
    %v1438 = vpack.c.b16 %v1264, %v1262
    %v1439 = vpack.c.b16 %v1267, %v1265
    %v1440 = vpack.c.b16 %v1268, %v1266
    %v1441 = vpack.c.b16 %v1271, %v1269
    %v1442 = vpack.c.b16 %v1272, %v1270
    %v1443 = vpack.c.b16 %v1275, %v1273
    %v1444 = vpack.c.b16 %v1276, %v1274
    %v1445 = vpack.c.b16 %v1279, %v1277
    %v1446 = vpack.c.b16 %v1280, %v1278
    %v1447 = vpack.c.b16 %v1283, %v1281
    %v1448 = vpack.c.b16 %v1284, %v1282
    %v1449 = vpack.c.b16 %v1287, %v1285
    %v1450 = vpack.c.b16 %v1288, %v1286
    %v1451 = vpack.c.b16 %v1291, %v1289
    %v1452 = vpack.c.b16 %v1292, %v1290
    %1613 = vmatprep.subr.bf16.mxu0 %v1308
    %1614 = vmatpush1.bf16.msra.mxu0 %v1307
    %1615 = vmatprep.subr.bf16.mxu0 %v1306
    %1616 = vmatpush1.bf16.msra.mxu0 %v1305
    %1617 = vmatprep.subr.bf16.mxu0 %v1304
    %1618 = vmatpush1.bf16.msra.mxu0 %v1303
    %1619 = vmatprep.subr.bf16.mxu0 %v1302
    %1620 = vmatpush1.bf16.msra.mxu0 %v1301
    %1621 = vmatprep.subr.bf16.mxu0 %v1300
    %1622 = vmatpush1.bf16.msra.mxu0 %v1299
    %1623 = vmatprep.subr.bf16.mxu0 %v1298
    %1624 = vmatpush1.bf16.msra.mxu0 %v1297
    %1625 = vmatprep.subr.bf16.mxu0 %v1296
    %1626 = vmatpush1.bf16.msra.mxu0 %v1295
    %1627 = vmatprep.subr.bf16.mxu0 %v1294
    %1628 = vmatpush1.bf16.msra.mxu0 %v1293
    %1629 = vmatprep.subr.bf16.mxu0 %v1324
    %1630 = vmatpush2.bf16.msra.mxu0 %v1323
    %1631 = vmatprep.subr.bf16.mxu0 %v1322
    %1632 = vmatpush2.bf16.msra.mxu0 %v1321
    %1633 = vmatprep.subr.bf16.mxu0 %v1320
    %1634 = vmatpush2.bf16.msra.mxu0 %v1319
    %1635 = vmatprep.subr.bf16.mxu0 %v1318
    %1636 = vmatpush2.bf16.msra.mxu0 %v1317
    %1637 = vmatprep.subr.bf16.mxu0 %v1316
    %1638 = vmatpush2.bf16.msra.mxu0 %v1315
    %1639 = vmatprep.subr.bf16.mxu0 %v1314
    %1640 = vmatpush2.bf16.msra.mxu0 %v1313
    %1641 = vmatprep.subr.bf16.mxu0 %v1312
    %1642 = vmatpush2.bf16.msra.mxu0 %v1311
    %1643 = vmatprep.subr.bf16.mxu0 %v1310
    %1644 = vmatpush2.bf16.msra.mxu0 %v1309
    %1645 = vmatprep.mubr.bf16.mxu0 %v632
    %1646 = vmatmul.mubr.bf16.gmra.mxu0 %v631
    %v1647 = vpop.f32.mrf.mxu0
    %v1648 = vadd.f32 %v806, %v1647
    %v1649 = vpop.f32.mrf.mxu0
    %v1650 = vadd.f32 %v810, %v1649
    %v1651 = vpop.f32.mrf.mxu0
    %v1652 = vpop.f32.mrf.mxu0
    %1653 = vdwg.mxu0
    %1654 = vmatprep.subr.bf16.mxu0 %v1340
    %1655 = vmatpush1.bf16.msra.mxu0 %v1339
    %1656 = vmatprep.subr.bf16.mxu0 %v1338
    %1657 = vmatpush1.bf16.msra.mxu0 %v1337
    %1658 = vmatprep.subr.bf16.mxu0 %v1336
    %1659 = vmatpush1.bf16.msra.mxu0 %v1335
    %1660 = vmatprep.subr.bf16.mxu0 %v1334
    %1661 = vmatpush1.bf16.msra.mxu0 %v1333
    %1662 = vmatprep.subr.bf16.mxu0 %v1332
    %1663 = vmatpush1.bf16.msra.mxu0 %v1331
    %1664 = vmatprep.subr.bf16.mxu0 %v1330
    %1665 = vmatpush1.bf16.msra.mxu0 %v1329
    %1666 = vmatprep.subr.bf16.mxu0 %v1328
    %1667 = vmatpush1.bf16.msra.mxu0 %v1327
    %1668 = vmatprep.subr.bf16.mxu0 %v1326
    %1669 = vmatpush1.bf16.msra.mxu0 %v1325
    %1670 = vmatprep.subr.bf16.mxu0 %v1356
    %1671 = vmatpush2.bf16.msra.mxu0 %v1355
    %1672 = vmatprep.subr.bf16.mxu0 %v1354
    %1673 = vmatpush2.bf16.msra.mxu0 %v1353
    %1674 = vmatprep.subr.bf16.mxu0 %v1352
    %1675 = vmatpush2.bf16.msra.mxu0 %v1351
    %1676 = vmatprep.subr.bf16.mxu0 %v1350
    %1677 = vmatpush2.bf16.msra.mxu0 %v1349
    %1678 = vmatprep.subr.bf16.mxu0 %v1348
    %1679 = vmatpush2.bf16.msra.mxu0 %v1347
    %1680 = vmatprep.subr.bf16.mxu0 %v1346
    %1681 = vmatpush2.bf16.msra.mxu0 %v1345
    %1682 = vmatprep.subr.bf16.mxu0 %v1344
    %1683 = vmatpush2.bf16.msra.mxu0 %v1343
    %1684 = vmatprep.subr.bf16.mxu0 %v1342
    %1685 = vmatpush2.bf16.msra.mxu0 %v1341
    %1686 = vmatprep.mubr.bf16.mxu0 %v634
    %1687 = vmatmul.mubr.bf16.gmra.mxu0 %v633
    %v1688 = vpop.f32.mrf.mxu0
    %v1689 = vadd.f32 %v1648, %v1688
    %v1690 = vpop.f32.mrf.mxu0
    %v1691 = vadd.f32 %v1650, %v1690
    %v1692 = vpop.f32.mrf.mxu0
    %v1693 = vpop.f32.mrf.mxu0
    %1694 = vdwg.mxu0
    %1695 = vmatprep.subr.bf16.mxu0 %v1372
    %1696 = vmatpush1.bf16.msra.mxu0 %v1371
    %1697 = vmatprep.subr.bf16.mxu0 %v1370
    %1698 = vmatpush1.bf16.msra.mxu0 %v1369
    %1699 = vmatprep.subr.bf16.mxu0 %v1368
    %1700 = vmatpush1.bf16.msra.mxu0 %v1367
    %1701 = vmatprep.subr.bf16.mxu0 %v1366
    %1702 = vmatpush1.bf16.msra.mxu0 %v1365
    %1703 = vmatprep.subr.bf16.mxu0 %v1364
    %1704 = vmatpush1.bf16.msra.mxu0 %v1363
    %1705 = vmatprep.subr.bf16.mxu0 %v1362
    %1706 = vmatpush1.bf16.msra.mxu0 %v1361
    %1707 = vmatprep.subr.bf16.mxu0 %v1360
    %1708 = vmatpush1.bf16.msra.mxu0 %v1359
    %1709 = vmatprep.subr.bf16.mxu0 %v1358
    %1710 = vmatpush1.bf16.msra.mxu0 %v1357
    %1711 = vmatprep.subr.bf16.mxu0 %v1388
    %1712 = vmatpush2.bf16.msra.mxu0 %v1387
    %1713 = vmatprep.subr.bf16.mxu0 %v1386
    %1714 = vmatpush2.bf16.msra.mxu0 %v1385
    %1715 = vmatprep.subr.bf16.mxu0 %v1384
    %1716 = vmatpush2.bf16.msra.mxu0 %v1383
    %1717 = vmatprep.subr.bf16.mxu0 %v1382
    %1718 = vmatpush2.bf16.msra.mxu0 %v1381
    %1719 = vmatprep.subr.bf16.mxu0 %v1380
    %1720 = vmatpush2.bf16.msra.mxu0 %v1379
    %1721 = vmatprep.subr.bf16.mxu0 %v1378
    %1722 = vmatpush2.bf16.msra.mxu0 %v1377
    %1723 = vmatprep.subr.bf16.mxu0 %v1376
    %1724 = vmatpush2.bf16.msra.mxu0 %v1375
    %1725 = vmatprep.subr.bf16.mxu0 %v1374
    %1726 = vmatpush2.bf16.msra.mxu0 %v1373
    %1727 = vmatprep.mubr.bf16.mxu0 %v636
    %1728 = vmatmul.mubr.bf16.gmra.mxu0 %v635
    %v1729 = vpop.f32.mrf.mxu0
    %v1730 = vadd.f32 %v1689, %v1729
    %v1731 = vpop.f32.mrf.mxu0
    %v1732 = vadd.f32 %v1691, %v1731
    %v1733 = vpop.f32.mrf.mxu0
    %v1734 = vpop.f32.mrf.mxu0
    %1735 = vdwg.mxu0
    %1736 = vmatprep.subr.bf16.mxu0 %v1404
    %1737 = vmatpush1.bf16.msra.mxu0 %v1403
    %1738 = vmatprep.subr.bf16.mxu0 %v1402
    %1739 = vmatpush1.bf16.msra.mxu0 %v1401
    %1740 = vmatprep.subr.bf16.mxu0 %v1400
    %1741 = vmatpush1.bf16.msra.mxu0 %v1399
    %1742 = vmatprep.subr.bf16.mxu0 %v1398
    %1743 = vmatpush1.bf16.msra.mxu0 %v1397
    %1744 = vmatprep.subr.bf16.mxu0 %v1396
    %1745 = vmatpush1.bf16.msra.mxu0 %v1395
    %1746 = vmatprep.subr.bf16.mxu0 %v1394
    %1747 = vmatpush1.bf16.msra.mxu0 %v1393
    %1748 = vmatprep.subr.bf16.mxu0 %v1392
    %1749 = vmatpush1.bf16.msra.mxu0 %v1391
    %1750 = vmatprep.subr.bf16.mxu0 %v1390
    %1751 = vmatpush1.bf16.msra.mxu0 %v1389
    %1752 = vmatprep.subr.bf16.mxu0 %v1420
    %1753 = vmatpush2.bf16.msra.mxu0 %v1419
    %1754 = vmatprep.subr.bf16.mxu0 %v1418
    %1755 = vmatpush2.bf16.msra.mxu0 %v1417
    %1756 = vmatprep.subr.bf16.mxu0 %v1416
    %1757 = vmatpush2.bf16.msra.mxu0 %v1415
    %1758 = vmatprep.subr.bf16.mxu0 %v1414
    %1759 = vmatpush2.bf16.msra.mxu0 %v1413
    %1760 = vmatprep.subr.bf16.mxu0 %v1412
    %1761 = vmatpush2.bf16.msra.mxu0 %v1411
    %1762 = vmatprep.subr.bf16.mxu0 %v1410
    %1763 = vmatpush2.bf16.msra.mxu0 %v1409
    %1764 = vmatprep.subr.bf16.mxu0 %v1408
    %1765 = vmatpush2.bf16.msra.mxu0 %v1407
    %1766 = vmatprep.subr.bf16.mxu0 %v1406
    %1767 = vmatpush2.bf16.msra.mxu0 %v1405
    %1768 = vmatprep.mubr.bf16.mxu0 %v638
    %1769 = vmatmul.mubr.bf16.gmra.mxu0 %v637
    %v1770 = vpop.f32.mrf.mxu0
    %v1771 = vadd.f32 %v1730, %v1770
    %v1772 = vpop.f32.mrf.mxu0
    %v1773 = vadd.f32 %v1732, %v1772
    %v1774 = vpop.f32.mrf.mxu0
    %v1775 = vpop.f32.mrf.mxu0
    %1776 = vdwg.mxu0
    %1777 = vmatprep.subr.bf16.mxu0 %v1436
    %1778 = vmatpush1.bf16.msra.mxu0 %v1435
    %1779 = vmatprep.subr.bf16.mxu0 %v1434
    %1780 = vmatpush1.bf16.msra.mxu0 %v1433
    %1781 = vmatprep.subr.bf16.mxu0 %v1432
    %1782 = vmatpush1.bf16.msra.mxu0 %v1431
    %1783 = vmatprep.subr.bf16.mxu0 %v1430
    %1784 = vmatpush1.bf16.msra.mxu0 %v1429
    %1785 = vmatprep.subr.bf16.mxu0 %v1428
    %1786 = vmatpush1.bf16.msra.mxu0 %v1427
    %1787 = vmatprep.subr.bf16.mxu0 %v1426
    %1788 = vmatpush1.bf16.msra.mxu0 %v1425
    %1789 = vmatprep.subr.bf16.mxu0 %v1424
    %1790 = vmatpush1.bf16.msra.mxu0 %v1423
    %1791 = vmatprep.subr.bf16.mxu0 %v1422
    %1792 = vmatpush1.bf16.msra.mxu0 %v1421
    %1793 = vmatprep.subr.bf16.mxu0 %v1452
    %1794 = vmatpush2.bf16.msra.mxu0 %v1451
    %1795 = vmatprep.subr.bf16.mxu0 %v1450
    %1796 = vmatpush2.bf16.msra.mxu0 %v1449
    %1797 = vmatprep.subr.bf16.mxu0 %v1448
    %1798 = vmatpush2.bf16.msra.mxu0 %v1447
    %1799 = vmatprep.subr.bf16.mxu0 %v1446
    %1800 = vmatpush2.bf16.msra.mxu0 %v1445
    %1801 = vmatprep.subr.bf16.mxu0 %v1444
    %1802 = vmatpush2.bf16.msra.mxu0 %v1443
    %1803 = vmatprep.subr.bf16.mxu0 %v1442
    %1804 = vmatpush2.bf16.msra.mxu0 %v1441
    %1805 = vmatprep.subr.bf16.mxu0 %v1440
    %1806 = vmatpush2.bf16.msra.mxu0 %v1439
    %1807 = vmatprep.subr.bf16.mxu0 %v1438
    %1808 = vmatpush2.bf16.msra.mxu0 %v1437
    %1809 = vmatprep.mubr.bf16.mxu0 %v640
    %1810 = vmatmul.mubr.bf16.gmra.mxu0 %v639
    %v1811 = vpop.f32.mrf.mxu0
    %v1812 = vadd.f32 %v1771, %v1811
    %v1813 = vpop.f32.mrf.mxu0
    %v1814 = vadd.f32 %v1773, %v1813
    %v1815 = vpop.f32.mrf.mxu0
    %v1816 = vpop.f32.mrf.mxu0
    %1817 = vdwg.mxu0
    %v1818 = vtanh.pop %v1812
    %v1819 = vtanh.pop %v1814
    %v1820 = vld [vmem:[%s1] sm:$0xff]
    %v1821 = vld [vmem:[%s1 + $0x8] sm:$0xff]
    %v1822 = vld [vmem:[%s1 + $0x10] sm:$0xff]
    %v1823 = vld [vmem:[#allocation5] sm:$0xff]
    %v1824 = vld [vmem:[#allocation5 + $0x8] sm:$0xff]
    %v1825 = vld [vmem:[#allocation5 + $0x10] sm:$0xff]
    %v1826 = vld [vmem:[#allocation5 + $0x18] sm:$0xff]
    %v1827 = vld [vmem:[#allocation5 + $0x20] sm:$0xff]
    %v1828 = vld [vmem:[#allocation5 + $0x28] sm:$0xff]
    %v1829 = vld [vmem:[#allocation5 + $0x30] sm:$0xff]
    %v1830 = vld [vmem:[#allocation5 + $0x38] sm:$0xff]
    %v1831 = vld [vmem:[#allocation5 + $0x40] sm:$0xff]
    %v1832 = vld [vmem:[#allocation5 + $0x48] sm:$0xff]
    %v1833 = vld [vmem:[#allocation5 + $0x50] sm:$0xff]
    %v1834 = vld [vmem:[#allocation5 + $0x58] sm:$0xff]
    %v1835 = vld [vmem:[#allocation5 + $0x60] sm:$0xff]
    %v1836 = vld [vmem:[#allocation5 + $0x68] sm:$0xff]
    %v1837 = vld [vmem:[#allocation5 + $0x70] sm:$0xff]
    %v1838 = vld [vmem:[#allocation5 + $0x78] sm:$0xff]
    %v1839 = vld [vmem:[#allocation5 + $0x80] sm:$0xff]
    %v1840 = vld [vmem:[#allocation5 + $0x88] sm:$0xff]
    %v1841 = vld [vmem:[#allocation5 + $0x90] sm:$0xff]
    %v1842 = vld [vmem:[#allocation5 + $0x98] sm:$0xff]
    %v1843 = vld [vmem:[#allocation5 + $0xa0] sm:$0xff]
    %v1844 = vld [vmem:[#allocation5 + $0xa8] sm:$0xff]
    %v1845 = vld [vmem:[#allocation5 + $0xb0] sm:$0xff]
    %v1846 = vld [vmem:[#allocation5 + $0xb8] sm:$0xff]
    %v1847 = vld [vmem:[#allocation5 + $0xc0] sm:$0xff]
    %v1848 = vld [vmem:[#allocation5 + $0xc8] sm:$0xff]
    %v1849 = vld [vmem:[#allocation5 + $0xd0] sm:$0xff]
    %v1850 = vld [vmem:[#allocation5 + $0xd8] sm:$0xff]
    %v1851 = vld [vmem:[#allocation5 + $0xe0] sm:$0xff]
    %v1852 = vld [vmem:[#allocation5 + $0xe8] sm:$0xff]
    %v1853 = vld [vmem:[#allocation5 + $0xf0] sm:$0xff]
    %v1854 = vld [vmem:[#allocation5 + $0xf8] sm:$0xff]
    %v1855 = vld [vmem:[#allocation5 + $0x100] sm:$0xff]
    %v1856 = vld [vmem:[#allocation5 + $0x108] sm:$0xff]
    %v1857 = vld [vmem:[#allocation5 + $0x110] sm:$0xff]
    %v1858 = vld [vmem:[#allocation5 + $0x118] sm:$0xff]
    %v1859 = vld [vmem:[#allocation5 + $0x120] sm:$0xff]
    %v1860 = vld [vmem:[#allocation5 + $0x128] sm:$0xff]
    %v1861 = vld [vmem:[#allocation5 + $0x130] sm:$0xff]
    %v1862 = vld [vmem:[#allocation5 + $0x138] sm:$0xff]
    %v1863 = vld [vmem:[#allocation5 + $0x140] sm:$0xff]
    %v1864 = vld [vmem:[#allocation5 + $0x148] sm:$0xff]
    %v1865 = vld [vmem:[#allocation5 + $0x150] sm:$0xff]
    %v1866 = vld [vmem:[#allocation5 + $0x158] sm:$0xff]
    %v1867 = vld [vmem:[#allocation5 + $0x160] sm:$0xff]
    %v1868 = vld [vmem:[#allocation5 + $0x168] sm:$0xff]
    %v1869 = vld [vmem:[#allocation5 + $0x170] sm:$0xff]
    %v1870 = vld [vmem:[#allocation5 + $0x178] sm:$0xff]
    %v1871 = vld [vmem:[#allocation5 + $0x180] sm:$0xff]
    %v1872 = vld [vmem:[#allocation5 + $0x188] sm:$0xff]
    %v1873 = vld [vmem:[#allocation5 + $0x190] sm:$0xff]
    %v1874 = vld [vmem:[#allocation5 + $0x198] sm:$0xff]
    %v1875 = vld [vmem:[#allocation5 + $0x1a0] sm:$0xff]
    %v1876 = vld [vmem:[#allocation5 + $0x1a8] sm:$0xff]
    %v1877 = vld [vmem:[#allocation5 + $0x1b0] sm:$0xff]
    %v1878 = vld [vmem:[#allocation5 + $0x1b8] sm:$0xff]
    %v1879 = vld [vmem:[#allocation5 + $0x1c0] sm:$0xff]
    %v1880 = vld [vmem:[#allocation5 + $0x1c8] sm:$0xff]
    %v1881 = vld [vmem:[#allocation5 + $0x1d0] sm:$0xff]
    %v1882 = vld [vmem:[#allocation5 + $0x1d8] sm:$0xff]
    %v1883 = vld [vmem:[#allocation5 + $0x1e0] sm:$0xff]
    %v1884 = vld [vmem:[#allocation5 + $0x1e8] sm:$0xff]
    %v1885 = vld [vmem:[#allocation5 + $0x1f0] sm:$0xff]
    %v1886 = vld [vmem:[#allocation5 + $0x1f8] sm:$0xff]
    %v1887 = vld [vmem:[#allocation5 + $0x200] sm:$0xff]
    %v1888 = vld [vmem:[#allocation5 + $0x208] sm:$0xff]
    %v1889 = vld [vmem:[#allocation5 + $0x210] sm:$0xff]
    %v1890 = vld [vmem:[#allocation5 + $0x218] sm:$0xff]
    %v1891 = vld [vmem:[#allocation5 + $0x220] sm:$0xff]
    %v1892 = vld [vmem:[#allocation5 + $0x228] sm:$0xff]
    %v1893 = vld [vmem:[#allocation5 + $0x230] sm:$0xff]
    %v1894 = vld [vmem:[#allocation5 + $0x238] sm:$0xff]
    %v1895 = vld [vmem:[#allocation5 + $0x240] sm:$0xff]
    %v1896 = vld [vmem:[#allocation5 + $0x248] sm:$0xff]
    %v1897 = vld [vmem:[#allocation5 + $0x250] sm:$0xff]
    %v1898 = vld [vmem:[#allocation5 + $0x258] sm:$0xff]
    %v1899 = vld [vmem:[#allocation5 + $0x260] sm:$0xff]
    %v1900 = vld [vmem:[#allocation5 + $0x268] sm:$0xff]
    %v1901 = vld [vmem:[#allocation5 + $0x270] sm:$0xff]
    %v1902 = vld [vmem:[#allocation5 + $0x278] sm:$0xff]
    %v1903 = vld [vmem:[#allocation5 + $0x280] sm:$0xff]
    %v1904 = vld [vmem:[#allocation5 + $0x288] sm:$0xff]
    %v1905 = vld [vmem:[#allocation5 + $0x290] sm:$0xff]
    %v1906 = vld [vmem:[#allocation5 + $0x298] sm:$0xff]
    %v1907 = vld [vmem:[#allocation5 + $0x2a0] sm:$0xff]
    %v1908 = vld [vmem:[#allocation5 + $0x2a8] sm:$0xff]
    %v1909 = vld [vmem:[#allocation5 + $0x2b0] sm:$0xff]
    %v1910 = vld [vmem:[#allocation5 + $0x2b8] sm:$0xff]
    %v1911 = vld [vmem:[#allocation5 + $0x2c0] sm:$0xff]
    %v1912 = vld [vmem:[#allocation5 + $0x2c8] sm:$0xff]
    %v1913 = vld [vmem:[#allocation5 + $0x2d0] sm:$0xff]
    %v1914 = vld [vmem:[#allocation5 + $0x2d8] sm:$0xff]
    %v1915 = vld [vmem:[#allocation5 + $0x2e0] sm:$0xff]
    %v1916 = vld [vmem:[#allocation5 + $0x2e8] sm:$0xff]
    %v1917 = vld [vmem:[#allocation5 + $0x2f0] sm:$0xff]
    %v1918 = vld [vmem:[#allocation5 + $0x2f8] sm:$0xff]
    %v1919 = vld [vmem:[%s7] sm:$0x3]
    %v1921 = vlaneseq
    %v1922 = vshrl.u32 %v1921, 7
    %v1923 = vsub.s32 0, %v1922
    %v1924 = vrot.slane %v1919, %v1923
    %v1925 = vlaneseq
    %v1926 = vshrl.u32 %v1925, 7
    %v1927 = vsub.s32 1, %v1926
    %v1928 = vrot.slane %v1919, %v1927
    %v1934 = vunpack.c.l.b16 %v1820
    %v1935 = vunpack.c.h.b16 %v1820
    %v1936 = vunpack.c.l.b16 %v1821
    %v1937 = vunpack.c.h.b16 %v1821
    %v1938 = vunpack.c.l.b16 %v1822
    %v1939 = vunpack.c.h.b16 %v1822
    %v1940 = vpack.c.b16 %v1934, %v1934
    %v1941 = vpack.c.b16 %v1935, %v1935
    %v1942 = vpack.c.b16 %v1936, %v1936
    %v1943 = vpack.c.b16 %v1937, %v1937
    %v1944 = vpack.c.b16 %v1938, %v1938
    %v1945 = vpack.c.b16 %v1939, %v1939
    %v2048 = vunpack.c.l.b16 %v1823
    %v2049 = vunpack.c.h.b16 %v1823
    %v2050 = vunpack.c.l.b16 %v1824
    %v2051 = vunpack.c.h.b16 %v1824
    %v2052 = vunpack.c.l.b16 %v1825
    %v2053 = vunpack.c.h.b16 %v1825
    %v2054 = vunpack.c.l.b16 %v1826
    %v2055 = vunpack.c.h.b16 %v1826
    %v2056 = vunpack.c.l.b16 %v1827
    %v2057 = vunpack.c.h.b16 %v1827
    %v2058 = vunpack.c.l.b16 %v1828
    %v2059 = vunpack.c.h.b16 %v1828
    %v2060 = vunpack.c.l.b16 %v1829
    %v2061 = vunpack.c.h.b16 %v1829
    %v2062 = vunpack.c.l.b16 %v1830
    %v2063 = vunpack.c.h.b16 %v1830
    %v2064 = vunpack.c.l.b16 %v1831
    %v2065 = vunpack.c.h.b16 %v1831
    %v2066 = vunpack.c.l.b16 %v1832
    %v2067 = vunpack.c.h.b16 %v1832
    %v2068 = vunpack.c.l.b16 %v1833
    %v2069 = vunpack.c.h.b16 %v1833
    %v2070 = vunpack.c.l.b16 %v1834
    %v2071 = vunpack.c.h.b16 %v1834
    %v2072 = vunpack.c.l.b16 %v1835
    %v2073 = vunpack.c.h.b16 %v1835
    %v2074 = vunpack.c.l.b16 %v1836
    %v2075 = vunpack.c.h.b16 %v1836
    %v2076 = vunpack.c.l.b16 %v1837
    %v2077 = vunpack.c.h.b16 %v1837
    %v2078 = vunpack.c.l.b16 %v1838
    %v2079 = vunpack.c.h.b16 %v1838
    %v2080 = vunpack.c.l.b16 %v1839
    %v2081 = vunpack.c.h.b16 %v1839
    %v2082 = vunpack.c.l.b16 %v1840
    %v2083 = vunpack.c.h.b16 %v1840
    %v2084 = vunpack.c.l.b16 %v1841
    %v2085 = vunpack.c.h.b16 %v1841
    %v2086 = vunpack.c.l.b16 %v1842
    %v2087 = vunpack.c.h.b16 %v1842
    %v2088 = vunpack.c.l.b16 %v1843
    %v2089 = vunpack.c.h.b16 %v1843
    %v2090 = vunpack.c.l.b16 %v1844
    %v2091 = vunpack.c.h.b16 %v1844
    %v2092 = vunpack.c.l.b16 %v1845
    %v2093 = vunpack.c.h.b16 %v1845
    %v2094 = vunpack.c.l.b16 %v1846
    %v2095 = vunpack.c.h.b16 %v1846
    %v2096 = vunpack.c.l.b16 %v1847
    %v2097 = vunpack.c.h.b16 %v1847
    %v2098 = vunpack.c.l.b16 %v1848
    %v2099 = vunpack.c.h.b16 %v1848
    %v2100 = vunpack.c.l.b16 %v1849
    %v2101 = vunpack.c.h.b16 %v1849
    %v2102 = vunpack.c.l.b16 %v1850
    %v2103 = vunpack.c.h.b16 %v1850
    %v2104 = vunpack.c.l.b16 %v1851
    %v2105 = vunpack.c.h.b16 %v1851
    %v2106 = vunpack.c.l.b16 %v1852
    %v2107 = vunpack.c.h.b16 %v1852
    %v2108 = vunpack.c.l.b16 %v1853
    %v2109 = vunpack.c.h.b16 %v1853
    %v2110 = vunpack.c.l.b16 %v1854
    %v2111 = vunpack.c.h.b16 %v1854
    %v2112 = vunpack.c.l.b16 %v1855
    %v2113 = vunpack.c.h.b16 %v1855
    %v2114 = vunpack.c.l.b16 %v1856
    %v2115 = vunpack.c.h.b16 %v1856
    %v2116 = vunpack.c.l.b16 %v1857
    %v2117 = vunpack.c.h.b16 %v1857
    %v2118 = vunpack.c.l.b16 %v1858
    %v2119 = vunpack.c.h.b16 %v1858
    %v2120 = vunpack.c.l.b16 %v1859
    %v2121 = vunpack.c.h.b16 %v1859
    %v2122 = vunpack.c.l.b16 %v1860
    %v2123 = vunpack.c.h.b16 %v1860
    %v2124 = vunpack.c.l.b16 %v1861
    %v2125 = vunpack.c.h.b16 %v1861
    %v2126 = vunpack.c.l.b16 %v1862
    %v2127 = vunpack.c.h.b16 %v1862
    %v2128 = vunpack.c.l.b16 %v1863
    %v2129 = vunpack.c.h.b16 %v1863
    %v2130 = vunpack.c.l.b16 %v1864
    %v2131 = vunpack.c.h.b16 %v1864
    %v2132 = vunpack.c.l.b16 %v1865
    %v2133 = vunpack.c.h.b16 %v1865
    %v2134 = vunpack.c.l.b16 %v1866
    %v2135 = vunpack.c.h.b16 %v1866
    %v2136 = vunpack.c.l.b16 %v1867
    %v2137 = vunpack.c.h.b16 %v1867
    %v2138 = vunpack.c.l.b16 %v1868
    %v2139 = vunpack.c.h.b16 %v1868
    %v2140 = vunpack.c.l.b16 %v1869
    %v2141 = vunpack.c.h.b16 %v1869
    %v2142 = vunpack.c.l.b16 %v1870
    %v2143 = vunpack.c.h.b16 %v1870
    %v2144 = vunpack.c.l.b16 %v1871
    %v2145 = vunpack.c.h.b16 %v1871
    %v2146 = vunpack.c.l.b16 %v1872
    %v2147 = vunpack.c.h.b16 %v1872
    %v2148 = vunpack.c.l.b16 %v1873
    %v2149 = vunpack.c.h.b16 %v1873
    %v2150 = vunpack.c.l.b16 %v1874
    %v2151 = vunpack.c.h.b16 %v1874
    %v2152 = vunpack.c.l.b16 %v1875
    %v2153 = vunpack.c.h.b16 %v1875
    %v2154 = vunpack.c.l.b16 %v1876
    %v2155 = vunpack.c.h.b16 %v1876
    %v2156 = vunpack.c.l.b16 %v1877
    %v2157 = vunpack.c.h.b16 %v1877
    %v2158 = vunpack.c.l.b16 %v1878
    %v2159 = vunpack.c.h.b16 %v1878
    %v2160 = vunpack.c.l.b16 %v1879
    %v2161 = vunpack.c.h.b16 %v1879
    %v2162 = vunpack.c.l.b16 %v1880
    %v2163 = vunpack.c.h.b16 %v1880
    %v2164 = vunpack.c.l.b16 %v1881
    %v2165 = vunpack.c.h.b16 %v1881
    %v2166 = vunpack.c.l.b16 %v1882
    %v2167 = vunpack.c.h.b16 %v1882
    %v2168 = vunpack.c.l.b16 %v1883
    %v2169 = vunpack.c.h.b16 %v1883
    %v2170 = vunpack.c.l.b16 %v1884
    %v2171 = vunpack.c.h.b16 %v1884
    %v2172 = vunpack.c.l.b16 %v1885
    %v2173 = vunpack.c.h.b16 %v1885
    %v2174 = vunpack.c.l.b16 %v1886
    %v2175 = vunpack.c.h.b16 %v1886
    %v2176 = vunpack.c.l.b16 %v1887
    %v2177 = vunpack.c.h.b16 %v1887
    %v2178 = vunpack.c.l.b16 %v1888
    %v2179 = vunpack.c.h.b16 %v1888
    %v2180 = vunpack.c.l.b16 %v1889
    %v2181 = vunpack.c.h.b16 %v1889
    %v2182 = vunpack.c.l.b16 %v1890
    %v2183 = vunpack.c.h.b16 %v1890
    %v2184 = vunpack.c.l.b16 %v1891
    %v2185 = vunpack.c.h.b16 %v1891
    %v2186 = vunpack.c.l.b16 %v1892
    %v2187 = vunpack.c.h.b16 %v1892
    %v2188 = vunpack.c.l.b16 %v1893
    %v2189 = vunpack.c.h.b16 %v1893
    %v2190 = vunpack.c.l.b16 %v1894
    %v2191 = vunpack.c.h.b16 %v1894
    %v2192 = vunpack.c.l.b16 %v1895
    %v2193 = vunpack.c.h.b16 %v1895
    %v2194 = vunpack.c.l.b16 %v1896
    %v2195 = vunpack.c.h.b16 %v1896
    %v2196 = vunpack.c.l.b16 %v1897
    %v2197 = vunpack.c.h.b16 %v1897
    %v2198 = vunpack.c.l.b16 %v1898
    %v2199 = vunpack.c.h.b16 %v1898
    %v2200 = vunpack.c.l.b16 %v1899
    %v2201 = vunpack.c.h.b16 %v1899
    %v2202 = vunpack.c.l.b16 %v1900
    %v2203 = vunpack.c.h.b16 %v1900
    %v2204 = vunpack.c.l.b16 %v1901
    %v2205 = vunpack.c.h.b16 %v1901
    %v2206 = vunpack.c.l.b16 %v1902
    %v2207 = vunpack.c.h.b16 %v1902
    %v2208 = vunpack.c.l.b16 %v1903
    %v2209 = vunpack.c.h.b16 %v1903
    %v2210 = vunpack.c.l.b16 %v1904
    %v2211 = vunpack.c.h.b16 %v1904
    %v2212 = vunpack.c.l.b16 %v1905
    %v2213 = vunpack.c.h.b16 %v1905
    %v2214 = vunpack.c.l.b16 %v1906
    %v2215 = vunpack.c.h.b16 %v1906
    %v2216 = vunpack.c.l.b16 %v1907
    %v2217 = vunpack.c.h.b16 %v1907
    %v2218 = vunpack.c.l.b16 %v1908
    %v2219 = vunpack.c.h.b16 %v1908
    %v2220 = vunpack.c.l.b16 %v1909
    %v2221 = vunpack.c.h.b16 %v1909
    %v2222 = vunpack.c.l.b16 %v1910
    %v2223 = vunpack.c.h.b16 %v1910
    %v2224 = vunpack.c.l.b16 %v1911
    %v2225 = vunpack.c.h.b16 %v1911
    %v2226 = vunpack.c.l.b16 %v1912
    %v2227 = vunpack.c.h.b16 %v1912
    %v2228 = vunpack.c.l.b16 %v1913
    %v2229 = vunpack.c.h.b16 %v1913
    %v2230 = vunpack.c.l.b16 %v1914
    %v2231 = vunpack.c.h.b16 %v1914
    %v2232 = vunpack.c.l.b16 %v1915
    %v2233 = vunpack.c.h.b16 %v1915
    %v2234 = vunpack.c.l.b16 %v1916
    %v2235 = vunpack.c.h.b16 %v1916
    %v2236 = vunpack.c.l.b16 %v1917
    %v2237 = vunpack.c.h.b16 %v1917
    %v2238 = vunpack.c.l.b16 %v1918
    %v2239 = vunpack.c.h.b16 %v1918
    %v2240 = vpack.c.b16 %v2050, %v2048
    %v2241 = vpack.c.b16 %v2051, %v2049
    %v2242 = vpack.c.b16 %v2054, %v2052
    %v2243 = vpack.c.b16 %v2055, %v2053
    %v2244 = vpack.c.b16 %v2058, %v2056
    %v2245 = vpack.c.b16 %v2059, %v2057
    %v2246 = vpack.c.b16 %v2062, %v2060
    %v2247 = vpack.c.b16 %v2063, %v2061
    %v2248 = vpack.c.b16 %v2066, %v2064
    %v2249 = vpack.c.b16 %v2067, %v2065
    %v2250 = vpack.c.b16 %v2070, %v2068
    %v2251 = vpack.c.b16 %v2071, %v2069
    %v2252 = vpack.c.b16 %v2074, %v2072
    %v2253 = vpack.c.b16 %v2075, %v2073
    %v2254 = vpack.c.b16 %v2078, %v2076
    %v2255 = vpack.c.b16 %v2079, %v2077
    %v2256 = vpack.c.b16 %v2082, %v2080
    %v2257 = vpack.c.b16 %v2083, %v2081
    %v2258 = vpack.c.b16 %v2086, %v2084
    %v2259 = vpack.c.b16 %v2087, %v2085
    %v2260 = vpack.c.b16 %v2090, %v2088
    %v2261 = vpack.c.b16 %v2091, %v2089
    %v2262 = vpack.c.b16 %v2094, %v2092
    %v2263 = vpack.c.b16 %v2095, %v2093
    %v2264 = vpack.c.b16 %v2098, %v2096
    %v2265 = vpack.c.b16 %v2099, %v2097
    %v2266 = vpack.c.b16 %v2102, %v2100
    %v2267 = vpack.c.b16 %v2103, %v2101
    %v2268 = vpack.c.b16 %v2106, %v2104
    %v2269 = vpack.c.b16 %v2107, %v2105
    %v2270 = vpack.c.b16 %v2110, %v2108
    %v2271 = vpack.c.b16 %v2111, %v2109
    %v2272 = vpack.c.b16 %v2114, %v2112
    %v2273 = vpack.c.b16 %v2115, %v2113
    %v2274 = vpack.c.b16 %v2118, %v2116
    %v2275 = vpack.c.b16 %v2119, %v2117
    %v2276 = vpack.c.b16 %v2122, %v2120
    %v2277 = vpack.c.b16 %v2123, %v2121
    %v2278 = vpack.c.b16 %v2126, %v2124
    %v2279 = vpack.c.b16 %v2127, %v2125
    %v2280 = vpack.c.b16 %v2130, %v2128
    %v2281 = vpack.c.b16 %v2131, %v2129
    %v2282 = vpack.c.b16 %v2134, %v2132
    %v2283 = vpack.c.b16 %v2135, %v2133
    %v2284 = vpack.c.b16 %v2138, %v2136
    %v2285 = vpack.c.b16 %v2139, %v2137
    %v2286 = vpack.c.b16 %v2142, %v2140
    %v2287 = vpack.c.b16 %v2143, %v2141
    %v2288 = vpack.c.b16 %v2146, %v2144
    %v2289 = vpack.c.b16 %v2147, %v2145
    %v2290 = vpack.c.b16 %v2150, %v2148
    %v2291 = vpack.c.b16 %v2151, %v2149
    %v2292 = vpack.c.b16 %v2154, %v2152
    %v2293 = vpack.c.b16 %v2155, %v2153
    %v2294 = vpack.c.b16 %v2158, %v2156
    %v2295 = vpack.c.b16 %v2159, %v2157
    %v2296 = vpack.c.b16 %v2162, %v2160
    %v2297 = vpack.c.b16 %v2163, %v2161
    %v2298 = vpack.c.b16 %v2166, %v2164
    %v2299 = vpack.c.b16 %v2167, %v2165
    %v2300 = vpack.c.b16 %v2170, %v2168
    %v2301 = vpack.c.b16 %v2171, %v2169
    %v2302 = vpack.c.b16 %v2174, %v2172
    %v2303 = vpack.c.b16 %v2175, %v2173
    %v2304 = vpack.c.b16 %v2178, %v2176
    %v2305 = vpack.c.b16 %v2179, %v2177
    %v2306 = vpack.c.b16 %v2182, %v2180
    %v2307 = vpack.c.b16 %v2183, %v2181
    %v2308 = vpack.c.b16 %v2186, %v2184
    %v2309 = vpack.c.b16 %v2187, %v2185
    %v2310 = vpack.c.b16 %v2190, %v2188
    %v2311 = vpack.c.b16 %v2191, %v2189
    %v2312 = vpack.c.b16 %v2194, %v2192
    %v2313 = vpack.c.b16 %v2195, %v2193
    %v2314 = vpack.c.b16 %v2198, %v2196
    %v2315 = vpack.c.b16 %v2199, %v2197
    %v2316 = vpack.c.b16 %v2202, %v2200
    %v2317 = vpack.c.b16 %v2203, %v2201
    %v2318 = vpack.c.b16 %v2206, %v2204
    %v2319 = vpack.c.b16 %v2207, %v2205
    %v2320 = vpack.c.b16 %v2210, %v2208
    %v2321 = vpack.c.b16 %v2211, %v2209
    %v2322 = vpack.c.b16 %v2214, %v2212
    %v2323 = vpack.c.b16 %v2215, %v2213
    %v2324 = vpack.c.b16 %v2218, %v2216
    %v2325 = vpack.c.b16 %v2219, %v2217
    %v2326 = vpack.c.b16 %v2222, %v2220
    %v2327 = vpack.c.b16 %v2223, %v2221
    %v2328 = vpack.c.b16 %v2226, %v2224
    %v2329 = vpack.c.b16 %v2227, %v2225
    %v2330 = vpack.c.b16 %v2230, %v2228
    %v2331 = vpack.c.b16 %v2231, %v2229
    %v2332 = vpack.c.b16 %v2234, %v2232
    %v2333 = vpack.c.b16 %v2235, %v2233
    %v2334 = vpack.c.b16 %v2238, %v2236
    %v2335 = vpack.c.b16 %v2239, %v2237
    %2432 = vmatprep.subr.bf16.mxu0 %v2255
    %2433 = vmatpush1.bf16.msra.mxu0 %v2254
    %2434 = vmatprep.subr.bf16.mxu0 %v2253
    %2435 = vmatpush1.bf16.msra.mxu0 %v2252
    %2436 = vmatprep.subr.bf16.mxu0 %v2251
    %2437 = vmatpush1.bf16.msra.mxu0 %v2250
    %2438 = vmatprep.subr.bf16.mxu0 %v2249
    %2439 = vmatpush1.bf16.msra.mxu0 %v2248
    %2440 = vmatprep.subr.bf16.mxu0 %v2247
    %2441 = vmatpush1.bf16.msra.mxu0 %v2246
    %2442 = vmatprep.subr.bf16.mxu0 %v2245
    %2443 = vmatpush1.bf16.msra.mxu0 %v2244
    %2444 = vmatprep.subr.bf16.mxu0 %v2243
    %2445 = vmatpush1.bf16.msra.mxu0 %v2242
    %2446 = vmatprep.subr.bf16.mxu0 %v2241
    %2447 = vmatpush1.bf16.msra.mxu0 %v2240
    %2448 = vmatprep.subr.bf16.mxu0 %v2271
    %2449 = vmatpush2.bf16.msra.mxu0 %v2270
    %2450 = vmatprep.subr.bf16.mxu0 %v2269
    %2451 = vmatpush2.bf16.msra.mxu0 %v2268
    %2452 = vmatprep.subr.bf16.mxu0 %v2267
    %2453 = vmatpush2.bf16.msra.mxu0 %v2266
    %2454 = vmatprep.subr.bf16.mxu0 %v2265
    %2455 = vmatpush2.bf16.msra.mxu0 %v2264
    %2456 = vmatprep.subr.bf16.mxu0 %v2263
    %2457 = vmatpush2.bf16.msra.mxu0 %v2262
    %2458 = vmatprep.subr.bf16.mxu0 %v2261
    %2459 = vmatpush2.bf16.msra.mxu0 %v2260
    %2460 = vmatprep.subr.bf16.mxu0 %v2259
    %2461 = vmatpush2.bf16.msra.mxu0 %v2258
    %2462 = vmatprep.subr.bf16.mxu0 %v2257
    %2463 = vmatpush2.bf16.msra.mxu0 %v2256
    %2464 = vmatprep.mubr.bf16.mxu0 %v1941
    %2465 = vmatmul.mubr.bf16.gmra.mxu0 %v1940
    %v2466 = vpop.f32.mrf.mxu0
    %v2467 = vadd.f32 %v1924, %v2466
    %v2468 = vpop.f32.mrf.mxu0
    %v2469 = vadd.f32 %v1928, %v2468
    %v2470 = vpop.f32.mrf.mxu0
    %v2471 = vpop.f32.mrf.mxu0
    %2472 = vdwg.mxu0
    %2473 = vmatprep.subr.bf16.mxu0 %v2287
    %2474 = vmatpush1.bf16.msra.mxu0 %v2286
    %2475 = vmatprep.subr.bf16.mxu0 %v2285
    %2476 = vmatpush1.bf16.msra.mxu0 %v2284
    %2477 = vmatprep.subr.bf16.mxu0 %v2283
    %2478 = vmatpush1.bf16.msra.mxu0 %v2282
    %2479 = vmatprep.subr.bf16.mxu0 %v2281
    %2480 = vmatpush1.bf16.msra.mxu0 %v2280
    %2481 = vmatprep.subr.bf16.mxu0 %v2279
    %2482 = vmatpush1.bf16.msra.mxu0 %v2278
    %2483 = vmatprep.subr.bf16.mxu0 %v2277
    %2484 = vmatpush1.bf16.msra.mxu0 %v2276
    %2485 = vmatprep.subr.bf16.mxu0 %v2275
    %2486 = vmatpush1.bf16.msra.mxu0 %v2274
    %2487 = vmatprep.subr.bf16.mxu0 %v2273
    %2488 = vmatpush1.bf16.msra.mxu0 %v2272
    %2489 = vmatprep.subr.bf16.mxu0 %v2303
    %2490 = vmatpush2.bf16.msra.mxu0 %v2302
    %2491 = vmatprep.subr.bf16.mxu0 %v2301
    %2492 = vmatpush2.bf16.msra.mxu0 %v2300
    %2493 = vmatprep.subr.bf16.mxu0 %v2299
    %2494 = vmatpush2.bf16.msra.mxu0 %v2298
    %2495 = vmatprep.subr.bf16.mxu0 %v2297
    %2496 = vmatpush2.bf16.msra.mxu0 %v2296
    %2497 = vmatprep.subr.bf16.mxu0 %v2295
    %2498 = vmatpush2.bf16.msra.mxu0 %v2294
    %2499 = vmatprep.subr.bf16.mxu0 %v2293
    %2500 = vmatpush2.bf16.msra.mxu0 %v2292
    %2501 = vmatprep.subr.bf16.mxu0 %v2291
    %2502 = vmatpush2.bf16.msra.mxu0 %v2290
    %2503 = vmatprep.subr.bf16.mxu0 %v2289
    %2504 = vmatpush2.bf16.msra.mxu0 %v2288
    %2505 = vmatprep.mubr.bf16.mxu0 %v1943
    %2506 = vmatmul.mubr.bf16.gmra.mxu0 %v1942
    %v2507 = vpop.f32.mrf.mxu0
    %v2508 = vadd.f32 %v2467, %v2507
    %v2509 = vpop.f32.mrf.mxu0
    %v2510 = vadd.f32 %v2469, %v2509
    %v2511 = vpop.f32.mrf.mxu0
    %v2512 = vpop.f32.mrf.mxu0
    %2513 = vdwg.mxu0
    %2514 = vmatprep.subr.bf16.mxu0 %v2319
    %2515 = vmatpush1.bf16.msra.mxu0 %v2318
    %2516 = vmatprep.subr.bf16.mxu0 %v2317
    %2517 = vmatpush1.bf16.msra.mxu0 %v2316
    %2518 = vmatprep.subr.bf16.mxu0 %v2315
    %2519 = vmatpush1.bf16.msra.mxu0 %v2314
    %2520 = vmatprep.subr.bf16.mxu0 %v2313
    %2521 = vmatpush1.bf16.msra.mxu0 %v2312
    %2522 = vmatprep.subr.bf16.mxu0 %v2311
    %2523 = vmatpush1.bf16.msra.mxu0 %v2310
    %2524 = vmatprep.subr.bf16.mxu0 %v2309
    %2525 = vmatpush1.bf16.msra.mxu0 %v2308
    %2526 = vmatprep.subr.bf16.mxu0 %v2307
    %2527 = vmatpush1.bf16.msra.mxu0 %v2306
    %2528 = vmatprep.subr.bf16.mxu0 %v2305
    %2529 = vmatpush1.bf16.msra.mxu0 %v2304
    %2530 = vmatprep.subr.bf16.mxu0 %v2335
    %2531 = vmatpush2.bf16.msra.mxu0 %v2334
    %2532 = vmatprep.subr.bf16.mxu0 %v2333
    %2533 = vmatpush2.bf16.msra.mxu0 %v2332
    %2534 = vmatprep.subr.bf16.mxu0 %v2331
    %2535 = vmatpush2.bf16.msra.mxu0 %v2330
    %2536 = vmatprep.subr.bf16.mxu0 %v2329
    %2537 = vmatpush2.bf16.msra.mxu0 %v2328
    %2538 = vmatprep.subr.bf16.mxu0 %v2327
    %2539 = vmatpush2.bf16.msra.mxu0 %v2326
    %2540 = vmatprep.subr.bf16.mxu0 %v2325
    %2541 = vmatpush2.bf16.msra.mxu0 %v2324
    %2542 = vmatprep.subr.bf16.mxu0 %v2323
    %2543 = vmatpush2.bf16.msra.mxu0 %v2322
    %2544 = vmatprep.subr.bf16.mxu0 %v2321
    %2545 = vmatpush2.bf16.msra.mxu0 %v2320
    %2546 = vmatprep.mubr.bf16.mxu0 %v1945
    %2547 = vmatmul.mubr.bf16.gmra.mxu0 %v1944
    %v2548 = vpop.f32.mrf.mxu0
    %v2549 = vadd.f32 %v2508, %v2548
    %v2550 = vpop.f32.mrf.mxu0
    %v2551 = vadd.f32 %v2510, %v2550
    %v2552 = vpop.f32.mrf.mxu0
    %v2553 = vpop.f32.mrf.mxu0
    %2554 = vdwg.mxu0
    %v2555 = vtanh.pop %v2549
    %v2556 = vtanh.pop %v2551
    %v2557 = vld [vmem:[%s8] sm:$0x3]
    %v2559 = vlaneseq
    %v2560 = vshrl.u32 %v2559, 7
    %v2561 = vsub.s32 0, %v2560
    %v2562 = vrot.slane %v2557, %v2561
    %v2563 = vlaneseq
    %v2564 = vshrl.u32 %v2563, 7
    %v2565 = vsub.s32 1, %v2564
    %v2566 = vrot.slane %v2557, %v2565
    %v2569 = vmul.f32 %v1818, %v2562
    %v2570 = vmul.f32 %v1819, %v2566
    %v2571 = vadd.f32 %v2569, %v2570
    %2572 = vadd.xlane.f32.xlu0 %v2571
    %v2573 = vpop.xlane.xlu0 %2572
    %v2574 = vld [vmem:[%s9] sm:$0x3]
    %v2576 = vlaneseq
    %v2577 = vshrl.u32 %v2576, 7
    %v2578 = vsub.s32 0, %v2577
    %v2579 = vrot.slane %v2574, %v2578
    %v2580 = vlaneseq
    %v2581 = vshrl.u32 %v2580, 7
    %v2582 = vsub.s32 1, %v2581
    %v2583 = vrot.slane %v2574, %v2582
    %v2586 = vmul.f32 %v2555, %v2579
    %v2587 = vmul.f32 %v2556, %v2583
    %v2588 = vadd.f32 %v2586, %v2587
    %2589 = vadd.xlane.f32.xlu0 %v2588
    %v2590 = vpop.xlane.xlu0 %2589
    %v2591 = vadd.f32 %v2573, %v2590
    %s2592 = sld [smem:[#allocation7]]
    %v2593 = vstv %s2592
    %v2594 = vadd.f32 %v2591, %v2593
    %v2595 = vld [vmem:[%s10] sm:$0x3]
    %v2597 = vlaneseq
    %v2598 = vshrl.u32 %v2597, 7
    %v2599 = vsub.s32 0, %v2598
    %v2600 = vrot.slane %v2595, %v2599
    %v2601 = vlaneseq
    %v2602 = vshrl.u32 %v2601, 7
    %v2603 = vsub.s32 1, %v2602
    %v2604 = vrot.slane %v2595, %v2603
    %v2607 = vmul.f32 %v1818, %v2600
    %v2608 = vmul.f32 %v1819, %v2604
    %v2609 = vadd.f32 %v2607, %v2608
    %2610 = vadd.xlane.f32.xlu0 %v2609
    %v2611 = vpop.xlane.xlu0 %2610
    %v2612 = vld [vmem:[%s11] sm:$0x3]
    %v2614 = vlaneseq
    %v2615 = vshrl.u32 %v2614, 7
    %v2616 = vsub.s32 0, %v2615
    %v2617 = vrot.slane %v2612, %v2616
    %v2618 = vlaneseq
    %v2619 = vshrl.u32 %v2618, 7
    %v2620 = vsub.s32 1, %v2619
    %v2621 = vrot.slane %v2612, %v2620
    %v2624 = vmul.f32 %v2555, %v2617
    %v2625 = vmul.f32 %v2556, %v2621
    %v2626 = vadd.f32 %v2624, %v2625
    %2627 = vadd.xlane.f32.xlu0 %v2626
    %v2628 = vpop.xlane.xlu0 %2627
    %v2629 = vadd.f32 %v2611, %v2628
    %s2630 = sld [smem:[#allocation7 + $0x1]]
    %v2631 = vstv %s2630
    %v2632 = vadd.f32 %v2629, %v2631
    %v2633 = vmax.f32 %v2594, %v2632
    %v2634 = vsub.f32 %v2594, %v2633
    %v2635 = vmul.f32 %v2634, 1.442695
    %v2636 = vpow.pop %v2635
    %v2637 = vsub.f32 %v2632, %v2633
    %v2638 = vmul.f32 %v2637, 1.442695
    %v2639 = vpow.pop %v2638
    %v2640 = vadd.f32 %v2636, %v2639
    %v2641 = vrcp.pop %v2640
    %v2642 = vmul.f32 %v2636, %v2641
    %v2643 = vmul.f32 %v2642, %v1818
    %v2644 = vmul.f32 %v2642, %v1819
    %v2645 = vmul.f32 %v2639, %v2641
    %v2646 = vmul.f32 %v2645, %v2555
    %v2647 = vmul.f32 %v2645, %v2556
    %v2648 = vadd.f32 %v2643, %v2646
    %v2649 = vadd.f32 %v2644, %v2647
    %v2650 = vpack.c.bf16 %v2648, %v2648
    %v2651 = vpack.c.bf16 %v2649, %v2649
    %v2652 = vld [vmem:[#allocation8] sm:$0xff]
    %v2653 = vld [vmem:[#allocation8 + $0x8] sm:$0xff]
    %v2654 = vld [vmem:[#allocation8 + $0x10] sm:$0xff]
    %v2655 = vld [vmem:[#allocation8 + $0x18] sm:$0xff]
    %v2656 = vld [vmem:[#allocation8 + $0x20] sm:$0xff]
    %v2657 = vld [vmem:[#allocation8 + $0x28] sm:$0xff]
    %v2658 = vld [vmem:[#allocation8 + $0x30] sm:$0xff]
    %v2659 = vld [vmem:[#allocation8 + $0x38] sm:$0xff]
    %v2660 = vld [vmem:[#allocation8 + $0x40] sm:$0xff]
    %v2661 = vld [vmem:[#allocation8 + $0x48] sm:$0xff]
    %v2662 = vld [vmem:[#allocation8 + $0x50] sm:$0xff]
    %v2663 = vld [vmem:[#allocation8 + $0x58] sm:$0xff]
    %v2664 = vld [vmem:[#allocation8 + $0x60] sm:$0xff]
    %v2665 = vld [vmem:[#allocation8 + $0x68] sm:$0xff]
    %v2666 = vld [vmem:[#allocation8 + $0x70] sm:$0xff]
    %v2667 = vld [vmem:[#allocation8 + $0x78] sm:$0xff]
    %v2668 = vld [vmem:[#allocation8 + $0x80] sm:$0xff]
    %v2669 = vld [vmem:[#allocation8 + $0x88] sm:$0xff]
    %v2670 = vld [vmem:[#allocation8 + $0x90] sm:$0xff]
    %v2671 = vld [vmem:[#allocation8 + $0x98] sm:$0xff]
    %v2672 = vld [vmem:[#allocation8 + $0xa0] sm:$0xff]
    %v2673 = vld [vmem:[#allocation8 + $0xa8] sm:$0xff]
    %v2674 = vld [vmem:[#allocation8 + $0xb0] sm:$0xff]
    %v2675 = vld [vmem:[#allocation8 + $0xb8] sm:$0xff]
    %v2676 = vld [vmem:[#allocation8 + $0xc0] sm:$0xff]
    %v2677 = vld [vmem:[#allocation8 + $0xc8] sm:$0xff]
    %v2678 = vld [vmem:[#allocation8 + $0xd0] sm:$0xff]
    %v2679 = vld [vmem:[#allocation8 + $0xd8] sm:$0xff]
    %v2680 = vld [vmem:[#allocation8 + $0xe0] sm:$0xff]
    %v2681 = vld [vmem:[#allocation8 + $0xe8] sm:$0xff]
    %v2682 = vld [vmem:[#allocation8 + $0xf0] sm:$0xff]
    %v2683 = vld [vmem:[#allocation8 + $0xf8] sm:$0xff]
    %v2684 = vld [vmem:[#allocation9] sm:$0x3]
    %v2686 = vlaneseq
    %v2687 = vshrl.u32 %v2686, 7
    %v2688 = vsub.s32 0, %v2687
    %v2689 = vrot.slane %v2684, %v2688
    %v2690 = vlaneseq
    %v2691 = vshrl.u32 %v2690, 7
    %v2692 = vsub.s32 1, %v2691
    %v2693 = vrot.slane %v2684, %v2692
    %v2728 = vunpack.c.l.b16 %v2652
    %v2729 = vunpack.c.h.b16 %v2652
    %v2730 = vunpack.c.l.b16 %v2653
    %v2731 = vunpack.c.h.b16 %v2653
    %v2732 = vunpack.c.l.b16 %v2654
    %v2733 = vunpack.c.h.b16 %v2654
    %v2734 = vunpack.c.l.b16 %v2655
    %v2735 = vunpack.c.h.b16 %v2655
    %v2736 = vunpack.c.l.b16 %v2656
    %v2737 = vunpack.c.h.b16 %v2656
    %v2738 = vunpack.c.l.b16 %v2657
    %v2739 = vunpack.c.h.b16 %v2657
    %v2740 = vunpack.c.l.b16 %v2658
    %v2741 = vunpack.c.h.b16 %v2658
    %v2742 = vunpack.c.l.b16 %v2659
    %v2743 = vunpack.c.h.b16 %v2659
    %v2744 = vunpack.c.l.b16 %v2660
    %v2745 = vunpack.c.h.b16 %v2660
    %v2746 = vunpack.c.l.b16 %v2661
    %v2747 = vunpack.c.h.b16 %v2661
    %v2748 = vunpack.c.l.b16 %v2662
    %v2749 = vunpack.c.h.b16 %v2662
    %v2750 = vunpack.c.l.b16 %v2663
    %v2751 = vunpack.c.h.b16 %v2663
    %v2752 = vunpack.c.l.b16 %v2664
    %v2753 = vunpack.c.h.b16 %v2664
    %v2754 = vunpack.c.l.b16 %v2665
    %v2755 = vunpack.c.h.b16 %v2665
    %v2756 = vunpack.c.l.b16 %v2666
    %v2757 = vunpack.c.h.b16 %v2666
    %v2758 = vunpack.c.l.b16 %v2667
    %v2759 = vunpack.c.h.b16 %v2667
    %v2760 = vunpack.c.l.b16 %v2668
    %v2761 = vunpack.c.h.b16 %v2668
    %v2762 = vunpack.c.l.b16 %v2669
    %v2763 = vunpack.c.h.b16 %v2669
    %v2764 = vunpack.c.l.b16 %v2670
    %v2765 = vunpack.c.h.b16 %v2670
    %v2766 = vunpack.c.l.b16 %v2671
    %v2767 = vunpack.c.h.b16 %v2671
    %v2768 = vunpack.c.l.b16 %v2672
    %v2769 = vunpack.c.h.b16 %v2672
    %v2770 = vunpack.c.l.b16 %v2673
    %v2771 = vunpack.c.h.b16 %v2673
    %v2772 = vunpack.c.l.b16 %v2674
    %v2773 = vunpack.c.h.b16 %v2674
    %v2774 = vunpack.c.l.b16 %v2675
    %v2775 = vunpack.c.h.b16 %v2675
    %v2776 = vunpack.c.l.b16 %v2676
    %v2777 = vunpack.c.h.b16 %v2676
    %v2778 = vunpack.c.l.b16 %v2677
    %v2779 = vunpack.c.h.b16 %v2677
    %v2780 = vunpack.c.l.b16 %v2678
    %v2781 = vunpack.c.h.b16 %v2678
    %v2782 = vunpack.c.l.b16 %v2679
    %v2783 = vunpack.c.h.b16 %v2679
    %v2784 = vunpack.c.l.b16 %v2680
    %v2785 = vunpack.c.h.b16 %v2680
    %v2786 = vunpack.c.l.b16 %v2681
    %v2787 = vunpack.c.h.b16 %v2681
    %v2788 = vunpack.c.l.b16 %v2682
    %v2789 = vunpack.c.h.b16 %v2682
    %v2790 = vunpack.c.l.b16 %v2683
    %v2791 = vunpack.c.h.b16 %v2683
    %v2792 = vpack.c.b16 %v2730, %v2728
    %v2793 = vpack.c.b16 %v2731, %v2729
    %v2794 = vpack.c.b16 %v2734, %v2732
    %v2795 = vpack.c.b16 %v2735, %v2733
    %v2796 = vpack.c.b16 %v2738, %v2736
    %v2797 = vpack.c.b16 %v2739, %v2737
    %v2798 = vpack.c.b16 %v2742, %v2740
    %v2799 = vpack.c.b16 %v2743, %v2741
    %v2800 = vpack.c.b16 %v2746, %v2744
    %v2801 = vpack.c.b16 %v2747, %v2745
    %v2802 = vpack.c.b16 %v2750, %v2748
    %v2803 = vpack.c.b16 %v2751, %v2749
    %v2804 = vpack.c.b16 %v2754, %v2752
    %v2805 = vpack.c.b16 %v2755, %v2753
    %v2806 = vpack.c.b16 %v2758, %v2756
    %v2807 = vpack.c.b16 %v2759, %v2757
    %v2808 = vpack.c.b16 %v2762, %v2760
    %v2809 = vpack.c.b16 %v2763, %v2761
    %v2810 = vpack.c.b16 %v2766, %v2764
    %v2811 = vpack.c.b16 %v2767, %v2765
    %v2812 = vpack.c.b16 %v2770, %v2768
    %v2813 = vpack.c.b16 %v2771, %v2769
    %v2814 = vpack.c.b16 %v2774, %v2772
    %v2815 = vpack.c.b16 %v2775, %v2773
    %v2816 = vpack.c.b16 %v2778, %v2776
    %v2817 = vpack.c.b16 %v2779, %v2777
    %v2818 = vpack.c.b16 %v2782, %v2780
    %v2819 = vpack.c.b16 %v2783, %v2781
    %v2820 = vpack.c.b16 %v2786, %v2784
    %v2821 = vpack.c.b16 %v2787, %v2785
    %v2822 = vpack.c.b16 %v2790, %v2788
    %v2823 = vpack.c.b16 %v2791, %v2789
    %2856 = vmatprep.subr.bf16.mxu0 %v2807
    %2857 = vmatpush1.bf16.msra.mxu0 %v2806
    %2858 = vmatprep.subr.bf16.mxu0 %v2805
    %2859 = vmatpush1.bf16.msra.mxu0 %v2804
    %2860 = vmatprep.subr.bf16.mxu0 %v2803
    %2861 = vmatpush1.bf16.msra.mxu0 %v2802
    %2862 = vmatprep.subr.bf16.mxu0 %v2801
    %2863 = vmatpush1.bf16.msra.mxu0 %v2800
    %2864 = vmatprep.subr.bf16.mxu0 %v2799
    %2865 = vmatpush1.bf16.msra.mxu0 %v2798
    %2866 = vmatprep.subr.bf16.mxu0 %v2797
    %2867 = vmatpush1.bf16.msra.mxu0 %v2796
    %2868 = vmatprep.subr.bf16.mxu0 %v2795
    %2869 = vmatpush1.bf16.msra.mxu0 %v2794
    %2870 = vmatprep.subr.bf16.mxu0 %v2793
    %2871 = vmatpush1.bf16.msra.mxu0 %v2792
    %2872 = vmatprep.subr.bf16.mxu0 %v2823
    %2873 = vmatpush2.bf16.msra.mxu0 %v2822
    %2874 = vmatprep.subr.bf16.mxu0 %v2821
    %2875 = vmatpush2.bf16.msra.mxu0 %v2820
    %2876 = vmatprep.subr.bf16.mxu0 %v2819
    %2877 = vmatpush2.bf16.msra.mxu0 %v2818
    %2878 = vmatprep.subr.bf16.mxu0 %v2817
    %2879 = vmatpush2.bf16.msra.mxu0 %v2816
    %2880 = vmatprep.subr.bf16.mxu0 %v2815
    %2881 = vmatpush2.bf16.msra.mxu0 %v2814
    %2882 = vmatprep.subr.bf16.mxu0 %v2813
    %2883 = vmatpush2.bf16.msra.mxu0 %v2812
    %2884 = vmatprep.subr.bf16.mxu0 %v2811
    %2885 = vmatpush2.bf16.msra.mxu0 %v2810
    %2886 = vmatprep.subr.bf16.mxu0 %v2809
    %2887 = vmatpush2.bf16.msra.mxu0 %v2808
    %2888 = vmatprep.mubr.bf16.mxu0 %v2651
    %2889 = vmatmul.mubr.bf16.gmra.mxu0 %v2650
    %v2890 = vpop.f32.mrf.mxu0
    %v2891 = vadd.f32 %v2689, %v2890
    %v2892 = vpop.f32.mrf.mxu0
    %v2893 = vadd.f32 %v2693, %v2892
    %v2894 = vpop.f32.mrf.mxu0
    %v2895 = vpop.f32.mrf.mxu0
    %2896 = vdwg.mxu0
    %v2897 = vld [vmem:[#allocation11] sm:$0x3]
    %v2899 = vlaneseq
    %v2900 = vshrl.u32 %v2899, 7
    %v2901 = vsub.s32 0, %v2900
    %v2902 = vrot.slane %v2897, %v2901
    %v2903 = vlaneseq
    %v2904 = vshrl.u32 %v2903, 7
    %v2905 = vsub.s32 1, %v2904
    %v2906 = vrot.slane %v2897, %v2905
    %v2909 = vmul.f32 %v2891, %v2902
    %v2910 = vmul.f32 %v2893, %v2906
    %v2911 = vld [vmem:[#allocation12] sm:$0x3]
    %v2913 = vlaneseq
    %v2914 = vshrl.u32 %v2913, 7
    %v2915 = vsub.s32 0, %v2914
    %v2916 = vrot.slane %v2911, %v2915
    %v2917 = vlaneseq
    %v2918 = vshrl.u32 %v2917, 7
    %v2919 = vsub.s32 1, %v2918
    %v2920 = vrot.slane %v2911, %v2919
    %v2923 = vadd.f32 %v2909, %v2916
    %v2924 = vadd.f32 %v2910, %v2920
    %v2925 = vmax.f32 %v2923, 0.0
    %v2926 = vmax.f32 %v2924, 0.0
    %v2927 = vpack.c.bf16 %v2925, %v2925
    %v2928 = vpack.c.bf16 %v2926, %v2926
    %v2929 = vld [vmem:[%s17] sm:$0xf]
    %v2930 = vld [vmem:[%s17 + $0x4] sm:$0xf]
    %v2931 = vld [vmem:[%s17 + $0x8] sm:$0xf]
    %v2932 = vld [vmem:[%s17 + $0xc] sm:$0xf]
    %v2933 = vld [vmem:[%s17 + $0x10] sm:$0xf]
    %v2934 = vld [vmem:[%s17 + $0x14] sm:$0xf]
    %v2935 = vld [vmem:[%s17 + $0x18] sm:$0xf]
    %v2936 = vld [vmem:[%s17 + $0x1c] sm:$0xf]
    %v2937 = vld [vmem:[%s17 + $0x20] sm:$0xf]
    %v2938 = vld [vmem:[%s17 + $0x24] sm:$0xf]
    %v2939 = vld [vmem:[%s17 + $0x28] sm:$0xf]
    %v2940 = vld [vmem:[%s17 + $0x2c] sm:$0xf]
    %v2941 = vld [vmem:[%s17 + $0x30] sm:$0xf]
    %v2942 = vld [vmem:[%s17 + $0x34] sm:$0xf]
    %v2943 = vld [vmem:[%s17 + $0x38] sm:$0xf]
    %v2944 = vld [vmem:[%s17 + $0x3c] sm:$0xf]
    %v2945 = vld [vmem:[%s17 + $0x40] sm:$0xf]
    %v2946 = vld [vmem:[%s17 + $0x44] sm:$0xf]
    %v2947 = vld [vmem:[%s17 + $0x48] sm:$0xf]
    %v2948 = vld [vmem:[%s17 + $0x4c] sm:$0xf]
    %v2949 = vld [vmem:[%s17 + $0x50] sm:$0xf]
    %v2950 = vld [vmem:[%s17 + $0x54] sm:$0xf]
    %v2951 = vld [vmem:[%s17 + $0x58] sm:$0xf]
    %v2952 = vld [vmem:[%s17 + $0x5c] sm:$0xf]
    %v2953 = vld [vmem:[%s17 + $0x60] sm:$0xf]
    %v2954 = vld [vmem:[%s17 + $0x64] sm:$0xf]
    %v2955 = vld [vmem:[%s17 + $0x68] sm:$0xf]
    %v2956 = vld [vmem:[%s17 + $0x6c] sm:$0xf]
    %v2957 = vld [vmem:[%s17 + $0x70] sm:$0xf]
    %v2958 = vld [vmem:[%s17 + $0x74] sm:$0xf]
    %v2959 = vld [vmem:[%s17 + $0x78] sm:$0xf]
    %v2960 = vld [vmem:[%s17 + $0x7c] sm:$0xf]
    %v2961 = vld [vmem:[#allocation14] sm:$0x1]
    %v2963 = vlaneseq
    %v2964 = vshrl.u32 %v2963, 7
    %v2965 = vsub.s32 0, %v2964
    %v2966 = vrot.slane %v2961, %v2965
    %v3000 = vunpack.c.l.b16 %v2929
    %v3001 = vunpack.c.l.b16 %v2930
    %v3002 = vunpack.c.l.b16 %v2931
    %v3003 = vunpack.c.l.b16 %v2932
    %v3004 = vunpack.c.l.b16 %v2933
    %v3005 = vunpack.c.l.b16 %v2934
    %v3006 = vunpack.c.l.b16 %v2935
    %v3007 = vunpack.c.l.b16 %v2936
    %v3008 = vunpack.c.l.b16 %v2937
    %v3009 = vunpack.c.l.b16 %v2938
    %v3010 = vunpack.c.l.b16 %v2939
    %v3011 = vunpack.c.l.b16 %v2940
    %v3012 = vunpack.c.l.b16 %v2941
    %v3013 = vunpack.c.l.b16 %v2942
    %v3014 = vunpack.c.l.b16 %v2943
    %v3015 = vunpack.c.l.b16 %v2944
    %v3016 = vunpack.c.l.b16 %v2945
    %v3017 = vunpack.c.l.b16 %v2946
    %v3018 = vunpack.c.l.b16 %v2947
    %v3019 = vunpack.c.l.b16 %v2948
    %v3020 = vunpack.c.l.b16 %v2949
    %v3021 = vunpack.c.l.b16 %v2950
    %v3022 = vunpack.c.l.b16 %v2951
    %v3023 = vunpack.c.l.b16 %v2952
    %v3024 = vunpack.c.l.b16 %v2953
    %v3025 = vunpack.c.l.b16 %v2954
    %v3026 = vunpack.c.l.b16 %v2955
    %v3027 = vunpack.c.l.b16 %v2956
    %v3028 = vunpack.c.l.b16 %v2957
    %v3029 = vunpack.c.l.b16 %v2958
    %v3030 = vunpack.c.l.b16 %v2959
    %v3031 = vunpack.c.l.b16 %v2960
    %v3032 = vpack.c.b16 %v3001, %v3000
    %v3033 = vpack.c.b16 %v3003, %v3002
    %v3034 = vpack.c.b16 %v3005, %v3004
    %v3035 = vpack.c.b16 %v3007, %v3006
    %v3036 = vpack.c.b16 %v3009, %v3008
    %v3037 = vpack.c.b16 %v3011, %v3010
    %v3038 = vpack.c.b16 %v3013, %v3012
    %v3039 = vpack.c.b16 %v3015, %v3014
    %v3040 = vpack.c.b16 %v3017, %v3016
    %v3041 = vpack.c.b16 %v3019, %v3018
    %v3042 = vpack.c.b16 %v3021, %v3020
    %v3043 = vpack.c.b16 %v3023, %v3022
    %v3044 = vpack.c.b16 %v3025, %v3024
    %v3045 = vpack.c.b16 %v3027, %v3026
    %v3046 = vpack.c.b16 %v3029, %v3028
    %v3047 = vpack.c.b16 %v3031, %v3030
    %3064 = vmatprep.subr.bf16.mxu0 0
    %3065 = vmatpush1.bf16.msra.mxu0 %v3039
    %3066 = vmatprep.subr.bf16.mxu0 0
    %3067 = vmatpush1.bf16.msra.mxu0 %v3038
    %3068 = vmatprep.subr.bf16.mxu0 0
    %3069 = vmatpush1.bf16.msra.mxu0 %v3037
    %3070 = vmatprep.subr.bf16.mxu0 0
    %3071 = vmatpush1.bf16.msra.mxu0 %v3036
    %3072 = vmatprep.subr.bf16.mxu0 0
    %3073 = vmatpush1.bf16.msra.mxu0 %v3035
    %3074 = vmatprep.subr.bf16.mxu0 0
    %3075 = vmatpush1.bf16.msra.mxu0 %v3034
    %3076 = vmatprep.subr.bf16.mxu0 0
    %3077 = vmatpush1.bf16.msra.mxu0 %v3033
    %3078 = vmatprep.subr.bf16.mxu0 0
    %3079 = vmatpush1.bf16.msra.mxu0 %v3032
    %3080 = vmatprep.subr.bf16.mxu0 0
    %3081 = vmatpush2.bf16.msra.mxu0 %v3047
    %3082 = vmatprep.subr.bf16.mxu0 0
    %3083 = vmatpush2.bf16.msra.mxu0 %v3046
    %3084 = vmatprep.subr.bf16.mxu0 0
    %3085 = vmatpush2.bf16.msra.mxu0 %v3045
    %3086 = vmatprep.subr.bf16.mxu0 0
    %3087 = vmatpush2.bf16.msra.mxu0 %v3044
    %3088 = vmatprep.subr.bf16.mxu0 0
    %3089 = vmatpush2.bf16.msra.mxu0 %v3043
    %3090 = vmatprep.subr.bf16.mxu0 0
    %3091 = vmatpush2.bf16.msra.mxu0 %v3042
    %3092 = vmatprep.subr.bf16.mxu0 0
    %3093 = vmatpush2.bf16.msra.mxu0 %v3041
    %3094 = vmatprep.subr.bf16.mxu0 0
    %3095 = vmatpush2.bf16.msra.mxu0 %v3040
    %3096 = vmatprep.mubr.bf16.mxu0 %v2928
    %3097 = vmatmul.mubr.bf16.gmra.mxu0 %v2927
    %v3098 = vpop.f32.mrf.mxu0
    %v3099 = vadd.f32 %v2966, %v3098
    %v3100 = vpop.f32.mrf.mxu0
    %v3101 = vpop.f32.mrf.mxu0
    %v3102 = vpop.f32.mrf.mxu0
    %3103 = vdwg.mxu0
    %v3104 = vld [vmem:[#allocation15] sm:$0x1]
    %v3106 = vlaneseq
    %v3107 = vshrl.u32 %v3106, 7
    %v3108 = vsub.s32 0, %v3107
    %v3109 = vrot.slane %v3104, %v3108
    %v3111 = vmul.f32 %v3099, %v3109
    %v3112 = vld [vmem:[#allocation17] sm:$0x1]
    %v3114 = vlaneseq
    %v3115 = vshrl.u32 %v3114, 7
    %v3116 = vsub.s32 0, %v3115
    %v3117 = vrot.slane %v3112, %v3116
    %v3119 = vadd.f32 %v3111, %v3117
    %v3120 = vmax.f32 %v3119, 0.0
    %v3121 = vpack.c.bf16 %v3120, %v3120
    %v3122 = vld [vmem:[#allocation18] sm:$0xf]
    %v3123 = vld [vmem:[#allocation18 + $0x4] sm:$0xf]
    %v3124 = vld [vmem:[#allocation18 + $0x8] sm:$0xf]
    %v3125 = vld [vmem:[#allocation18 + $0xc] sm:$0xf]
    %v3126 = vld [vmem:[#allocation18 + $0x10] sm:$0xf]
    %v3127 = vld [vmem:[#allocation18 + $0x14] sm:$0xf]
    %v3128 = vld [vmem:[#allocation18 + $0x18] sm:$0xf]
    %v3129 = vld [vmem:[#allocation18 + $0x1c] sm:$0xf]
    %v3130 = vld [vmem:[#allocation18 + $0x20] sm:$0xf]
    %v3131 = vld [vmem:[#allocation18 + $0x24] sm:$0xf]
    %v3132 = vld [vmem:[#allocation18 + $0x28] sm:$0xf]
    %v3133 = vld [vmem:[#allocation18 + $0x2c] sm:$0xf]
    %v3134 = vld [vmem:[#allocation18 + $0x30] sm:$0xf]
    %v3135 = vld [vmem:[#allocation18 + $0x34] sm:$0xf]
    %v3136 = vld [vmem:[#allocation18 + $0x38] sm:$0xf]
    %v3137 = vld [vmem:[#allocation18 + $0x3c] sm:$0xf]
    %v3138 = vld [vmem:[#allocation20] sm:$0x1]
    %v3140 = vlaneseq
    %v3141 = vshrl.u32 %v3140, 7
    %v3142 = vsub.s32 0, %v3141
    %v3143 = vrot.slane %v3138, %v3142
    %v3161 = vunpack.c.l.b16 %v3122
    %v3162 = vunpack.c.l.b16 %v3123
    %v3163 = vunpack.c.l.b16 %v3124
    %v3164 = vunpack.c.l.b16 %v3125
    %v3165 = vunpack.c.l.b16 %v3126
    %v3166 = vunpack.c.l.b16 %v3127
    %v3167 = vunpack.c.l.b16 %v3128
    %v3168 = vunpack.c.l.b16 %v3129
    %v3169 = vunpack.c.l.b16 %v3130
    %v3170 = vunpack.c.l.b16 %v3131
    %v3171 = vunpack.c.l.b16 %v3132
    %v3172 = vunpack.c.l.b16 %v3133
    %v3173 = vunpack.c.l.b16 %v3134
    %v3174 = vunpack.c.l.b16 %v3135
    %v3175 = vunpack.c.l.b16 %v3136
    %v3176 = vunpack.c.l.b16 %v3137
    %v3177 = vpack.c.b16 %v3162, %v3161
    %v3178 = vpack.c.b16 %v3164, %v3163
    %v3179 = vpack.c.b16 %v3166, %v3165
    %v3180 = vpack.c.b16 %v3168, %v3167
    %v3181 = vpack.c.b16 %v3170, %v3169
    %v3182 = vpack.c.b16 %v3172, %v3171
    %v3183 = vpack.c.b16 %v3174, %v3173
    %v3184 = vpack.c.b16 %v3176, %v3175
    %3193 = vmatprep.subr.bf16.mxu0 0
    %3194 = vmatpush1.bf16.msra.mxu0 %v3184
    %3195 = vmatprep.subr.bf16.mxu0 0
    %3196 = vmatpush1.bf16.msra.mxu0 %v3183
    %3197 = vmatprep.subr.bf16.mxu0 0
    %3198 = vmatpush1.bf16.msra.mxu0 %v3182
    %3199 = vmatprep.subr.bf16.mxu0 0
    %3200 = vmatpush1.bf16.msra.mxu0 %v3181
    %3201 = vmatprep.subr.bf16.mxu0 0
    %3202 = vmatpush1.bf16.msra.mxu0 %v3180
    %3203 = vmatprep.subr.bf16.mxu0 0
    %3204 = vmatpush1.bf16.msra.mxu0 %v3179
    %3205 = vmatprep.subr.bf16.mxu0 0
    %3206 = vmatpush1.bf16.msra.mxu0 %v3178
    %3207 = vmatprep.subr.bf16.mxu0 0
    %3208 = vmatpush1.bf16.msra.mxu0 %v3177
    %3209 = vmatprep.subr.bf16.mxu0 0
    %3210 = vmatpush2.bf16.msra.mxu0 0
    %3211 = vmatprep.subr.bf16.mxu0 0
    %3212 = vmatpush2.bf16.msra.mxu0 0
    %3213 = vmatprep.subr.bf16.mxu0 0
    %3214 = vmatpush2.bf16.msra.mxu0 0
    %3215 = vmatprep.subr.bf16.mxu0 0
    %3216 = vmatpush2.bf16.msra.mxu0 0
    %3217 = vmatprep.subr.bf16.mxu0 0
    %3218 = vmatpush2.bf16.msra.mxu0 0
    %3219 = vmatprep.subr.bf16.mxu0 0
    %3220 = vmatpush2.bf16.msra.mxu0 0
    %3221 = vmatprep.subr.bf16.mxu0 0
    %3222 = vmatpush2.bf16.msra.mxu0 0
    %3223 = vmatprep.subr.bf16.mxu0 0
    %3224 = vmatpush2.bf16.msra.mxu0 0
    %3225 = vmatprep.mubr.bf16.mxu0 0
    %3226 = vmatmul.mubr.bf16.gmra.mxu0 %v3121
    %v3227 = vpop.f32.mrf.mxu0
    %v3228 = vadd.f32 %v3143, %v3227
    %v3229 = vpop.f32.mrf.mxu0
    %v3230 = vpop.f32.mrf.mxu0
    %v3231 = vpop.f32.mrf.mxu0
    %3232 = vdwg.mxu0
    %3233 = vst [vmem:[%s23] sm:$0xff] %v3228
    // Predicated region
    $region142: #{efficientnet_ifof_forward.1} parent=1 // pred_check
      _
    $region143: #{efficientnet_ifof_forward.1} parent=1 // pred_check_branch
      %3235 = sbr.rel (0) target = $region145
    $region144: #{efficientnet_ifof_forward.1} parent=1 // pred_region
      _
    $region145: #{efficientnet_ifof_forward.1} parent=1 // pred_fallthru
      _
    // Predicated region
    $region146: #{efficientnet_ifof_forward.1} parent=1 // pred_check
      _
    $region147: #{efficientnet_ifof_forward.1} parent=1 // pred_check_branch
      %3237 = sbr.rel (0) target = $region149
    $region148: #{efficientnet_ifof_forward.1} parent=1 // pred_region
      _
    $region149: #{efficientnet_ifof_forward.1} parent=1 // pred_fallthru
      _
    %3238 = vsyncpa [#allocation3], 1
    %3239 = vsyncpa [#allocation6], 1
    %3240 = vsyncpa [#allocation10], 1
    %3241 = vsyncpa [#allocation13], 1
    %3242 = vsyncpa [#allocation16], 1
    %3243 = vsyncpa [#allocation19], 1
    %3244 = vsyncpa [#allocation4], 1

</llo_original>
